<compile_context>
chip_gen: v5e
topology: v5e:2x2
jax: 0.10.0
libtpu: 0.0.40
codegen_flags: <defaults>
</compile_context>

<pallas_src>
import jax
import jax.numpy as jnp
from jax import lax
from jax.experimental import pallas as pl
from jax.experimental.pallas import tpu as pltpu  # noqa: F401

# ---------------- model hyper-params (small, consistent with the forward) ----
CIN = 4              # image channels
IH = IW = 8          # spatial
P = IH * IW          # flattened image length (64)
HIDDEN = 32          # hidden dim of encoders (must be even)
HH = HIDDEN // 2     # LSTM hidden per layer (16)
SEQ_LEN = 8          # sequence length
VOCAB = 16           # text vocab size
START_TAG = 1
END_TAG = 2
N_ATTN_PASSES = 4

W_ROWS = 88          # packed weight slab rows (x 128 lanes)
OUT_ROWS = 16        # packed output slab rows (x 128 lanes)


# ---------------- Pallas kernel: fully fused AttenGround ---------------------
def _atten_ground_kernel(w_ref, img_ref, emb_ref, out_ref):
    """Fused: image/text encoders -> 4x func_attention -> image decoder
       -> greedy 2-layer LSTM text decode.

    Inputs (all f32, fully VMEM resident):
      w_ref   : (88, 128) packed weight slab (see _pack_weight_slab)
      img_ref : (CIN, P)  raw image, channels x flattened spatial
      emb_ref : (H, L)    text-embedding lookup result, transposed (pre-tanh)
    Output:
      out_ref : (16, 128) packed: attn (L,P) @ [0:8, 0:64], re_text (L,VOCAB)
                @ [0:8, 64:80], re_img (CIN,P) @ [8:12, 0:64].
    """
    f32 = jnp.float32

    # ---- static weight slices from the packed slab ----
    enc_w   = w_ref[0:32, 0:4]          # (H, CIN)   image-encoder 1x1 conv
    enc_b   = w_ref[0:32, 4:5]          # (H, 1)
    l1_wx   = w_ref[32:48, 0:64]        # (HH, 4HH)  LSTM layer 1
    l1_wh   = w_ref[32:48, 64:128]
    l2_wx   = w_ref[48:64, 0:64]        # (HH, 4HH)  LSTM layer 2
    l2_wh   = w_ref[48:64, 64:128]
    dec_emb = w_ref[64:80, 0:16]        # (VOCAB, HH) decoder token embedding
    out_w   = w_ref[64:80, 16:32]       # (HH, VOCAB) decoder output proj
    dimg_w  = w_ref[80:84, 0:32]        # (CIN, H)   image-decoder 1x1 conv
    dimg_b  = w_ref[80:84, 32:33]       # (CIN, 1)
    l1_b    = w_ref[84:85, 0:64]        # (1, 4HH)
    l2_b    = w_ref[84:85, 64:128]      # (1, 4HH)
    out_b   = w_ref[85:86, 0:16]        # (1, VOCAB)

    # ---- encoders ----
    img = jnp.tanh(jnp.dot(enc_w, img_ref[...], preferred_element_type=f32)
                   + enc_b)                                              # (H, P)
    seq = jnp.tanh(emb_ref[...])                                         # (H, L)

    # ---- four chained func_attention passes, fully unrolled ----
    attn = None
    seqT = None
    for p in range(N_ATTN_PASSES):
        # attn_T[l, p] = sum_h seq[h, l] * img[h, p]
        logits = lax.dot_general(seq, img, (((0,), (0,)), ((), ())),
                                 preferred_element_type=f32)             # (L, P)
        # softmax over seq_len (axis 0) -- matches nn.Softmax() on (P, L)
        m = jnp.max(logits, axis=0, keepdims=True)
        e = jnp.exp(logits - m)
        attn = e / jnp.sum(e, axis=0, keepdims=True)   # exact division   # (L, P)

        # context_img[h, p] = sum_l seq[h, l] * attn_T[l, p]  (canonical matmul)
        new_img = jnp.dot(seq, attn, preferred_element_type=f32)          # (H, P)
        if p < N_ATTN_PASSES - 1:
            # context_seq[h, l] = sum_p img[h, p] * attn_T[l, p]
            seq = lax.dot_general(img, attn, (((1,), (1,)), ((), ())),
                                  preferred_element_type=f32)             # (H, L)
        else:
            # final pass: keep context_seq transposed so the decoder-init mean over
            # seq_len is a cheap sublane reduction into a (1, H) row vector.
            seqT = lax.dot_general(attn, img, (((1,), (1,)), ((), ())),
                                   preferred_element_type=f32)            # (L, H)
        img = new_img

    # ---- image decoder (1x1 conv) ----
    reimg = jnp.dot(dimg_w, img, preferred_element_type=f32) + dimg_b     # (CIN, P)

    # ---- fused greedy text decode (2-layer LSTM, SEQ_LEN steps, unrolled) ----
    # PyTorch: hidden = context_seq.view(H, L).mean(1).view(2, 1, HH); (h, c) = (hidden, hidden)
    mean_h = jnp.mean(seqT, axis=0, keepdims=True)                        # (1, H)
    h1 = mean_h[:, 0:HH]
    c1 = h1
    h2 = mean_h[:, HH:HIDDEN]
    c2 = h2

    vocab_iota = lax.broadcasted_iota(jnp.int32, (1, VOCAB), 1)           # (1, VOCAB)
    row_iota = lax.broadcasted_iota(jnp.int32, (SEQ_LEN, VOCAB), 0)       # (L, VOCAB)
    tok = jnp.full((1, 1), START_TAG, jnp.int32)
    act = jnp.ones((1, 1), f32)     # 1.0 while decoding, 0.0 once END_TAG was emitted
    retext = jnp.zeros((SEQ_LEN, VOCAB), f32)

    for t in range(SEQ_LEN):
        # data-dependent token embedding via one-hot @ dec_emb
        onehot = (vocab_iota == tok).astype(f32)                          # (1, VOCAB)
        x = jnp.dot(onehot, dec_emb, preferred_element_type=f32)          # (1, HH)

        # LSTM layer 1 (gate order i, f, g, o)
        g = (jnp.dot(x, l1_wx, preferred_element_type=f32)
             + jnp.dot(h1, l1_wh, preferred_element_type=f32) + l1_b)     # (1, 4HH)
        i_g = jax.nn.sigmoid(g[:, 0:HH])
        f_g = jax.nn.sigmoid(g[:, HH:2 * HH])
        g_g = jnp.tanh(g[:, 2 * HH:3 * HH])
        o_g = jax.nn.sigmoid(g[:, 3 * HH:4 * HH])
        c1 = f_g * c1 + i_g * g_g
        h1 = o_g * jnp.tanh(c1)

        # LSTM layer 2
        g = (jnp.dot(h1, l2_wx, preferred_element_type=f32)
             + jnp.dot(h2, l2_wh, preferred_element_type=f32) + l2_b)
        i_g = jax.nn.sigmoid(g[:, 0:HH])
        f_g = jax.nn.sigmoid(g[:, HH:2 * HH])
        g_g = jnp.tanh(g[:, 2 * HH:3 * HH])
        o_g = jax.nn.sigmoid(g[:, 3 * HH:4 * HH])
        c2 = f_g * c2 + i_g * g_g
        h2 = o_g * jnp.tanh(c2)

        logits_t = jnp.dot(h2, out_w, preferred_element_type=f32) + out_b  # (1, VOCAB)

        # write row t; rows after an earlier END_TAG stay zero (PyTorch early break)
        retext = jnp.where(row_iota == t, logits_t * act, retext)

        # greedy next token = lowest index attaining the row max (robust argmax)
        mx = jnp.max(logits_t, axis=1, keepdims=True)
        tok = jnp.min(jnp.where(logits_t >= mx, vocab_iota, VOCAB),
                      axis=1, keepdims=True).astype(jnp.int32)            # (1, 1)
        act = act * (tok != END_TAG).astype(f32)

    # ---- pack everything into one lane-dense (16, 128) output block ----
    out_ref[...] = jnp.zeros((OUT_ROWS, 128), f32)
    out_ref[0:SEQ_LEN, 0:P] = attn                      # rows 0-7,  lanes 0-63
    out_ref[0:SEQ_LEN, P:P + VOCAB] = retext            # rows 0-7,  lanes 64-79
    out_ref[SEQ_LEN:SEQ_LEN + CIN, 0:P] = reimg         # rows 8-11, lanes 0-63


# ---------------- weight packing (done once at init) -------------------------
def _pack_weight_slab(w):
    s = jnp.zeros((W_ROWS, 128), jnp.float32)
    s = s.at[0:32, 0:4].set(w["enc_img_w"])
    s = s.at[0:32, 4:5].set(w["enc_img_b"])
    s = s.at[32:48, 0:64].set(w["l1_wx"])
    s = s.at[32:48, 64:128].set(w["l1_wh"])
    s = s.at[48:64, 0:64].set(w["l2_wx"])
    s = s.at[48:64, 64:128].set(w["l2_wh"])
    s = s.at[64:80, 0:16].set(w["dec_emb"])
    s = s.at[64:80, 16:32].set(w["out_w"])
    s = s.at[80:84, 0:32].set(w["dec_img_w"])
    s = s.at[80:84, 32:33].set(w["dec_img_b"])
    s = s.at[84:85, 0:64].set(w["l1_b"][None, :])
    s = s.at[84:85, 64:128].set(w["l2_b"][None, :])
    s = s.at[85:86, 0:16].set(w["out_b"][None, :])
    return s


def init_params(key):
    ks = jax.random.split(key, 12)
    w = {
        # image_encoder: 1x1 conv CIN -> HIDDEN (+ tanh in kernel)
        "enc_img_w": 0.1 * jax.random.normal(ks[0], (HIDDEN, CIN), jnp.float32),
        "enc_img_b": 0.1 * jax.random.normal(ks[1], (HIDDEN, 1), jnp.float32),
        # text_encoder: embedding VOCAB -> HIDDEN (+ tanh in kernel)
        "enc_txt_emb": 0.1 * jax.random.normal(ks[2], (VOCAB, HIDDEN), jnp.float32),
        # image_decoder: 1x1 conv HIDDEN -> CIN
        "dec_img_w": 0.1 * jax.random.normal(ks[3], (CIN, HIDDEN), jnp.float32),
        "dec_img_b": 0.1 * jax.random.normal(ks[4], (CIN, 1), jnp.float32),
        # text_decoder: embedding + 2-layer LSTM (hidden = HH) + output proj
        "dec_emb": 0.1 * jax.random.normal(ks[5], (VOCAB, HH), jnp.float32),
        "l1_wx": 0.1 * jax.random.normal(ks[6], (HH, 4 * HH), jnp.float32),
        "l1_wh": 0.1 * jax.random.normal(ks[7], (HH, 4 * HH), jnp.float32),
        "l1_b": jnp.zeros((4 * HH,), jnp.float32),
        "l2_wx": 0.1 * jax.random.normal(ks[8], (HH, 4 * HH), jnp.float32),
        "l2_wh": 0.1 * jax.random.normal(ks[9], (HH, 4 * HH), jnp.float32),
        "l2_b": jnp.zeros((4 * HH,), jnp.float32),
        "out_w": 0.1 * jax.random.normal(ks[10], (HH, VOCAB), jnp.float32),
        "out_b": 0.1 * jax.random.normal(ks[11], (VOCAB,), jnp.float32),
    }
    return {
        "w_slab": _pack_weight_slab(w),        # one DMA per call, packed once here
        "enc_txt_emb_t": w["enc_txt_emb"].T,   # (HIDDEN, VOCAB) for column gather
    }


# ---------------- AttenGround forward -----------------------------------------
def atten_ground_forward(params, img, seq):
    """img: (1, CIN, IH, IW) f32; seq: (SEQ_LEN,) int32 token ids.
    Returns (re_img, re_text, attn) like the PyTorch AttenGround.forward."""
    img_flat = img.reshape(CIN, P)                       # batch = 1
    emb_hl = params["enc_txt_emb_t"][:, seq]             # (HIDDEN, SEQ_LEN) gather

    out = pl.pallas_call(
        _atten_ground_kernel,
        out_shape=jax.ShapeDtypeStruct((OUT_ROWS, 128), jnp.float32),
    )(params["w_slab"], img_flat, emb_hl)

    attn = out[0:SEQ_LEN, 0:P].reshape(1, SEQ_LEN, IH, IW)          # (1, L, IH, IW)
    re_text = out[0:SEQ_LEN, P:P + VOCAB]                           # (L, VOCAB)
    re_img = out[SEQ_LEN:SEQ_LEN + CIN, 0:P].reshape(1, CIN, IH, IW)
    return re_img, re_text, attn


# ---------------- main ---------------------------------------------------------
if __name__ == "__main__":
    key = jax.random.PRNGKey(0)
    k_img, k_seq, k_par = jax.random.split(key, 3)

    img = jax.random.normal(k_img, (1, CIN, IH, IW), jnp.float32)
    seq = jax.random.randint(k_seq, (SEQ_LEN,), 3, VOCAB, jnp.int32)
    params = init_params(k_par)

    fwd = jax.jit(atten_ground_forward)
    re_img, re_text, attn = fwd(params, img, seq)
    jax.block_until_ready((re_img, re_text, attn))

    assert re_img.shape == (1, CIN, IH, IW)
    assert re_text.shape == (SEQ_LEN, VOCAB)
    assert attn.shape == (1, SEQ_LEN, IH, IW)
    # attention is softmax-normalized over seq_len; exact division -> tight tolerance
    assert jnp.allclose(attn.sum(axis=1), 1.0, atol=1e-4)
    assert bool(jnp.all(jnp.isfinite(re_img)))
    assert bool(jnp.all(jnp.isfinite(re_text)))
    assert bool(jnp.all(jnp.isfinite(attn)))

    print("KERNEL_OK")
</pallas_src>

<mosaic_0001>
module attributes {stable_mosaic.version = 11 : i64} {
  func.func @_atten_ground_kernel(%arg0: memref<88x128xf32, #tpu.memory_space<vmem>>, %arg1: memref<4x64xf32, #tpu.memory_space<vmem>>, %arg2: memref<32x8xf32, #tpu.memory_space<vmem>>, %arg3: memref<16x128xf32, #tpu.memory_space<vmem>>) attributes {dimension_semantics = [], scalar_prefetch = 0 : i64, scratch_operands = 0 : i64, tpu.core_type = #tpu.core_type<tc>} {
    %c0 = arith.constant 0 : index
    %c0_0 = arith.constant 0 : index
    %0 = vector.load %arg0[%c0, %c0_0] : memref<88x128xf32, #tpu.memory_space<vmem>>, vector<32x4xf32>
    %c0_1 = arith.constant 0 : index
    %c4 = arith.constant 4 : index
    %1 = vector.load %arg0[%c0_1, %c4] : memref<88x128xf32, #tpu.memory_space<vmem>>, vector<32x1xf32>
    %c32 = arith.constant 32 : index
    %c0_2 = arith.constant 0 : index
    %2 = vector.load %arg0[%c32, %c0_2] : memref<88x128xf32, #tpu.memory_space<vmem>>, vector<16x64xf32>
    %c32_3 = arith.constant 32 : index
    %c64 = arith.constant 64 : index
    %3 = vector.load %arg0[%c32_3, %c64] : memref<88x128xf32, #tpu.memory_space<vmem>>, vector<16x64xf32>
    %c48 = arith.constant 48 : index
    %c0_4 = arith.constant 0 : index
    %4 = vector.load %arg0[%c48, %c0_4] : memref<88x128xf32, #tpu.memory_space<vmem>>, vector<16x64xf32>
    %c48_5 = arith.constant 48 : index
    %c64_6 = arith.constant 64 : index
    %5 = vector.load %arg0[%c48_5, %c64_6] : memref<88x128xf32, #tpu.memory_space<vmem>>, vector<16x64xf32>
    %c64_7 = arith.constant 64 : index
    %c0_8 = arith.constant 0 : index
    %6 = vector.load %arg0[%c64_7, %c0_8] : memref<88x128xf32, #tpu.memory_space<vmem>>, vector<16x16xf32>
    %c64_9 = arith.constant 64 : index
    %c16 = arith.constant 16 : index
    %7 = vector.load %arg0[%c64_9, %c16] : memref<88x128xf32, #tpu.memory_space<vmem>>, vector<16x16xf32>
    %c80 = arith.constant 80 : index
    %c0_10 = arith.constant 0 : index
    %8 = vector.load %arg0[%c80, %c0_10] : memref<88x128xf32, #tpu.memory_space<vmem>>, vector<4x32xf32>
    %c80_11 = arith.constant 80 : index
    %c32_12 = arith.constant 32 : index
    %9 = vector.load %arg0[%c80_11, %c32_12] : memref<88x128xf32, #tpu.memory_space<vmem>>, vector<4x1xf32>
    %c84 = arith.constant 84 : index
    %c0_13 = arith.constant 0 : index
    %10 = vector.load %arg0[%c84, %c0_13] : memref<88x128xf32, #tpu.memory_space<vmem>>, vector<1x64xf32>
    %c84_14 = arith.constant 84 : index
    %c64_15 = arith.constant 64 : index
    %11 = vector.load %arg0[%c84_14, %c64_15] : memref<88x128xf32, #tpu.memory_space<vmem>>, vector<1x64xf32>
    %c85 = arith.constant 85 : index
    %c0_16 = arith.constant 0 : index
    %12 = vector.load %arg0[%c85, %c0_16] : memref<88x128xf32, #tpu.memory_space<vmem>>, vector<1x16xf32>
    %c0_17 = arith.constant 0 : index
    %c0_18 = arith.constant 0 : index
    %13 = vector.load %arg1[%c0_17, %c0_18] : memref<4x64xf32, #tpu.memory_space<vmem>>, vector<4x64xf32>
    %cst = arith.constant dense<0.000000e+00> : vector<32x64xf32>
    %14 = tpu.matmul %0, %13, %cst {dimension_numbers = #tpu.dot_dimension_numbers<[1], [0], [0], [1], [0, 0, 1, 1], [], []>} : vector<32x4xf32>, vector<4x64xf32>, vector<32x64xf32> -> vector<32x64xf32>
    %15 = vector.broadcast %1 : vector<32x1xf32> to vector<32x64xf32>
    %16 = arith.addf %14, %15 : vector<32x64xf32>
    %17 = math.tanh %16 : vector<32x64xf32>
    %c0_19 = arith.constant 0 : index
    %c0_20 = arith.constant 0 : index
    %18 = vector.load %arg2[%c0_19, %c0_20] : memref<32x8xf32, #tpu.memory_space<vmem>>, vector<32x8xf32>
    %19 = math.tanh %18 : vector<32x8xf32>
    %cst_21 = arith.constant dense<0.000000e+00> : vector<8x64xf32>
    %20 = tpu.matmul %19, %17, %cst_21 {dimension_numbers = #tpu.dot_dimension_numbers<[0], [0], [1], [1], [0, 1, 1, 1], [], []>} : vector<32x8xf32>, vector<32x64xf32>, vector<8x64xf32> -> vector<8x64xf32>
    %cst_22 = arith.constant dense<0xFF800000> : vector<64xf32>
    %21 = vector.multi_reduction <maximumf>, %20, %cst_22 [0] : vector<8x64xf32> to vector<64xf32>
    %22 = vector.shape_cast %21 : vector<64xf32> to vector<1x64xf32>
    %23 = vector.broadcast %22 : vector<1x64xf32> to vector<8x64xf32>
    %24 = arith.subf %20, %23 : vector<8x64xf32>
    %25 = math.exp %24 : vector<8x64xf32>
    %cst_23 = arith.constant dense<0.000000e+00> : vector<64xf32>
    %26 = vector.multi_reduction <add>, %25, %cst_23 [0] : vector<8x64xf32> to vector<64xf32>
    %27 = vector.shape_cast %26 : vector<64xf32> to vector<1x64xf32>
    %28 = vector.broadcast %27 : vector<1x64xf32> to vector<8x64xf32>
    %29 = arith.divf %25, %28 : vector<8x64xf32>
    %cst_24 = arith.constant dense<0.000000e+00> : vector<32x64xf32>
    %30 = tpu.matmul %19, %29, %cst_24 {dimension_numbers = #tpu.dot_dimension_numbers<[1], [0], [0], [1], [0, 0, 1, 1], [], []>} : vector<32x8xf32>, vector<8x64xf32>, vector<32x64xf32> -> vector<32x64xf32>
    %cst_25 = arith.constant dense<0.000000e+00> : vector<32x8xf32>
    %31 = tpu.matmul %17, %29, %cst_25 {dimension_numbers = #tpu.dot_dimension_numbers<[1], [1], [0], [0], [0, 0, 1, 0], [], []>} : vector<32x64xf32>, vector<8x64xf32>, vector<32x8xf32> -> vector<32x8xf32>
    %cst_26 = arith.constant dense<0.000000e+00> : vector<8x64xf32>
    %32 = tpu.matmul %31, %30, %cst_26 {dimension_numbers = #tpu.dot_dimension_numbers<[0], [0], [1], [1], [0, 1, 1, 1], [], []>} : vector<32x8xf32>, vector<32x64xf32>, vector<8x64xf32> -> vector<8x64xf32>
    %cst_27 = arith.constant dense<0xFF800000> : vector<64xf32>
    %33 = vector.multi_reduction <maximumf>, %32, %cst_27 [0] : vector<8x64xf32> to vector<64xf32>
    %34 = vector.shape_cast %33 : vector<64xf32> to vector<1x64xf32>
    %35 = vector.broadcast %34 : vector<1x64xf32> to vector<8x64xf32>
    %36 = arith.subf %32, %35 : vector<8x64xf32>
    %37 = math.exp %36 : vector<8x64xf32>
    %cst_28 = arith.constant dense<0.000000e+00> : vector<64xf32>
    %38 = vector.multi_reduction <add>, %37, %cst_28 [0] : vector<8x64xf32> to vector<64xf32>
    %39 = vector.shape_cast %38 : vector<64xf32> to vector<1x64xf32>
    %40 = vector.broadcast %39 : vector<1x64xf32> to vector<8x64xf32>
    %41 = arith.divf %37, %40 : vector<8x64xf32>
    %cst_29 = arith.constant dense<0.000000e+00> : vector<32x64xf32>
    %42 = tpu.matmul %31, %41, %cst_29 {dimension_numbers = #tpu.dot_dimension_numbers<[1], [0], [0], [1], [0, 0, 1, 1], [], []>} : vector<32x8xf32>, vector<8x64xf32>, vector<32x64xf32> -> vector<32x64xf32>
    %cst_30 = arith.constant dense<0.000000e+00> : vector<32x8xf32>
    %43 = tpu.matmul %30, %41, %cst_30 {dimension_numbers = #tpu.dot_dimension_numbers<[1], [1], [0], [0], [0, 0, 1, 0], [], []>} : vector<32x64xf32>, vector<8x64xf32>, vector<32x8xf32> -> vector<32x8xf32>
    %cst_31 = arith.constant dense<0.000000e+00> : vector<8x64xf32>
    %44 = tpu.matmul %43, %42, %cst_31 {dimension_numbers = #tpu.dot_dimension_numbers<[0], [0], [1], [1], [0, 1, 1, 1], [], []>} : vector<32x8xf32>, vector<32x64xf32>, vector<8x64xf32> -> vector<8x64xf32>
    %cst_32 = arith.constant dense<0xFF800000> : vector<64xf32>
    %45 = vector.multi_reduction <maximumf>, %44, %cst_32 [0] : vector<8x64xf32> to vector<64xf32>
    %46 = vector.shape_cast %45 : vector<64xf32> to vector<1x64xf32>
    %47 = vector.broadcast %46 : vector<1x64xf32> to vector<8x64xf32>
    %48 = arith.subf %44, %47 : vector<8x64xf32>
    %49 = math.exp %48 : vector<8x64xf32>
    %cst_33 = arith.constant dense<0.000000e+00> : vector<64xf32>
    %50 = vector.multi_reduction <add>, %49, %cst_33 [0] : vector<8x64xf32> to vector<64xf32>
    %51 = vector.shape_cast %50 : vector<64xf32> to vector<1x64xf32>
    %52 = vector.broadcast %51 : vector<1x64xf32> to vector<8x64xf32>
    %53 = arith.divf %49, %52 : vector<8x64xf32>
    %cst_34 = arith.constant dense<0.000000e+00> : vector<32x64xf32>
    %54 = tpu.matmul %43, %53, %cst_34 {dimension_numbers = #tpu.dot_dimension_numbers<[1], [0], [0], [1], [0, 0, 1, 1], [], []>} : vector<32x8xf32>, vector<8x64xf32>, vector<32x64xf32> -> vector<32x64xf32>
    %cst_35 = arith.constant dense<0.000000e+00> : vector<32x8xf32>
    %55 = tpu.matmul %42, %53, %cst_35 {dimension_numbers = #tpu.dot_dimension_numbers<[1], [1], [0], [0], [0, 0, 1, 0], [], []>} : vector<32x64xf32>, vector<8x64xf32>, vector<32x8xf32> -> vector<32x8xf32>
    %cst_36 = arith.constant dense<0.000000e+00> : vector<8x64xf32>
    %56 = tpu.matmul %55, %54, %cst_36 {dimension_numbers = #tpu.dot_dimension_numbers<[0], [0], [1], [1], [0, 1, 1, 1], [], []>} : vector<32x8xf32>, vector<32x64xf32>, vector<8x64xf32> -> vector<8x64xf32>
    %cst_37 = arith.constant dense<0xFF800000> : vector<64xf32>
    %57 = vector.multi_reduction <maximumf>, %56, %cst_37 [0] : vector<8x64xf32> to vector<64xf32>
    %58 = vector.shape_cast %57 : vector<64xf32> to vector<1x64xf32>
    %59 = vector.broadcast %58 : vector<1x64xf32> to vector<8x64xf32>
    %60 = arith.subf %56, %59 : vector<8x64xf32>
    %61 = math.exp %60 : vector<8x64xf32>
    %cst_38 = arith.constant dense<0.000000e+00> : vector<64xf32>
    %62 = vector.multi_reduction <add>, %61, %cst_38 [0] : vector<8x64xf32> to vector<64xf32>
    %63 = vector.shape_cast %62 : vector<64xf32> to vector<1x64xf32>
    %64 = vector.broadcast %63 : vector<1x64xf32> to vector<8x64xf32>
    %65 = arith.divf %61, %64 : vector<8x64xf32>
    %cst_39 = arith.constant dense<0.000000e+00> : vector<32x64xf32>
    %66 = tpu.matmul %55, %65, %cst_39 {dimension_numbers = #tpu.dot_dimension_numbers<[1], [0], [0], [1], [0, 0, 1, 1], [], []>} : vector<32x8xf32>, vector<8x64xf32>, vector<32x64xf32> -> vector<32x64xf32>
    %cst_40 = arith.constant dense<0.000000e+00> : vector<8x32xf32>
    %67 = tpu.matmul %65, %54, %cst_40 {dimension_numbers = #tpu.dot_dimension_numbers<[1], [1], [0], [0], [0, 0, 1, 0], [], []>} : vector<8x64xf32>, vector<32x64xf32>, vector<8x32xf32> -> vector<8x32xf32>
    %cst_41 = arith.constant dense<0.000000e+00> : vector<4x64xf32>
    %68 = tpu.matmul %8, %66, %cst_41 {dimension_numbers = #tpu.dot_dimension_numbers<[1], [0], [0], [1], [0, 0, 1, 1], [], []>} : vector<4x32xf32>, vector<32x64xf32>, vector<4x64xf32> -> vector<4x64xf32>
    %69 = vector.broadcast %9 : vector<4x1xf32> to vector<4x64xf32>
    %70 = arith.addf %68, %69 : vector<4x64xf32>
    %cst_42 = arith.constant dense<0.000000e+00> : vector<32xf32>
    %71 = vector.multi_reduction <add>, %67, %cst_42 [0] : vector<8x32xf32> to vector<32xf32>
    %72 = vector.shape_cast %71 : vector<32xf32> to vector<1x32xf32>
    %cst_43 = arith.constant 8.000000e+00 : f32
    %73 = vector.broadcast %cst_43 : f32 to vector<1x32xf32>
    %74 = arith.divf %72, %73 : vector<1x32xf32>
    %75 = vector.extract_strided_slice %74 {offsets = [0, 0], sizes = [1, 16], strides = [1, 1]} : vector<1x32xf32> to vector<1x16xf32>
    %76 = vector.extract_strided_slice %74 {offsets = [0, 16], sizes = [1, 16], strides = [1, 1]} : vector<1x32xf32> to vector<1x16xf32>
    %77 = tpu.iota {dimensions = array<i32: 1>} : vector<1x16xi32>
    %78 = tpu.iota {dimensions = array<i32: 0>} : vector<8x16xi32>
    %c1_i32 = arith.constant 1 : i32
    %79 = vector.broadcast %c1_i32 : i32 to vector<1x1xi32>
    %cst_44 = arith.constant 1.000000e+00 : f32
    %80 = vector.broadcast %cst_44 : f32 to vector<1x1xf32>
    %cst_45 = arith.constant 0.000000e+00 : f32
    %81 = vector.broadcast %cst_45 : f32 to vector<8x16xf32>
    %82 = vector.broadcast %79 : vector<1x1xi32> to vector<1x16xi32>
    %83 = arith.cmpi eq, %77, %82 : vector<1x16xi32>
    %84 = arith.extui %83 : vector<1x16xi1> to vector<1x16xi32>
    %85 = arith.sitofp %84 : vector<1x16xi32> to vector<1x16xf32>
    %cst_46 = arith.constant dense<0.000000e+00> : vector<1x16xf32>
    %86 = tpu.matmul %85, %6, %cst_46 {dimension_numbers = #tpu.dot_dimension_numbers<[1], [0], [0], [1], [0, 0, 1, 1], [], []>} : vector<1x16xf32>, vector<16x16xf32>, vector<1x16xf32> -> vector<1x16xf32>
    %cst_47 = arith.constant dense<0.000000e+00> : vector<1x64xf32>
    %87 = tpu.matmul %86, %2, %cst_47 {dimension_numbers = #tpu.dot_dimension_numbers<[1], [0], [0], [1], [0, 0, 1, 1], [], []>} : vector<1x16xf32>, vector<16x64xf32>, vector<1x64xf32> -> vector<1x64xf32>
    %cst_48 = arith.constant dense<0.000000e+00> : vector<1x64xf32>
    %88 = tpu.matmul %75, %3, %cst_48 {dimension_numbers = #tpu.dot_dimension_numbers<[1], [0], [0], [1], [0, 0, 1, 1], [], []>} : vector<1x16xf32>, vector<16x64xf32>, vector<1x64xf32> -> vector<1x64xf32>
    %89 = arith.addf %87, %88 : vector<1x64xf32>
    %90 = arith.addf %89, %10 : vector<1x64xf32>
    %91 = vector.extract_strided_slice %90 {offsets = [0, 0], sizes = [1, 16], strides = [1, 1]} : vector<1x64xf32> to vector<1x16xf32>
    %92 = arith.negf %91 : vector<1x16xf32>
    %93 = math.exp %92 : vector<1x16xf32>
    %cst_49 = arith.constant 1.000000e+00 : f32
    %94 = vector.broadcast %cst_49 : f32 to vector<1x16xf32>
    %95 = arith.addf %94, %93 : vector<1x16xf32>
    %96 = arith.divf %94, %95 : vector<1x16xf32>
    %97 = vector.extract_strided_slice %90 {offsets = [0, 16], sizes = [1, 16], strides = [1, 1]} : vector<1x64xf32> to vector<1x16xf32>
    %98 = arith.negf %97 : vector<1x16xf32>
    %99 = math.exp %98 : vector<1x16xf32>
    %cst_50 = arith.constant 1.000000e+00 : f32
    %100 = vector.broadcast %cst_50 : f32 to vector<1x16xf32>
    %101 = arith.addf %100, %99 : vector<1x16xf32>
    %102 = arith.divf %100, %101 : vector<1x16xf32>
    %103 = vector.extract_strided_slice %90 {offsets = [0, 32], sizes = [1, 16], strides = [1, 1]} : vector<1x64xf32> to vector<1x16xf32>
    %104 = math.tanh %103 : vector<1x16xf32>
    %105 = vector.extract_strided_slice %90 {offsets = [0, 48], sizes = [1, 16], strides = [1, 1]} : vector<1x64xf32> to vector<1x16xf32>
    %106 = arith.negf %105 : vector<1x16xf32>
    %107 = math.exp %106 : vector<1x16xf32>
    %cst_51 = arith.constant 1.000000e+00 : f32
    %108 = vector.broadcast %cst_51 : f32 to vector<1x16xf32>
    %109 = arith.addf %108, %107 : vector<1x16xf32>
    %110 = arith.divf %108, %109 : vector<1x16xf32>
    %111 = arith.mulf %102, %75 : vector<1x16xf32>
    %112 = arith.mulf %96, %104 : vector<1x16xf32>
    %113 = arith.addf %111, %112 : vector<1x16xf32>
    %114 = math.tanh %113 : vector<1x16xf32>
    %115 = arith.mulf %110, %114 : vector<1x16xf32>
    %cst_52 = arith.constant dense<0.000000e+00> : vector<1x64xf32>
    %116 = tpu.matmul %115, %4, %cst_52 {dimension_numbers = #tpu.dot_dimension_numbers<[1], [0], [0], [1], [0, 0, 1, 1], [], []>} : vector<1x16xf32>, vector<16x64xf32>, vector<1x64xf32> -> vector<1x64xf32>
    %cst_53 = arith.constant dense<0.000000e+00> : vector<1x64xf32>
    %117 = tpu.matmul %76, %5, %cst_53 {dimension_numbers = #tpu.dot_dimension_numbers<[1], [0], [0], [1], [0, 0, 1, 1], [], []>} : vector<1x16xf32>, vector<16x64xf32>, vector<1x64xf32> -> vector<1x64xf32>
    %118 = arith.addf %116, %117 : vector<1x64xf32>
    %119 = arith.addf %118, %11 : vector<1x64xf32>
    %120 = vector.extract_strided_slice %119 {offsets = [0, 0], sizes = [1, 16], strides = [1, 1]} : vector<1x64xf32> to vector<1x16xf32>
    %121 = arith.negf %120 : vector<1x16xf32>
    %122 = math.exp %121 : vector<1x16xf32>
    %cst_54 = arith.constant 1.000000e+00 : f32
    %123 = vector.broadcast %cst_54 : f32 to vector<1x16xf32>
    %124 = arith.addf %123, %122 : vector<1x16xf32>
    %125 = arith.divf %123, %124 : vector<1x16xf32>
    %126 = vector.extract_strided_slice %119 {offsets = [0, 16], sizes = [1, 16], strides = [1, 1]} : vector<1x64xf32> to vector<1x16xf32>
    %127 = arith.negf %126 : vector<1x16xf32>
    %128 = math.exp %127 : vector<1x16xf32>
    %cst_55 = arith.constant 1.000000e+00 : f32
    %129 = vector.broadcast %cst_55 : f32 to vector<1x16xf32>
    %130 = arith.addf %129, %128 : vector<1x16xf32>
    %131 = arith.divf %129, %130 : vector<1x16xf32>
    %132 = vector.extract_strided_slice %119 {offsets = [0, 32], sizes = [1, 16], strides = [1, 1]} : vector<1x64xf32> to vector<1x16xf32>
    %133 = math.tanh %132 : vector<1x16xf32>
    %134 = vector.extract_strided_slice %119 {offsets = [0, 48], sizes = [1, 16], strides = [1, 1]} : vector<1x64xf32> to vector<1x16xf32>
    %135 = arith.negf %134 : vector<1x16xf32>
    %136 = math.exp %135 : vector<1x16xf32>
    %cst_56 = arith.constant 1.000000e+00 : f32
    %137 = vector.broadcast %cst_56 : f32 to vector<1x16xf32>
    %138 = arith.addf %137, %136 : vector<1x16xf32>
    %139 = arith.divf %137, %138 : vector<1x16xf32>
    %140 = arith.mulf %131, %76 : vector<1x16xf32>
    %141 = arith.mulf %125, %133 : vector<1x16xf32>
    %142 = arith.addf %140, %141 : vector<1x16xf32>
    %143 = math.tanh %142 : vector<1x16xf32>
    %144 = arith.mulf %139, %143 : vector<1x16xf32>
    %cst_57 = arith.constant dense<0.000000e+00> : vector<1x16xf32>
    %145 = tpu.matmul %144, %7, %cst_57 {dimension_numbers = #tpu.dot_dimension_numbers<[1], [0], [0], [1], [0, 0, 1, 1], [], []>} : vector<1x16xf32>, vector<16x16xf32>, vector<1x16xf32> -> vector<1x16xf32>
    %146 = arith.addf %145, %12 : vector<1x16xf32>
    %c0_i32 = arith.constant 0 : i32
    %147 = vector.broadcast %c0_i32 : i32 to vector<8x16xi32>
    %148 = arith.cmpi eq, %78, %147 : vector<8x16xi32>
    %149 = vector.broadcast %80 : vector<1x1xf32> to vector<1x16xf32>
    %150 = arith.mulf %146, %149 : vector<1x16xf32>
    %151 = vector.shape_cast %150 : vector<1x16xf32> to vector<1x16xf32>
    %152 = vector.broadcast %151 : vector<1x16xf32> to vector<8x16xf32>
    %153 = arith.select %148, %152, %81 : vector<8x16xi1>, vector<8x16xf32>
    %cst_58 = arith.constant dense<0xFF800000> : vector<1xf32>
    %154 = vector.multi_reduction <maximumf>, %146, %cst_58 [1] : vector<1x16xf32> to vector<1xf32>
    %155 = vector.shape_cast %154 : vector<1xf32> to vector<1x1xf32>
    %156 = vector.broadcast %155 : vector<1x1xf32> to vector<1x16xf32>
    %157 = arith.cmpf oge, %146, %156 : vector<1x16xf32>
    %c16_i32 = arith.constant 16 : i32
    %158 = vector.broadcast %c16_i32 : i32 to vector<1x16xi32>
    %159 = arith.select %157, %77, %158 : vector<1x16xi1>, vector<1x16xi32>
    %cst_59 = arith.constant dense<2147483647> : vector<1xi32>
    %160 = vector.multi_reduction <minsi>, %159, %cst_59 [1] : vector<1x16xi32> to vector<1xi32>
    %161 = vector.shape_cast %160 : vector<1xi32> to vector<1x1xi32>
    %c2_i32 = arith.constant 2 : i32
    %162 = vector.broadcast %c2_i32 : i32 to vector<1x1xi32>
    %163 = arith.cmpi ne, %161, %162 : vector<1x1xi32>
    %164 = arith.extui %163 : vector<1x1xi1> to vector<1x1xi32>
    %165 = arith.sitofp %164 : vector<1x1xi32> to vector<1x1xf32>
    %166 = arith.mulf %80, %165 : vector<1x1xf32>
    %167 = vector.broadcast %161 : vector<1x1xi32> to vector<1x16xi32>
    %168 = arith.cmpi eq, %77, %167 : vector<1x16xi32>
    %169 = arith.extui %168 : vector<1x16xi1> to vector<1x16xi32>
    %170 = arith.sitofp %169 : vector<1x16xi32> to vector<1x16xf32>
    %cst_60 = arith.constant dense<0.000000e+00> : vector<1x16xf32>
    %171 = tpu.matmul %170, %6, %cst_60 {dimension_numbers = #tpu.dot_dimension_numbers<[1], [0], [0], [1], [0, 0, 1, 1], [], []>} : vector<1x16xf32>, vector<16x16xf32>, vector<1x16xf32> -> vector<1x16xf32>
    %cst_61 = arith.constant dense<0.000000e+00> : vector<1x64xf32>
    %172 = tpu.matmul %171, %2, %cst_61 {dimension_numbers = #tpu.dot_dimension_numbers<[1], [0], [0], [1], [0, 0, 1, 1], [], []>} : vector<1x16xf32>, vector<16x64xf32>, vector<1x64xf32> -> vector<1x64xf32>
    %cst_62 = arith.constant dense<0.000000e+00> : vector<1x64xf32>
    %173 = tpu.matmul %115, %3, %cst_62 {dimension_numbers = #tpu.dot_dimension_numbers<[1], [0], [0], [1], [0, 0, 1, 1], [], []>} : vector<1x16xf32>, vector<16x64xf32>, vector<1x64xf32> -> vector<1x64xf32>
    %174 = arith.addf %172, %173 : vector<1x64xf32>
    %175 = arith.addf %174, %10 : vector<1x64xf32>
    %176 = vector.extract_strided_slice %175 {offsets = [0, 0], sizes = [1, 16], strides = [1, 1]} : vector<1x64xf32> to vector<1x16xf32>
    %177 = arith.negf %176 : vector<1x16xf32>
    %178 = math.exp %177 : vector<1x16xf32>
    %cst_63 = arith.constant 1.000000e+00 : f32
    %179 = vector.broadcast %cst_63 : f32 to vector<1x16xf32>
    %180 = arith.addf %179, %178 : vector<1x16xf32>
    %181 = arith.divf %179, %180 : vector<1x16xf32>
    %182 = vector.extract_strided_slice %175 {offsets = [0, 16], sizes = [1, 16], strides = [1, 1]} : vector<1x64xf32> to vector<1x16xf32>
    %183 = arith.negf %182 : vector<1x16xf32>
    %184 = math.exp %183 : vector<1x16xf32>
    %cst_64 = arith.constant 1.000000e+00 : f32
    %185 = vector.broadcast %cst_64 : f32 to vector<1x16xf32>
    %186 = arith.addf %185, %184 : vector<1x16xf32>
    %187 = arith.divf %185, %186 : vector<1x16xf32>
    %188 = vector.extract_strided_slice %175 {offsets = [0, 32], sizes = [1, 16], strides = [1, 1]} : vector<1x64xf32> to vector<1x16xf32>
    %189 = math.tanh %188 : vector<1x16xf32>
    %190 = vector.extract_strided_slice %175 {offsets = [0, 48], sizes = [1, 16], strides = [1, 1]} : vector<1x64xf32> to vector<1x16xf32>
    %191 = arith.negf %190 : vector<1x16xf32>
    %192 = math.exp %191 : vector<1x16xf32>
    %cst_65 = arith.constant 1.000000e+00 : f32
    %193 = vector.broadcast %cst_65 : f32 to vector<1x16xf32>
    %194 = arith.addf %193, %192 : vector<1x16xf32>
    %195 = arith.divf %193, %194 : vector<1x16xf32>
    %196 = arith.mulf %187, %113 : vector<1x16xf32>
    %197 = arith.mulf %181, %189 : vector<1x16xf32>
    %198 = arith.addf %196, %197 : vector<1x16xf32>
    %199 = math.tanh %198 : vector<1x16xf32>
    %200 = arith.mulf %195, %199 : vector<1x16xf32>
    %cst_66 = arith.constant dense<0.000000e+00> : vector<1x64xf32>
    %201 = tpu.matmul %200, %4, %cst_66 {dimension_numbers = #tpu.dot_dimension_numbers<[1], [0], [0], [1], [0, 0, 1, 1], [], []>} : vector<1x16xf32>, vector<16x64xf32>, vector<1x64xf32> -> vector<1x64xf32>
    %cst_67 = arith.constant dense<0.000000e+00> : vector<1x64xf32>
    %202 = tpu.matmul %144, %5, %cst_67 {dimension_numbers = #tpu.dot_dimension_numbers<[1], [0], [0], [1], [0, 0, 1, 1], [], []>} : vector<1x16xf32>, vector<16x64xf32>, vector<1x64xf32> -> vector<1x64xf32>
    %203 = arith.addf %201, %202 : vector<1x64xf32>
    %204 = arith.addf %203, %11 : vector<1x64xf32>
    %205 = vector.extract_strided_slice %204 {offsets = [0, 0], sizes = [1, 16], strides = [1, 1]} : vector<1x64xf32> to vector<1x16xf32>
    %206 = arith.negf %205 : vector<1x16xf32>
    %207 = math.exp %206 : vector<1x16xf32>
    %cst_68 = arith.constant 1.000000e+00 : f32
    %208 = vector.broadcast %cst_68 : f32 to vector<1x16xf32>
    %209 = arith.addf %208, %207 : vector<1x16xf32>
    %210 = arith.divf %208, %209 : vector<1x16xf32>
    %211 = vector.extract_strided_slice %204 {offsets = [0, 16], sizes = [1, 16], strides = [1, 1]} : vector<1x64xf32> to vector<1x16xf32>
    %212 = arith.negf %211 : vector<1x16xf32>
    %213 = math.exp %212 : vector<1x16xf32>
    %cst_69 = arith.constant 1.000000e+00 : f32
    %214 = vector.broadcast %cst_69 : f32 to vector<1x16xf32>
    %215 = arith.addf %214, %213 : vector<1x16xf32>
    %216 = arith.divf %214, %215 : vector<1x16xf32>
    %217 = vector.extract_strided_slice %204 {offsets = [0, 32], sizes = [1, 16], strides = [1, 1]} : vector<1x64xf32> to vector<1x16xf32>
    %218 = math.tanh %217 : vector<1x16xf32>
    %219 = vector.extract_strided_slice %204 {offsets = [0, 48], sizes = [1, 16], strides = [1, 1]} : vector<1x64xf32> to vector<1x16xf32>
    %220 = arith.negf %219 : vector<1x16xf32>
    %221 = math.exp %220 : vector<1x16xf32>
    %cst_70 = arith.constant 1.000000e+00 : f32
    %222 = vector.broadcast %cst_70 : f32 to vector<1x16xf32>
    %223 = arith.addf %222, %221 : vector<1x16xf32>
    %224 = arith.divf %222, %223 : vector<1x16xf32>
    %225 = arith.mulf %216, %142 : vector<1x16xf32>
    %226 = arith.mulf %210, %218 : vector<1x16xf32>
    %227 = arith.addf %225, %226 : vector<1x16xf32>
    %228 = math.tanh %227 : vector<1x16xf32>
    %229 = arith.mulf %224, %228 : vector<1x16xf32>
    %cst_71 = arith.constant dense<0.000000e+00> : vector<1x16xf32>
    %230 = tpu.matmul %229, %7, %cst_71 {dimension_numbers = #tpu.dot_dimension_numbers<[1], [0], [0], [1], [0, 0, 1, 1], [], []>} : vector<1x16xf32>, vector<16x16xf32>, vector<1x16xf32> -> vector<1x16xf32>
    %231 = arith.addf %230, %12 : vector<1x16xf32>
    %c1_i32_72 = arith.constant 1 : i32
    %232 = vector.broadcast %c1_i32_72 : i32 to vector<8x16xi32>
    %233 = arith.cmpi eq, %78, %232 : vector<8x16xi32>
    %234 = vector.broadcast %166 : vector<1x1xf32> to vector<1x16xf32>
    %235 = arith.mulf %231, %234 : vector<1x16xf32>
    %236 = vector.shape_cast %235 : vector<1x16xf32> to vector<1x16xf32>
    %237 = vector.broadcast %236 : vector<1x16xf32> to vector<8x16xf32>
    %238 = arith.select %233, %237, %153 : vector<8x16xi1>, vector<8x16xf32>
    %cst_73 = arith.constant dense<0xFF800000> : vector<1xf32>
    %239 = vector.multi_reduction <maximumf>, %231, %cst_73 [1] : vector<1x16xf32> to vector<1xf32>
    %240 = vector.shape_cast %239 : vector<1xf32> to vector<1x1xf32>
    %241 = vector.broadcast %240 : vector<1x1xf32> to vector<1x16xf32>
    %242 = arith.cmpf oge, %231, %241 : vector<1x16xf32>
    %c16_i32_74 = arith.constant 16 : i32
    %243 = vector.broadcast %c16_i32_74 : i32 to vector<1x16xi32>
    %244 = arith.select %242, %77, %243 : vector<1x16xi1>, vector<1x16xi32>
    %cst_75 = arith.constant dense<2147483647> : vector<1xi32>
    %245 = vector.multi_reduction <minsi>, %244, %cst_75 [1] : vector<1x16xi32> to vector<1xi32>
    %246 = vector.shape_cast %245 : vector<1xi32> to vector<1x1xi32>
    %c2_i32_76 = arith.constant 2 : i32
    %247 = vector.broadcast %c2_i32_76 : i32 to vector<1x1xi32>
    %248 = arith.cmpi ne, %246, %247 : vector<1x1xi32>
    %249 = arith.extui %248 : vector<1x1xi1> to vector<1x1xi32>
    %250 = arith.sitofp %249 : vector<1x1xi32> to vector<1x1xf32>
    %251 = arith.mulf %166, %250 : vector<1x1xf32>
    %252 = vector.broadcast %246 : vector<1x1xi32> to vector<1x16xi32>
    %253 = arith.cmpi eq, %77, %252 : vector<1x16xi32>
    %254 = arith.extui %253 : vector<1x16xi1> to vector<1x16xi32>
    %255 = arith.sitofp %254 : vector<1x16xi32> to vector<1x16xf32>
    %cst_77 = arith.constant dense<0.000000e+00> : vector<1x16xf32>
    %256 = tpu.matmul %255, %6, %cst_77 {dimension_numbers = #tpu.dot_dimension_numbers<[1], [0], [0], [1], [0, 0, 1, 1], [], []>} : vector<1x16xf32>, vector<16x16xf32>, vector<1x16xf32> -> vector<1x16xf32>
    %cst_78 = arith.constant dense<0.000000e+00> : vector<1x64xf32>
    %257 = tpu.matmul %256, %2, %cst_78 {dimension_numbers = #tpu.dot_dimension_numbers<[1], [0], [0], [1], [0, 0, 1, 1], [], []>} : vector<1x16xf32>, vector<16x64xf32>, vector<1x64xf32> -> vector<1x64xf32>
    %cst_79 = arith.constant dense<0.000000e+00> : vector<1x64xf32>
    %258 = tpu.matmul %200, %3, %cst_79 {dimension_numbers = #tpu.dot_dimension_numbers<[1], [0], [0], [1], [0, 0, 1, 1], [], []>} : vector<1x16xf32>, vector<16x64xf32>, vector<1x64xf32> -> vector<1x64xf32>
    %259 = arith.addf %257, %258 : vector<1x64xf32>
    %260 = arith.addf %259, %10 : vector<1x64xf32>
    %261 = vector.extract_strided_slice %260 {offsets = [0, 0], sizes = [1, 16], strides = [1, 1]} : vector<1x64xf32> to vector<1x16xf32>
    %262 = arith.negf %261 : vector<1x16xf32>
    %263 = math.exp %262 : vector<1x16xf32>
    %cst_80 = arith.constant 1.000000e+00 : f32
    %264 = vector.broadcast %cst_80 : f32 to vector<1x16xf32>
    %265 = arith.addf %264, %263 : vector<1x16xf32>
    %266 = arith.divf %264, %265 : vector<1x16xf32>
    %267 = vector.extract_strided_slice %260 {offsets = [0, 16], sizes = [1, 16], strides = [1, 1]} : vector<1x64xf32> to vector<1x16xf32>
    %268 = arith.negf %267 : vector<1x16xf32>
    %269 = math.exp %268 : vector<1x16xf32>
    %cst_81 = arith.constant 1.000000e+00 : f32
    %270 = vector.broadcast %cst_81 : f32 to vector<1x16xf32>
    %271 = arith.addf %270, %269 : vector<1x16xf32>
    %272 = arith.divf %270, %271 : vector<1x16xf32>
    %273 = vector.extract_strided_slice %260 {offsets = [0, 32], sizes = [1, 16], strides = [1, 1]} : vector<1x64xf32> to vector<1x16xf32>
    %274 = math.tanh %273 : vector<1x16xf32>
    %275 = vector.extract_strided_slice %260 {offsets = [0, 48], sizes = [1, 16], strides = [1, 1]} : vector<1x64xf32> to vector<1x16xf32>
    %276 = arith.negf %275 : vector<1x16xf32>
    %277 = math.exp %276 : vector<1x16xf32>
    %cst_82 = arith.constant 1.000000e+00 : f32
    %278 = vector.broadcast %cst_82 : f32 to vector<1x16xf32>
    %279 = arith.addf %278, %277 : vector<1x16xf32>
    %280 = arith.divf %278, %279 : vector<1x16xf32>
    %281 = arith.mulf %272, %198 : vector<1x16xf32>
    %282 = arith.mulf %266, %274 : vector<1x16xf32>
    %283 = arith.addf %281, %282 : vector<1x16xf32>
    %284 = math.tanh %283 : vector<1x16xf32>
    %285 = arith.mulf %280, %284 : vector<1x16xf32>
    %cst_83 = arith.constant dense<0.000000e+00> : vector<1x64xf32>
    %286 = tpu.matmul %285, %4, %cst_83 {dimension_numbers = #tpu.dot_dimension_numbers<[1], [0], [0], [1], [0, 0, 1, 1], [], []>} : vector<1x16xf32>, vector<16x64xf32>, vector<1x64xf32> -> vector<1x64xf32>
    %cst_84 = arith.constant dense<0.000000e+00> : vector<1x64xf32>
    %287 = tpu.matmul %229, %5, %cst_84 {dimension_numbers = #tpu.dot_dimension_numbers<[1], [0], [0], [1], [0, 0, 1, 1], [], []>} : vector<1x16xf32>, vector<16x64xf32>, vector<1x64xf32> -> vector<1x64xf32>
    %288 = arith.addf %286, %287 : vector<1x64xf32>
    %289 = arith.addf %288, %11 : vector<1x64xf32>
    %290 = vector.extract_strided_slice %289 {offsets = [0, 0], sizes = [1, 16], strides = [1, 1]} : vector<1x64xf32> to vector<1x16xf32>
    %291 = arith.negf %290 : vector<1x16xf32>
    %292 = math.exp %291 : vector<1x16xf32>
    %cst_85 = arith.constant 1.000000e+00 : f32
    %293 = vector.broadcast %cst_85 : f32 to vector<1x16xf32>
    %294 = arith.addf %293, %292 : vector<1x16xf32>
    %295 = arith.divf %293, %294 : vector<1x16xf32>
    %296 = vector.extract_strided_slice %289 {offsets = [0, 16], sizes = [1, 16], strides = [1, 1]} : vector<1x64xf32> to vector<1x16xf32>
    %297 = arith.negf %296 : vector<1x16xf32>
    %298 = math.exp %297 : vector<1x16xf32>
    %cst_86 = arith.constant 1.000000e+00 : f32
    %299 = vector.broadcast %cst_86 : f32 to vector<1x16xf32>
    %300 = arith.addf %299, %298 : vector<1x16xf32>
    %301 = arith.divf %299, %300 : vector<1x16xf32>
    %302 = vector.extract_strided_slice %289 {offsets = [0, 32], sizes = [1, 16], strides = [1, 1]} : vector<1x64xf32> to vector<1x16xf32>
    %303 = math.tanh %302 : vector<1x16xf32>
    %304 = vector.extract_strided_slice %289 {offsets = [0, 48], sizes = [1, 16], strides = [1, 1]} : vector<1x64xf32> to vector<1x16xf32>
    %305 = arith.negf %304 : vector<1x16xf32>
    %306 = math.exp %305 : vector<1x16xf32>
    %cst_87 = arith.constant 1.000000e+00 : f32
    %307 = vector.broadcast %cst_87 : f32 to vector<1x16xf32>
    %308 = arith.addf %307, %306 : vector<1x16xf32>
    %309 = arith.divf %307, %308 : vector<1x16xf32>
    %310 = arith.mulf %301, %227 : vector<1x16xf32>
    %311 = arith.mulf %295, %303 : vector<1x16xf32>
    %312 = arith.addf %310, %311 : vector<1x16xf32>
    %313 = math.tanh %312 : vector<1x16xf32>
    %314 = arith.mulf %309, %313 : vector<1x16xf32>
    %cst_88 = arith.constant dense<0.000000e+00> : vector<1x16xf32>
    %315 = tpu.matmul %314, %7, %cst_88 {dimension_numbers = #tpu.dot_dimension_numbers<[1], [0], [0], [1], [0, 0, 1, 1], [], []>} : vector<1x16xf32>, vector<16x16xf32>, vector<1x16xf32> -> vector<1x16xf32>
    %316 = arith.addf %315, %12 : vector<1x16xf32>
    %c2_i32_89 = arith.constant 2 : i32
    %317 = vector.broadcast %c2_i32_89 : i32 to vector<8x16xi32>
    %318 = arith.cmpi eq, %78, %317 : vector<8x16xi32>
    %319 = vector.broadcast %251 : vector<1x1xf32> to vector<1x16xf32>
    %320 = arith.mulf %316, %319 : vector<1x16xf32>
    %321 = vector.shape_cast %320 : vector<1x16xf32> to vector<1x16xf32>
    %322 = vector.broadcast %321 : vector<1x16xf32> to vector<8x16xf32>
    %323 = arith.select %318, %322, %238 : vector<8x16xi1>, vector<8x16xf32>
    %cst_90 = arith.constant dense<0xFF800000> : vector<1xf32>
    %324 = vector.multi_reduction <maximumf>, %316, %cst_90 [1] : vector<1x16xf32> to vector<1xf32>
    %325 = vector.shape_cast %324 : vector<1xf32> to vector<1x1xf32>
    %326 = vector.broadcast %325 : vector<1x1xf32> to vector<1x16xf32>
    %327 = arith.cmpf oge, %316, %326 : vector<1x16xf32>
    %c16_i32_91 = arith.constant 16 : i32
    %328 = vector.broadcast %c16_i32_91 : i32 to vector<1x16xi32>
    %329 = arith.select %327, %77, %328 : vector<1x16xi1>, vector<1x16xi32>
    %cst_92 = arith.constant dense<2147483647> : vector<1xi32>
    %330 = vector.multi_reduction <minsi>, %329, %cst_92 [1] : vector<1x16xi32> to vector<1xi32>
    %331 = vector.shape_cast %330 : vector<1xi32> to vector<1x1xi32>
    %c2_i32_93 = arith.constant 2 : i32
    %332 = vector.broadcast %c2_i32_93 : i32 to vector<1x1xi32>
    %333 = arith.cmpi ne, %331, %332 : vector<1x1xi32>
    %334 = arith.extui %333 : vector<1x1xi1> to vector<1x1xi32>
    %335 = arith.sitofp %334 : vector<1x1xi32> to vector<1x1xf32>
    %336 = arith.mulf %251, %335 : vector<1x1xf32>
    %337 = vector.broadcast %331 : vector<1x1xi32> to vector<1x16xi32>
    %338 = arith.cmpi eq, %77, %337 : vector<1x16xi32>
    %339 = arith.extui %338 : vector<1x16xi1> to vector<1x16xi32>
    %340 = arith.sitofp %339 : vector<1x16xi32> to vector<1x16xf32>
    %cst_94 = arith.constant dense<0.000000e+00> : vector<1x16xf32>
    %341 = tpu.matmul %340, %6, %cst_94 {dimension_numbers = #tpu.dot_dimension_numbers<[1], [0], [0], [1], [0, 0, 1, 1], [], []>} : vector<1x16xf32>, vector<16x16xf32>, vector<1x16xf32> -> vector<1x16xf32>
    %cst_95 = arith.constant dense<0.000000e+00> : vector<1x64xf32>
    %342 = tpu.matmul %341, %2, %cst_95 {dimension_numbers = #tpu.dot_dimension_numbers<[1], [0], [0], [1], [0, 0, 1, 1], [], []>} : vector<1x16xf32>, vector<16x64xf32>, vector<1x64xf32> -> vector<1x64xf32>
    %cst_96 = arith.constant dense<0.000000e+00> : vector<1x64xf32>
    %343 = tpu.matmul %285, %3, %cst_96 {dimension_numbers = #tpu.dot_dimension_numbers<[1], [0], [0], [1], [0, 0, 1, 1], [], []>} : vector<1x16xf32>, vector<16x64xf32>, vector<1x64xf32> -> vector<1x64xf32>
    %344 = arith.addf %342, %343 : vector<1x64xf32>
    %345 = arith.addf %344, %10 : vector<1x64xf32>
    %346 = vector.extract_strided_slice %345 {offsets = [0, 0], sizes = [1, 16], strides = [1, 1]} : vector<1x64xf32> to vector<1x16xf32>
    %347 = arith.negf %346 : vector<1x16xf32>
    %348 = math.exp %347 : vector<1x16xf32>
    %cst_97 = arith.constant 1.000000e+00 : f32
    %349 = vector.broadcast %cst_97 : f32 to vector<1x16xf32>
    %350 = arith.addf %349, %348 : vector<1x16xf32>
    %351 = arith.divf %349, %350 : vector<1x16xf32>
    %352 = vector.extract_strided_slice %345 {offsets = [0, 16], sizes = [1, 16], strides = [1, 1]} : vector<1x64xf32> to vector<1x16xf32>
    %353 = arith.negf %352 : vector<1x16xf32>
    %354 = math.exp %353 : vector<1x16xf32>
    %cst_98 = arith.constant 1.000000e+00 : f32
    %355 = vector.broadcast %cst_98 : f32 to vector<1x16xf32>
    %356 = arith.addf %355, %354 : vector<1x16xf32>
    %357 = arith.divf %355, %356 : vector<1x16xf32>
    %358 = vector.extract_strided_slice %345 {offsets = [0, 32], sizes = [1, 16], strides = [1, 1]} : vector<1x64xf32> to vector<1x16xf32>
    %359 = math.tanh %358 : vector<1x16xf32>
    %360 = vector.extract_strided_slice %345 {offsets = [0, 48], sizes = [1, 16], strides = [1, 1]} : vector<1x64xf32> to vector<1x16xf32>
    %361 = arith.negf %360 : vector<1x16xf32>
    %362 = math.exp %361 : vector<1x16xf32>
    %cst_99 = arith.constant 1.000000e+00 : f32
    %363 = vector.broadcast %cst_99 : f32 to vector<1x16xf32>
    %364 = arith.addf %363, %362 : vector<1x16xf32>
    %365 = arith.divf %363, %364 : vector<1x16xf32>
    %366 = arith.mulf %357, %283 : vector<1x16xf32>
    %367 = arith.mulf %351, %359 : vector<1x16xf32>
    %368 = arith.addf %366, %367 : vector<1x16xf32>
    %369 = math.tanh %368 : vector<1x16xf32>
    %370 = arith.mulf %365, %369 : vector<1x16xf32>
    %cst_100 = arith.constant dense<0.000000e+00> : vector<1x64xf32>
    %371 = tpu.matmul %370, %4, %cst_100 {dimension_numbers = #tpu.dot_dimension_numbers<[1], [0], [0], [1], [0, 0, 1, 1], [], []>} : vector<1x16xf32>, vector<16x64xf32>, vector<1x64xf32> -> vector<1x64xf32>
    %cst_101 = arith.constant dense<0.000000e+00> : vector<1x64xf32>
    %372 = tpu.matmul %314, %5, %cst_101 {dimension_numbers = #tpu.dot_dimension_numbers<[1], [0], [0], [1], [0, 0, 1, 1], [], []>} : vector<1x16xf32>, vector<16x64xf32>, vector<1x64xf32> -> vector<1x64xf32>
    %373 = arith.addf %371, %372 : vector<1x64xf32>
    %374 = arith.addf %373, %11 : vector<1x64xf32>
    %375 = vector.extract_strided_slice %374 {offsets = [0, 0], sizes = [1, 16], strides = [1, 1]} : vector<1x64xf32> to vector<1x16xf32>
    %376 = arith.negf %375 : vector<1x16xf32>
    %377 = math.exp %376 : vector<1x16xf32>
    %cst_102 = arith.constant 1.000000e+00 : f32
    %378 = vector.broadcast %cst_102 : f32 to vector<1x16xf32>
    %379 = arith.addf %378, %377 : vector<1x16xf32>
    %380 = arith.divf %378, %379 : vector<1x16xf32>
    %381 = vector.extract_strided_slice %374 {offsets = [0, 16], sizes = [1, 16], strides = [1, 1]} : vector<1x64xf32> to vector<1x16xf32>
    %382 = arith.negf %381 : vector<1x16xf32>
    %383 = math.exp %382 : vector<1x16xf32>
    %cst_103 = arith.constant 1.000000e+00 : f32
    %384 = vector.broadcast %cst_103 : f32 to vector<1x16xf32>
    %385 = arith.addf %384, %383 : vector<1x16xf32>
    %386 = arith.divf %384, %385 : vector<1x16xf32>
    %387 = vector.extract_strided_slice %374 {offsets = [0, 32], sizes = [1, 16], strides = [1, 1]} : vector<1x64xf32> to vector<1x16xf32>
    %388 = math.tanh %387 : vector<1x16xf32>
    %389 = vector.extract_strided_slice %374 {offsets = [0, 48], sizes = [1, 16], strides = [1, 1]} : vector<1x64xf32> to vector<1x16xf32>
    %390 = arith.negf %389 : vector<1x16xf32>
    %391 = math.exp %390 : vector<1x16xf32>
    %cst_104 = arith.constant 1.000000e+00 : f32
    %392 = vector.broadcast %cst_104 : f32 to vector<1x16xf32>
    %393 = arith.addf %392, %391 : vector<1x16xf32>
    %394 = arith.divf %392, %393 : vector<1x16xf32>
    %395 = arith.mulf %386, %312 : vector<1x16xf32>
    %396 = arith.mulf %380, %388 : vector<1x16xf32>
    %397 = arith.addf %395, %396 : vector<1x16xf32>
    %398 = math.tanh %397 : vector<1x16xf32>
    %399 = arith.mulf %394, %398 : vector<1x16xf32>
    %cst_105 = arith.constant dense<0.000000e+00> : vector<1x16xf32>
    %400 = tpu.matmul %399, %7, %cst_105 {dimension_numbers = #tpu.dot_dimension_numbers<[1], [0], [0], [1], [0, 0, 1, 1], [], []>} : vector<1x16xf32>, vector<16x16xf32>, vector<1x16xf32> -> vector<1x16xf32>
    %401 = arith.addf %400, %12 : vector<1x16xf32>
    %c3_i32 = arith.constant 3 : i32
    %402 = vector.broadcast %c3_i32 : i32 to vector<8x16xi32>
    %403 = arith.cmpi eq, %78, %402 : vector<8x16xi32>
    %404 = vector.broadcast %336 : vector<1x1xf32> to vector<1x16xf32>
    %405 = arith.mulf %401, %404 : vector<1x16xf32>
    %406 = vector.shape_cast %405 : vector<1x16xf32> to vector<1x16xf32>
    %407 = vector.broadcast %406 : vector<1x16xf32> to vector<8x16xf32>
    %408 = arith.select %403, %407, %323 : vector<8x16xi1>, vector<8x16xf32>
    %cst_106 = arith.constant dense<0xFF800000> : vector<1xf32>
    %409 = vector.multi_reduction <maximumf>, %401, %cst_106 [1] : vector<1x16xf32> to vector<1xf32>
    %410 = vector.shape_cast %409 : vector<1xf32> to vector<1x1xf32>
    %411 = vector.broadcast %410 : vector<1x1xf32> to vector<1x16xf32>
    %412 = arith.cmpf oge, %401, %411 : vector<1x16xf32>
    %c16_i32_107 = arith.constant 16 : i32
    %413 = vector.broadcast %c16_i32_107 : i32 to vector<1x16xi32>
    %414 = arith.select %412, %77, %413 : vector<1x16xi1>, vector<1x16xi32>
    %cst_108 = arith.constant dense<2147483647> : vector<1xi32>
    %415 = vector.multi_reduction <minsi>, %414, %cst_108 [1] : vector<1x16xi32> to vector<1xi32>
    %416 = vector.shape_cast %415 : vector<1xi32> to vector<1x1xi32>
    %c2_i32_109 = arith.constant 2 : i32
    %417 = vector.broadcast %c2_i32_109 : i32 to vector<1x1xi32>
    %418 = arith.cmpi ne, %416, %417 : vector<1x1xi32>
    %419 = arith.extui %418 : vector<1x1xi1> to vector<1x1xi32>
    %420 = arith.sitofp %419 : vector<1x1xi32> to vector<1x1xf32>
    %421 = arith.mulf %336, %420 : vector<1x1xf32>
    %422 = vector.broadcast %416 : vector<1x1xi32> to vector<1x16xi32>
    %423 = arith.cmpi eq, %77, %422 : vector<1x16xi32>
    %424 = arith.extui %423 : vector<1x16xi1> to vector<1x16xi32>
    %425 = arith.sitofp %424 : vector<1x16xi32> to vector<1x16xf32>
    %cst_110 = arith.constant dense<0.000000e+00> : vector<1x16xf32>
    %426 = tpu.matmul %425, %6, %cst_110 {dimension_numbers = #tpu.dot_dimension_numbers<[1], [0], [0], [1], [0, 0, 1, 1], [], []>} : vector<1x16xf32>, vector<16x16xf32>, vector<1x16xf32> -> vector<1x16xf32>
    %cst_111 = arith.constant dense<0.000000e+00> : vector<1x64xf32>
    %427 = tpu.matmul %426, %2, %cst_111 {dimension_numbers = #tpu.dot_dimension_numbers<[1], [0], [0], [1], [0, 0, 1, 1], [], []>} : vector<1x16xf32>, vector<16x64xf32>, vector<1x64xf32> -> vector<1x64xf32>
    %cst_112 = arith.constant dense<0.000000e+00> : vector<1x64xf32>
    %428 = tpu.matmul %370, %3, %cst_112 {dimension_numbers = #tpu.dot_dimension_numbers<[1], [0], [0], [1], [0, 0, 1, 1], [], []>} : vector<1x16xf32>, vector<16x64xf32>, vector<1x64xf32> -> vector<1x64xf32>
    %429 = arith.addf %427, %428 : vector<1x64xf32>
    %430 = arith.addf %429, %10 : vector<1x64xf32>
    %431 = vector.extract_strided_slice %430 {offsets = [0, 0], sizes = [1, 16], strides = [1, 1]} : vector<1x64xf32> to vector<1x16xf32>
    %432 = arith.negf %431 : vector<1x16xf32>
    %433 = math.exp %432 : vector<1x16xf32>
    %cst_113 = arith.constant 1.000000e+00 : f32
    %434 = vector.broadcast %cst_113 : f32 to vector<1x16xf32>
    %435 = arith.addf %434, %433 : vector<1x16xf32>
    %436 = arith.divf %434, %435 : vector<1x16xf32>
    %437 = vector.extract_strided_slice %430 {offsets = [0, 16], sizes = [1, 16], strides = [1, 1]} : vector<1x64xf32> to vector<1x16xf32>
    %438 = arith.negf %437 : vector<1x16xf32>
    %439 = math.exp %438 : vector<1x16xf32>
    %cst_114 = arith.constant 1.000000e+00 : f32
    %440 = vector.broadcast %cst_114 : f32 to vector<1x16xf32>
    %441 = arith.addf %440, %439 : vector<1x16xf32>
    %442 = arith.divf %440, %441 : vector<1x16xf32>
    %443 = vector.extract_strided_slice %430 {offsets = [0, 32], sizes = [1, 16], strides = [1, 1]} : vector<1x64xf32> to vector<1x16xf32>
    %444 = math.tanh %443 : vector<1x16xf32>
    %445 = vector.extract_strided_slice %430 {offsets = [0, 48], sizes = [1, 16], strides = [1, 1]} : vector<1x64xf32> to vector<1x16xf32>
    %446 = arith.negf %445 : vector<1x16xf32>
    %447 = math.exp %446 : vector<1x16xf32>
    %cst_115 = arith.constant 1.000000e+00 : f32
    %448 = vector.broadcast %cst_115 : f32 to vector<1x16xf32>
    %449 = arith.addf %448, %447 : vector<1x16xf32>
    %450 = arith.divf %448, %449 : vector<1x16xf32>
    %451 = arith.mulf %442, %368 : vector<1x16xf32>
    %452 = arith.mulf %436, %444 : vector<1x16xf32>
    %453 = arith.addf %451, %452 : vector<1x16xf32>
    %454 = math.tanh %453 : vector<1x16xf32>
    %455 = arith.mulf %450, %454 : vector<1x16xf32>
    %cst_116 = arith.constant dense<0.000000e+00> : vector<1x64xf32>
    %456 = tpu.matmul %455, %4, %cst_116 {dimension_numbers = #tpu.dot_dimension_numbers<[1], [0], [0], [1], [0, 0, 1, 1], [], []>} : vector<1x16xf32>, vector<16x64xf32>, vector<1x64xf32> -> vector<1x64xf32>
    %cst_117 = arith.constant dense<0.000000e+00> : vector<1x64xf32>
    %457 = tpu.matmul %399, %5, %cst_117 {dimension_numbers = #tpu.dot_dimension_numbers<[1], [0], [0], [1], [0, 0, 1, 1], [], []>} : vector<1x16xf32>, vector<16x64xf32>, vector<1x64xf32> -> vector<1x64xf32>
    %458 = arith.addf %456, %457 : vector<1x64xf32>
    %459 = arith.addf %458, %11 : vector<1x64xf32>
    %460 = vector.extract_strided_slice %459 {offsets = [0, 0], sizes = [1, 16], strides = [1, 1]} : vector<1x64xf32> to vector<1x16xf32>
    %461 = arith.negf %460 : vector<1x16xf32>
    %462 = math.exp %461 : vector<1x16xf32>
    %cst_118 = arith.constant 1.000000e+00 : f32
    %463 = vector.broadcast %cst_118 : f32 to vector<1x16xf32>
    %464 = arith.addf %463, %462 : vector<1x16xf32>
    %465 = arith.divf %463, %464 : vector<1x16xf32>
    %466 = vector.extract_strided_slice %459 {offsets = [0, 16], sizes = [1, 16], strides = [1, 1]} : vector<1x64xf32> to vector<1x16xf32>
    %467 = arith.negf %466 : vector<1x16xf32>
    %468 = math.exp %467 : vector<1x16xf32>
    %cst_119 = arith.constant 1.000000e+00 : f32
    %469 = vector.broadcast %cst_119 : f32 to vector<1x16xf32>
    %470 = arith.addf %469, %468 : vector<1x16xf32>
    %471 = arith.divf %469, %470 : vector<1x16xf32>
    %472 = vector.extract_strided_slice %459 {offsets = [0, 32], sizes = [1, 16], strides = [1, 1]} : vector<1x64xf32> to vector<1x16xf32>
    %473 = math.tanh %472 : vector<1x16xf32>
    %474 = vector.extract_strided_slice %459 {offsets = [0, 48], sizes = [1, 16], strides = [1, 1]} : vector<1x64xf32> to vector<1x16xf32>
    %475 = arith.negf %474 : vector<1x16xf32>
    %476 = math.exp %475 : vector<1x16xf32>
    %cst_120 = arith.constant 1.000000e+00 : f32
    %477 = vector.broadcast %cst_120 : f32 to vector<1x16xf32>
    %478 = arith.addf %477, %476 : vector<1x16xf32>
    %479 = arith.divf %477, %478 : vector<1x16xf32>
    %480 = arith.mulf %471, %397 : vector<1x16xf32>
    %481 = arith.mulf %465, %473 : vector<1x16xf32>
    %482 = arith.addf %480, %481 : vector<1x16xf32>
    %483 = math.tanh %482 : vector<1x16xf32>
    %484 = arith.mulf %479, %483 : vector<1x16xf32>
    %cst_121 = arith.constant dense<0.000000e+00> : vector<1x16xf32>
    %485 = tpu.matmul %484, %7, %cst_121 {dimension_numbers = #tpu.dot_dimension_numbers<[1], [0], [0], [1], [0, 0, 1, 1], [], []>} : vector<1x16xf32>, vector<16x16xf32>, vector<1x16xf32> -> vector<1x16xf32>
    %486 = arith.addf %485, %12 : vector<1x16xf32>
    %c4_i32 = arith.constant 4 : i32
    %487 = vector.broadcast %c4_i32 : i32 to vector<8x16xi32>
    %488 = arith.cmpi eq, %78, %487 : vector<8x16xi32>
    %489 = vector.broadcast %421 : vector<1x1xf32> to vector<1x16xf32>
    %490 = arith.mulf %486, %489 : vector<1x16xf32>
    %491 = vector.shape_cast %490 : vector<1x16xf32> to vector<1x16xf32>
    %492 = vector.broadcast %491 : vector<1x16xf32> to vector<8x16xf32>
    %493 = arith.select %488, %492, %408 : vector<8x16xi1>, vector<8x16xf32>
    %cst_122 = arith.constant dense<0xFF800000> : vector<1xf32>
    %494 = vector.multi_reduction <maximumf>, %486, %cst_122 [1] : vector<1x16xf32> to vector<1xf32>
    %495 = vector.shape_cast %494 : vector<1xf32> to vector<1x1xf32>
    %496 = vector.broadcast %495 : vector<1x1xf32> to vector<1x16xf32>
    %497 = arith.cmpf oge, %486, %496 : vector<1x16xf32>
    %c16_i32_123 = arith.constant 16 : i32
    %498 = vector.broadcast %c16_i32_123 : i32 to vector<1x16xi32>
    %499 = arith.select %497, %77, %498 : vector<1x16xi1>, vector<1x16xi32>
    %cst_124 = arith.constant dense<2147483647> : vector<1xi32>
    %500 = vector.multi_reduction <minsi>, %499, %cst_124 [1] : vector<1x16xi32> to vector<1xi32>
    %501 = vector.shape_cast %500 : vector<1xi32> to vector<1x1xi32>
    %c2_i32_125 = arith.constant 2 : i32
    %502 = vector.broadcast %c2_i32_125 : i32 to vector<1x1xi32>
    %503 = arith.cmpi ne, %501, %502 : vector<1x1xi32>
    %504 = arith.extui %503 : vector<1x1xi1> to vector<1x1xi32>
    %505 = arith.sitofp %504 : vector<1x1xi32> to vector<1x1xf32>
    %506 = arith.mulf %421, %505 : vector<1x1xf32>
    %507 = vector.broadcast %501 : vector<1x1xi32> to vector<1x16xi32>
    %508 = arith.cmpi eq, %77, %507 : vector<1x16xi32>
    %509 = arith.extui %508 : vector<1x16xi1> to vector<1x16xi32>
    %510 = arith.sitofp %509 : vector<1x16xi32> to vector<1x16xf32>
    %cst_126 = arith.constant dense<0.000000e+00> : vector<1x16xf32>
    %511 = tpu.matmul %510, %6, %cst_126 {dimension_numbers = #tpu.dot_dimension_numbers<[1], [0], [0], [1], [0, 0, 1, 1], [], []>} : vector<1x16xf32>, vector<16x16xf32>, vector<1x16xf32> -> vector<1x16xf32>
    %cst_127 = arith.constant dense<0.000000e+00> : vector<1x64xf32>
    %512 = tpu.matmul %511, %2, %cst_127 {dimension_numbers = #tpu.dot_dimension_numbers<[1], [0], [0], [1], [0, 0, 1, 1], [], []>} : vector<1x16xf32>, vector<16x64xf32>, vector<1x64xf32> -> vector<1x64xf32>
    %cst_128 = arith.constant dense<0.000000e+00> : vector<1x64xf32>
    %513 = tpu.matmul %455, %3, %cst_128 {dimension_numbers = #tpu.dot_dimension_numbers<[1], [0], [0], [1], [0, 0, 1, 1], [], []>} : vector<1x16xf32>, vector<16x64xf32>, vector<1x64xf32> -> vector<1x64xf32>
    %514 = arith.addf %512, %513 : vector<1x64xf32>
    %515 = arith.addf %514, %10 : vector<1x64xf32>
    %516 = vector.extract_strided_slice %515 {offsets = [0, 0], sizes = [1, 16], strides = [1, 1]} : vector<1x64xf32> to vector<1x16xf32>
    %517 = arith.negf %516 : vector<1x16xf32>
    %518 = math.exp %517 : vector<1x16xf32>
    %cst_129 = arith.constant 1.000000e+00 : f32
    %519 = vector.broadcast %cst_129 : f32 to vector<1x16xf32>
    %520 = arith.addf %519, %518 : vector<1x16xf32>
    %521 = arith.divf %519, %520 : vector<1x16xf32>
    %522 = vector.extract_strided_slice %515 {offsets = [0, 16], sizes = [1, 16], strides = [1, 1]} : vector<1x64xf32> to vector<1x16xf32>
    %523 = arith.negf %522 : vector<1x16xf32>
    %524 = math.exp %523 : vector<1x16xf32>
    %cst_130 = arith.constant 1.000000e+00 : f32
    %525 = vector.broadcast %cst_130 : f32 to vector<1x16xf32>
    %526 = arith.addf %525, %524 : vector<1x16xf32>
    %527 = arith.divf %525, %526 : vector<1x16xf32>
    %528 = vector.extract_strided_slice %515 {offsets = [0, 32], sizes = [1, 16], strides = [1, 1]} : vector<1x64xf32> to vector<1x16xf32>
    %529 = math.tanh %528 : vector<1x16xf32>
    %530 = vector.extract_strided_slice %515 {offsets = [0, 48], sizes = [1, 16], strides = [1, 1]} : vector<1x64xf32> to vector<1x16xf32>
    %531 = arith.negf %530 : vector<1x16xf32>
    %532 = math.exp %531 : vector<1x16xf32>
    %cst_131 = arith.constant 1.000000e+00 : f32
    %533 = vector.broadcast %cst_131 : f32 to vector<1x16xf32>
    %534 = arith.addf %533, %532 : vector<1x16xf32>
    %535 = arith.divf %533, %534 : vector<1x16xf32>
    %536 = arith.mulf %527, %453 : vector<1x16xf32>
    %537 = arith.mulf %521, %529 : vector<1x16xf32>
    %538 = arith.addf %536, %537 : vector<1x16xf32>
    %539 = math.tanh %538 : vector<1x16xf32>
    %540 = arith.mulf %535, %539 : vector<1x16xf32>
    %cst_132 = arith.constant dense<0.000000e+00> : vector<1x64xf32>
    %541 = tpu.matmul %540, %4, %cst_132 {dimension_numbers = #tpu.dot_dimension_numbers<[1], [0], [0], [1], [0, 0, 1, 1], [], []>} : vector<1x16xf32>, vector<16x64xf32>, vector<1x64xf32> -> vector<1x64xf32>
    %cst_133 = arith.constant dense<0.000000e+00> : vector<1x64xf32>
    %542 = tpu.matmul %484, %5, %cst_133 {dimension_numbers = #tpu.dot_dimension_numbers<[1], [0], [0], [1], [0, 0, 1, 1], [], []>} : vector<1x16xf32>, vector<16x64xf32>, vector<1x64xf32> -> vector<1x64xf32>
    %543 = arith.addf %541, %542 : vector<1x64xf32>
    %544 = arith.addf %543, %11 : vector<1x64xf32>
    %545 = vector.extract_strided_slice %544 {offsets = [0, 0], sizes = [1, 16], strides = [1, 1]} : vector<1x64xf32> to vector<1x16xf32>
    %546 = arith.negf %545 : vector<1x16xf32>
    %547 = math.exp %546 : vector<1x16xf32>
    %cst_134 = arith.constant 1.000000e+00 : f32
    %548 = vector.broadcast %cst_134 : f32 to vector<1x16xf32>
    %549 = arith.addf %548, %547 : vector<1x16xf32>
    %550 = arith.divf %548, %549 : vector<1x16xf32>
    %551 = vector.extract_strided_slice %544 {offsets = [0, 16], sizes = [1, 16], strides = [1, 1]} : vector<1x64xf32> to vector<1x16xf32>
    %552 = arith.negf %551 : vector<1x16xf32>
    %553 = math.exp %552 : vector<1x16xf32>
    %cst_135 = arith.constant 1.000000e+00 : f32
    %554 = vector.broadcast %cst_135 : f32 to vector<1x16xf32>
    %555 = arith.addf %554, %553 : vector<1x16xf32>
    %556 = arith.divf %554, %555 : vector<1x16xf32>
    %557 = vector.extract_strided_slice %544 {offsets = [0, 32], sizes = [1, 16], strides = [1, 1]} : vector<1x64xf32> to vector<1x16xf32>
    %558 = math.tanh %557 : vector<1x16xf32>
    %559 = vector.extract_strided_slice %544 {offsets = [0, 48], sizes = [1, 16], strides = [1, 1]} : vector<1x64xf32> to vector<1x16xf32>
    %560 = arith.negf %559 : vector<1x16xf32>
    %561 = math.exp %560 : vector<1x16xf32>
    %cst_136 = arith.constant 1.000000e+00 : f32
    %562 = vector.broadcast %cst_136 : f32 to vector<1x16xf32>
    %563 = arith.addf %562, %561 : vector<1x16xf32>
    %564 = arith.divf %562, %563 : vector<1x16xf32>
    %565 = arith.mulf %556, %482 : vector<1x16xf32>
    %566 = arith.mulf %550, %558 : vector<1x16xf32>
    %567 = arith.addf %565, %566 : vector<1x16xf32>
    %568 = math.tanh %567 : vector<1x16xf32>
    %569 = arith.mulf %564, %568 : vector<1x16xf32>
    %cst_137 = arith.constant dense<0.000000e+00> : vector<1x16xf32>
    %570 = tpu.matmul %569, %7, %cst_137 {dimension_numbers = #tpu.dot_dimension_numbers<[1], [0], [0], [1], [0, 0, 1, 1], [], []>} : vector<1x16xf32>, vector<16x16xf32>, vector<1x16xf32> -> vector<1x16xf32>
    %571 = arith.addf %570, %12 : vector<1x16xf32>
    %c5_i32 = arith.constant 5 : i32
    %572 = vector.broadcast %c5_i32 : i32 to vector<8x16xi32>
    %573 = arith.cmpi eq, %78, %572 : vector<8x16xi32>
    %574 = vector.broadcast %506 : vector<1x1xf32> to vector<1x16xf32>
    %575 = arith.mulf %571, %574 : vector<1x16xf32>
    %576 = vector.shape_cast %575 : vector<1x16xf32> to vector<1x16xf32>
    %577 = vector.broadcast %576 : vector<1x16xf32> to vector<8x16xf32>
    %578 = arith.select %573, %577, %493 : vector<8x16xi1>, vector<8x16xf32>
    %cst_138 = arith.constant dense<0xFF800000> : vector<1xf32>
    %579 = vector.multi_reduction <maximumf>, %571, %cst_138 [1] : vector<1x16xf32> to vector<1xf32>
    %580 = vector.shape_cast %579 : vector<1xf32> to vector<1x1xf32>
    %581 = vector.broadcast %580 : vector<1x1xf32> to vector<1x16xf32>
    %582 = arith.cmpf oge, %571, %581 : vector<1x16xf32>
    %c16_i32_139 = arith.constant 16 : i32
    %583 = vector.broadcast %c16_i32_139 : i32 to vector<1x16xi32>
    %584 = arith.select %582, %77, %583 : vector<1x16xi1>, vector<1x16xi32>
    %cst_140 = arith.constant dense<2147483647> : vector<1xi32>
    %585 = vector.multi_reduction <minsi>, %584, %cst_140 [1] : vector<1x16xi32> to vector<1xi32>
    %586 = vector.shape_cast %585 : vector<1xi32> to vector<1x1xi32>
    %c2_i32_141 = arith.constant 2 : i32
    %587 = vector.broadcast %c2_i32_141 : i32 to vector<1x1xi32>
    %588 = arith.cmpi ne, %586, %587 : vector<1x1xi32>
    %589 = arith.extui %588 : vector<1x1xi1> to vector<1x1xi32>
    %590 = arith.sitofp %589 : vector<1x1xi32> to vector<1x1xf32>
    %591 = arith.mulf %506, %590 : vector<1x1xf32>
    %592 = vector.broadcast %586 : vector<1x1xi32> to vector<1x16xi32>
    %593 = arith.cmpi eq, %77, %592 : vector<1x16xi32>
    %594 = arith.extui %593 : vector<1x16xi1> to vector<1x16xi32>
    %595 = arith.sitofp %594 : vector<1x16xi32> to vector<1x16xf32>
    %cst_142 = arith.constant dense<0.000000e+00> : vector<1x16xf32>
    %596 = tpu.matmul %595, %6, %cst_142 {dimension_numbers = #tpu.dot_dimension_numbers<[1], [0], [0], [1], [0, 0, 1, 1], [], []>} : vector<1x16xf32>, vector<16x16xf32>, vector<1x16xf32> -> vector<1x16xf32>
    %cst_143 = arith.constant dense<0.000000e+00> : vector<1x64xf32>
    %597 = tpu.matmul %596, %2, %cst_143 {dimension_numbers = #tpu.dot_dimension_numbers<[1], [0], [0], [1], [0, 0, 1, 1], [], []>} : vector<1x16xf32>, vector<16x64xf32>, vector<1x64xf32> -> vector<1x64xf32>
    %cst_144 = arith.constant dense<0.000000e+00> : vector<1x64xf32>
    %598 = tpu.matmul %540, %3, %cst_144 {dimension_numbers = #tpu.dot_dimension_numbers<[1], [0], [0], [1], [0, 0, 1, 1], [], []>} : vector<1x16xf32>, vector<16x64xf32>, vector<1x64xf32> -> vector<1x64xf32>
    %599 = arith.addf %597, %598 : vector<1x64xf32>
    %600 = arith.addf %599, %10 : vector<1x64xf32>
    %601 = vector.extract_strided_slice %600 {offsets = [0, 0], sizes = [1, 16], strides = [1, 1]} : vector<1x64xf32> to vector<1x16xf32>
    %602 = arith.negf %601 : vector<1x16xf32>
    %603 = math.exp %602 : vector<1x16xf32>
    %cst_145 = arith.constant 1.000000e+00 : f32
    %604 = vector.broadcast %cst_145 : f32 to vector<1x16xf32>
    %605 = arith.addf %604, %603 : vector<1x16xf32>
    %606 = arith.divf %604, %605 : vector<1x16xf32>
    %607 = vector.extract_strided_slice %600 {offsets = [0, 16], sizes = [1, 16], strides = [1, 1]} : vector<1x64xf32> to vector<1x16xf32>
    %608 = arith.negf %607 : vector<1x16xf32>
    %609 = math.exp %608 : vector<1x16xf32>
    %cst_146 = arith.constant 1.000000e+00 : f32
    %610 = vector.broadcast %cst_146 : f32 to vector<1x16xf32>
    %611 = arith.addf %610, %609 : vector<1x16xf32>
    %612 = arith.divf %610, %611 : vector<1x16xf32>
    %613 = vector.extract_strided_slice %600 {offsets = [0, 32], sizes = [1, 16], strides = [1, 1]} : vector<1x64xf32> to vector<1x16xf32>
    %614 = math.tanh %613 : vector<1x16xf32>
    %615 = vector.extract_strided_slice %600 {offsets = [0, 48], sizes = [1, 16], strides = [1, 1]} : vector<1x64xf32> to vector<1x16xf32>
    %616 = arith.negf %615 : vector<1x16xf32>
    %617 = math.exp %616 : vector<1x16xf32>
    %cst_147 = arith.constant 1.000000e+00 : f32
    %618 = vector.broadcast %cst_147 : f32 to vector<1x16xf32>
    %619 = arith.addf %618, %617 : vector<1x16xf32>
    %620 = arith.divf %618, %619 : vector<1x16xf32>
    %621 = arith.mulf %612, %538 : vector<1x16xf32>
    %622 = arith.mulf %606, %614 : vector<1x16xf32>
    %623 = arith.addf %621, %622 : vector<1x16xf32>
    %624 = math.tanh %623 : vector<1x16xf32>
    %625 = arith.mulf %620, %624 : vector<1x16xf32>
    %cst_148 = arith.constant dense<0.000000e+00> : vector<1x64xf32>
    %626 = tpu.matmul %625, %4, %cst_148 {dimension_numbers = #tpu.dot_dimension_numbers<[1], [0], [0], [1], [0, 0, 1, 1], [], []>} : vector<1x16xf32>, vector<16x64xf32>, vector<1x64xf32> -> vector<1x64xf32>
    %cst_149 = arith.constant dense<0.000000e+00> : vector<1x64xf32>
    %627 = tpu.matmul %569, %5, %cst_149 {dimension_numbers = #tpu.dot_dimension_numbers<[1], [0], [0], [1], [0, 0, 1, 1], [], []>} : vector<1x16xf32>, vector<16x64xf32>, vector<1x64xf32> -> vector<1x64xf32>
    %628 = arith.addf %626, %627 : vector<1x64xf32>
    %629 = arith.addf %628, %11 : vector<1x64xf32>
    %630 = vector.extract_strided_slice %629 {offsets = [0, 0], sizes = [1, 16], strides = [1, 1]} : vector<1x64xf32> to vector<1x16xf32>
    %631 = arith.negf %630 : vector<1x16xf32>
    %632 = math.exp %631 : vector<1x16xf32>
    %cst_150 = arith.constant 1.000000e+00 : f32
    %633 = vector.broadcast %cst_150 : f32 to vector<1x16xf32>
    %634 = arith.addf %633, %632 : vector<1x16xf32>
    %635 = arith.divf %633, %634 : vector<1x16xf32>
    %636 = vector.extract_strided_slice %629 {offsets = [0, 16], sizes = [1, 16], strides = [1, 1]} : vector<1x64xf32> to vector<1x16xf32>
    %637 = arith.negf %636 : vector<1x16xf32>
    %638 = math.exp %637 : vector<1x16xf32>
    %cst_151 = arith.constant 1.000000e+00 : f32
    %639 = vector.broadcast %cst_151 : f32 to vector<1x16xf32>
    %640 = arith.addf %639, %638 : vector<1x16xf32>
    %641 = arith.divf %639, %640 : vector<1x16xf32>
    %642 = vector.extract_strided_slice %629 {offsets = [0, 32], sizes = [1, 16], strides = [1, 1]} : vector<1x64xf32> to vector<1x16xf32>
    %643 = math.tanh %642 : vector<1x16xf32>
    %644 = vector.extract_strided_slice %629 {offsets = [0, 48], sizes = [1, 16], strides = [1, 1]} : vector<1x64xf32> to vector<1x16xf32>
    %645 = arith.negf %644 : vector<1x16xf32>
    %646 = math.exp %645 : vector<1x16xf32>
    %cst_152 = arith.constant 1.000000e+00 : f32
    %647 = vector.broadcast %cst_152 : f32 to vector<1x16xf32>
    %648 = arith.addf %647, %646 : vector<1x16xf32>
    %649 = arith.divf %647, %648 : vector<1x16xf32>
    %650 = arith.mulf %641, %567 : vector<1x16xf32>
    %651 = arith.mulf %635, %643 : vector<1x16xf32>
    %652 = arith.addf %650, %651 : vector<1x16xf32>
    %653 = math.tanh %652 : vector<1x16xf32>
    %654 = arith.mulf %649, %653 : vector<1x16xf32>
    %cst_153 = arith.constant dense<0.000000e+00> : vector<1x16xf32>
    %655 = tpu.matmul %654, %7, %cst_153 {dimension_numbers = #tpu.dot_dimension_numbers<[1], [0], [0], [1], [0, 0, 1, 1], [], []>} : vector<1x16xf32>, vector<16x16xf32>, vector<1x16xf32> -> vector<1x16xf32>
    %656 = arith.addf %655, %12 : vector<1x16xf32>
    %c6_i32 = arith.constant 6 : i32
    %657 = vector.broadcast %c6_i32 : i32 to vector<8x16xi32>
    %658 = arith.cmpi eq, %78, %657 : vector<8x16xi32>
    %659 = vector.broadcast %591 : vector<1x1xf32> to vector<1x16xf32>
    %660 = arith.mulf %656, %659 : vector<1x16xf32>
    %661 = vector.shape_cast %660 : vector<1x16xf32> to vector<1x16xf32>
    %662 = vector.broadcast %661 : vector<1x16xf32> to vector<8x16xf32>
    %663 = arith.select %658, %662, %578 : vector<8x16xi1>, vector<8x16xf32>
    %cst_154 = arith.constant dense<0xFF800000> : vector<1xf32>
    %664 = vector.multi_reduction <maximumf>, %656, %cst_154 [1] : vector<1x16xf32> to vector<1xf32>
    %665 = vector.shape_cast %664 : vector<1xf32> to vector<1x1xf32>
    %666 = vector.broadcast %665 : vector<1x1xf32> to vector<1x16xf32>
    %667 = arith.cmpf oge, %656, %666 : vector<1x16xf32>
    %c16_i32_155 = arith.constant 16 : i32
    %668 = vector.broadcast %c16_i32_155 : i32 to vector<1x16xi32>
    %669 = arith.select %667, %77, %668 : vector<1x16xi1>, vector<1x16xi32>
    %cst_156 = arith.constant dense<2147483647> : vector<1xi32>
    %670 = vector.multi_reduction <minsi>, %669, %cst_156 [1] : vector<1x16xi32> to vector<1xi32>
    %671 = vector.shape_cast %670 : vector<1xi32> to vector<1x1xi32>
    %c2_i32_157 = arith.constant 2 : i32
    %672 = vector.broadcast %c2_i32_157 : i32 to vector<1x1xi32>
    %673 = arith.cmpi ne, %671, %672 : vector<1x1xi32>
    %674 = arith.extui %673 : vector<1x1xi1> to vector<1x1xi32>
    %675 = arith.sitofp %674 : vector<1x1xi32> to vector<1x1xf32>
    %676 = arith.mulf %591, %675 : vector<1x1xf32>
    %677 = vector.broadcast %671 : vector<1x1xi32> to vector<1x16xi32>
    %678 = arith.cmpi eq, %77, %677 : vector<1x16xi32>
    %679 = arith.extui %678 : vector<1x16xi1> to vector<1x16xi32>
    %680 = arith.sitofp %679 : vector<1x16xi32> to vector<1x16xf32>
    %cst_158 = arith.constant dense<0.000000e+00> : vector<1x16xf32>
    %681 = tpu.matmul %680, %6, %cst_158 {dimension_numbers = #tpu.dot_dimension_numbers<[1], [0], [0], [1], [0, 0, 1, 1], [], []>} : vector<1x16xf32>, vector<16x16xf32>, vector<1x16xf32> -> vector<1x16xf32>
    %cst_159 = arith.constant dense<0.000000e+00> : vector<1x64xf32>
    %682 = tpu.matmul %681, %2, %cst_159 {dimension_numbers = #tpu.dot_dimension_numbers<[1], [0], [0], [1], [0, 0, 1, 1], [], []>} : vector<1x16xf32>, vector<16x64xf32>, vector<1x64xf32> -> vector<1x64xf32>
    %cst_160 = arith.constant dense<0.000000e+00> : vector<1x64xf32>
    %683 = tpu.matmul %625, %3, %cst_160 {dimension_numbers = #tpu.dot_dimension_numbers<[1], [0], [0], [1], [0, 0, 1, 1], [], []>} : vector<1x16xf32>, vector<16x64xf32>, vector<1x64xf32> -> vector<1x64xf32>
    %684 = arith.addf %682, %683 : vector<1x64xf32>
    %685 = arith.addf %684, %10 : vector<1x64xf32>
    %686 = vector.extract_strided_slice %685 {offsets = [0, 0], sizes = [1, 16], strides = [1, 1]} : vector<1x64xf32> to vector<1x16xf32>
    %687 = arith.negf %686 : vector<1x16xf32>
    %688 = math.exp %687 : vector<1x16xf32>
    %cst_161 = arith.constant 1.000000e+00 : f32
    %689 = vector.broadcast %cst_161 : f32 to vector<1x16xf32>
    %690 = arith.addf %689, %688 : vector<1x16xf32>
    %691 = arith.divf %689, %690 : vector<1x16xf32>
    %692 = vector.extract_strided_slice %685 {offsets = [0, 16], sizes = [1, 16], strides = [1, 1]} : vector<1x64xf32> to vector<1x16xf32>
    %693 = arith.negf %692 : vector<1x16xf32>
    %694 = math.exp %693 : vector<1x16xf32>
    %cst_162 = arith.constant 1.000000e+00 : f32
    %695 = vector.broadcast %cst_162 : f32 to vector<1x16xf32>
    %696 = arith.addf %695, %694 : vector<1x16xf32>
    %697 = arith.divf %695, %696 : vector<1x16xf32>
    %698 = vector.extract_strided_slice %685 {offsets = [0, 32], sizes = [1, 16], strides = [1, 1]} : vector<1x64xf32> to vector<1x16xf32>
    %699 = math.tanh %698 : vector<1x16xf32>
    %700 = vector.extract_strided_slice %685 {offsets = [0, 48], sizes = [1, 16], strides = [1, 1]} : vector<1x64xf32> to vector<1x16xf32>
    %701 = arith.negf %700 : vector<1x16xf32>
    %702 = math.exp %701 : vector<1x16xf32>
    %cst_163 = arith.constant 1.000000e+00 : f32
    %703 = vector.broadcast %cst_163 : f32 to vector<1x16xf32>
    %704 = arith.addf %703, %702 : vector<1x16xf32>
    %705 = arith.divf %703, %704 : vector<1x16xf32>
    %706 = arith.mulf %697, %623 : vector<1x16xf32>
    %707 = arith.mulf %691, %699 : vector<1x16xf32>
    %708 = arith.addf %706, %707 : vector<1x16xf32>
    %709 = math.tanh %708 : vector<1x16xf32>
    %710 = arith.mulf %705, %709 : vector<1x16xf32>
    %cst_164 = arith.constant dense<0.000000e+00> : vector<1x64xf32>
    %711 = tpu.matmul %710, %4, %cst_164 {dimension_numbers = #tpu.dot_dimension_numbers<[1], [0], [0], [1], [0, 0, 1, 1], [], []>} : vector<1x16xf32>, vector<16x64xf32>, vector<1x64xf32> -> vector<1x64xf32>
    %cst_165 = arith.constant dense<0.000000e+00> : vector<1x64xf32>
    %712 = tpu.matmul %654, %5, %cst_165 {dimension_numbers = #tpu.dot_dimension_numbers<[1], [0], [0], [1], [0, 0, 1, 1], [], []>} : vector<1x16xf32>, vector<16x64xf32>, vector<1x64xf32> -> vector<1x64xf32>
    %713 = arith.addf %711, %712 : vector<1x64xf32>
    %714 = arith.addf %713, %11 : vector<1x64xf32>
    %715 = vector.extract_strided_slice %714 {offsets = [0, 0], sizes = [1, 16], strides = [1, 1]} : vector<1x64xf32> to vector<1x16xf32>
    %716 = arith.negf %715 : vector<1x16xf32>
    %717 = math.exp %716 : vector<1x16xf32>
    %cst_166 = arith.constant 1.000000e+00 : f32
    %718 = vector.broadcast %cst_166 : f32 to vector<1x16xf32>
    %719 = arith.addf %718, %717 : vector<1x16xf32>
    %720 = arith.divf %718, %719 : vector<1x16xf32>
    %721 = vector.extract_strided_slice %714 {offsets = [0, 16], sizes = [1, 16], strides = [1, 1]} : vector<1x64xf32> to vector<1x16xf32>
    %722 = arith.negf %721 : vector<1x16xf32>
    %723 = math.exp %722 : vector<1x16xf32>
    %cst_167 = arith.constant 1.000000e+00 : f32
    %724 = vector.broadcast %cst_167 : f32 to vector<1x16xf32>
    %725 = arith.addf %724, %723 : vector<1x16xf32>
    %726 = arith.divf %724, %725 : vector<1x16xf32>
    %727 = vector.extract_strided_slice %714 {offsets = [0, 32], sizes = [1, 16], strides = [1, 1]} : vector<1x64xf32> to vector<1x16xf32>
    %728 = math.tanh %727 : vector<1x16xf32>
    %729 = vector.extract_strided_slice %714 {offsets = [0, 48], sizes = [1, 16], strides = [1, 1]} : vector<1x64xf32> to vector<1x16xf32>
    %730 = arith.negf %729 : vector<1x16xf32>
    %731 = math.exp %730 : vector<1x16xf32>
    %cst_168 = arith.constant 1.000000e+00 : f32
    %732 = vector.broadcast %cst_168 : f32 to vector<1x16xf32>
    %733 = arith.addf %732, %731 : vector<1x16xf32>
    %734 = arith.divf %732, %733 : vector<1x16xf32>
    %735 = arith.mulf %726, %652 : vector<1x16xf32>
    %736 = arith.mulf %720, %728 : vector<1x16xf32>
    %737 = arith.addf %735, %736 : vector<1x16xf32>
    %738 = math.tanh %737 : vector<1x16xf32>
    %739 = arith.mulf %734, %738 : vector<1x16xf32>
    %cst_169 = arith.constant dense<0.000000e+00> : vector<1x16xf32>
    %740 = tpu.matmul %739, %7, %cst_169 {dimension_numbers = #tpu.dot_dimension_numbers<[1], [0], [0], [1], [0, 0, 1, 1], [], []>} : vector<1x16xf32>, vector<16x16xf32>, vector<1x16xf32> -> vector<1x16xf32>
    %741 = arith.addf %740, %12 : vector<1x16xf32>
    %c7_i32 = arith.constant 7 : i32
    %742 = vector.broadcast %c7_i32 : i32 to vector<8x16xi32>
    %743 = arith.cmpi eq, %78, %742 : vector<8x16xi32>
    %744 = vector.broadcast %676 : vector<1x1xf32> to vector<1x16xf32>
    %745 = arith.mulf %741, %744 : vector<1x16xf32>
    %746 = vector.shape_cast %745 : vector<1x16xf32> to vector<1x16xf32>
    %747 = vector.broadcast %746 : vector<1x16xf32> to vector<8x16xf32>
    %748 = arith.select %743, %747, %663 : vector<8x16xi1>, vector<8x16xf32>
    %cst_170 = arith.constant 0.000000e+00 : f32
    %749 = vector.broadcast %cst_170 : f32 to vector<16x128xf32>
    %c0_171 = arith.constant 0 : index
    %c0_172 = arith.constant 0 : index
    %750 = vector.load %arg3[%c0_171, %c0_172] : memref<16x128xf32, #tpu.memory_space<vmem>>, vector<16x128xf32>
    tpu.vector_store %arg3[%c0_171, %c0_172], %749 {strides = array<i32>} : memref<16x128xf32, #tpu.memory_space<vmem>>, vector<16x128xf32>,
    %c0_173 = arith.constant 0 : index
    %c0_174 = arith.constant 0 : index
    %751 = vector.load %arg3[%c0_173, %c0_174] : memref<16x128xf32, #tpu.memory_space<vmem>>, vector<8x64xf32>
    tpu.vector_store %arg3[%c0_173, %c0_174], %65 {strides = array<i32>} : memref<16x128xf32, #tpu.memory_space<vmem>>, vector<8x64xf32>,
    %c0_175 = arith.constant 0 : index
    %c64_176 = arith.constant 64 : index
    %752 = vector.load %arg3[%c0_175, %c64_176] : memref<16x128xf32, #tpu.memory_space<vmem>>, vector<8x16xf32>
    tpu.vector_store %arg3[%c0_175, %c64_176], %748 {strides = array<i32>} : memref<16x128xf32, #tpu.memory_space<vmem>>, vector<8x16xf32>,
    %c8 = arith.constant 8 : index
    %c0_177 = arith.constant 0 : index
    %753 = vector.load %arg3[%c8, %c0_177] : memref<16x128xf32, #tpu.memory_space<vmem>>, vector<4x64xf32>
    tpu.vector_store %arg3[%c8, %c0_177], %70 {strides = array<i32>} : memref<16x128xf32, #tpu.memory_space<vmem>>, vector<4x64xf32>,
    return
  }
}

</mosaic_0001>

<llo_original>
// kernel: atten_ground_forward.1
$region0: #{atten_ground_forward.1}
  #allocation0 [shape = 'u32[]', space=smem, size = 0x4, offset = 0x4, fixed_abs, tag = 'smem constant byte address 0x4 - core index']
  #allocation1 [shape = 'u32[72,128]{1,0:T(1,128)}', space=vmem, size = 0x9000, scoped, tag = 'internal scratch']
  %s0 = inlined_call_operand.vmem [shape: f32[88,128], index: 0, kind: input, shape index: {}]
  %s1 = inlined_call_operand.vmem [shape: f32[4,64], index: 1, kind: input, shape index: {}]
  %s2 = inlined_call_operand.vmem [shape: f32[32,8], index: 2, kind: input, shape index: {}]
  %s3 = inlined_call_operand.vmem [shape: f32[16,128], index: 3, kind: output, shape index: {}]
  %s4 = sld [smem:[#allocation0]]
  $region22: #{atten_ground_forward.1} parent=0
    _
  %s6 = ssub.s32 1, %s4
  %s7 = scalar_select 0, %s6, %s4
  // Predicated region
  $region2: #{atten_ground_forward.1} parent=0 // pred_check
    _
  $region3: #{atten_ground_forward.1} parent=0 // pred_check_branch
    %9 = sbr.rel (0) target = $region5
  $region4: #{atten_ground_forward.1} parent=0 // pred_region
    _
  $region5: #{atten_ground_forward.1} parent=0 // pred_fallthru
    _
  // Predicated region
  $region6: #{atten_ground_forward.1} parent=0 // pred_check
    _
  $region7: #{atten_ground_forward.1} parent=0 // pred_check_branch
    %11 = sbr.rel (0) target = $region9
  $region8: #{atten_ground_forward.1} parent=0 // pred_region
    _
  $region9: #{atten_ground_forward.1} parent=0 // pred_fallthru
    _
  // Predicated region
  $region10: #{atten_ground_forward.1} parent=0 // pred_check
    _
  $region11: #{atten_ground_forward.1} parent=0 // pred_check_branch
    %13 = sbr.rel (0) target = $region13
  $region12: #{atten_ground_forward.1} parent=0 // pred_region
    _
  $region13: #{atten_ground_forward.1} parent=0 // pred_fallthru
    _
  %v14 = vld [vmem:[%s0] sm:$0xff]
  %v15 = vld [vmem:[%s0 + $0x8] sm:$0xff]
  %v16 = vld [vmem:[%s0 + $0x10] sm:$0xff]
  %v17 = vld [vmem:[%s0 + $0x18] sm:$0xff]
  %v18 = vld [vmem:[%s0 + $0x20] sm:$0xff]
  %v19 = vld [vmem:[%s0 + $0x28] sm:$0xff]
  %v20 = vld [vmem:[%s0 + $0x30] sm:$0xff]
  %v21 = vld [vmem:[%s0 + $0x38] sm:$0xff]
  %v22 = vld [vmem:[%s0 + $0x40] sm:$0xff]
  %v23 = vld [vmem:[%s0 + $0x48] sm:$0xff]
  %v24 = vld [vmem:[%s0 + $0x50] sm:$0xf]
  %v25 = vld [vmem:[%s0 + $0x54] sm:$0x1]
  %v26 = vld [vmem:[%s0 + $0x55] sm:$0x1]
  %v27 = vld [vmem:[%s1] sm:$0xf]
  %29 = vset.pattern.permute.xlu0 4
  %30 = vperm.xlu0 %29, %v14
  %v31 = vpop.permute.xlu0 %30
  %34 = vset.pattern.permute.xlu0 4
  %35 = vperm.xlu0 %34, %v15
  %v36 = vpop.permute.xlu0 %35
  %39 = vset.pattern.permute.xlu0 4
  %40 = vperm.xlu0 %39, %v16
  %v41 = vpop.permute.xlu0 %40
  %44 = vset.pattern.permute.xlu0 4
  %45 = vperm.xlu0 %44, %v17
  %v46 = vpop.permute.xlu0 %45
  %vm48 = vcmask 31744
  %v49 = vsel %vm48, %v14, 0
  %v51 = vsel %vm48, %v15, 0
  %v53 = vsel %vm48, %v16, 0
  %v55 = vsel %vm48, %v17, 0
  %vm57 = vcmask 1043456
  %v59 = vsel %vm57, %v27, 0
  %61 = vmatpush.msra.mxu0 0.0
  %62 = vmatpush.msra.mxu0 0.0
  %63 = vmatpush.msra.mxu0 0.0
  %64 = vmatpush.msra.mxu0 0.0
  %65 = vmatpush.msra.mxu0 0.0
  %66 = vmatpush.msra.mxu0 0.0
  %67 = vmatpush.msra.mxu0 0.0
  %68 = vmatpush.msra.mxu0 0.0
  %69 = vmatpush.msra.mxu0 0.0
  %70 = vmatpush.msra.mxu0 0.0
  %71 = vmatpush.msra.mxu0 0.0
  %72 = vmatpush.msra.mxu0 0.0
  %73 = vmatpush.msra.mxu0 0.0
  %74 = vmatpush.msra.mxu0 0.0
  %75 = vmatpush.msra.mxu0 0.0
  %76 = vmatpush.msra.mxu0 %v59
  %77 = vmatmul.f32.gmra.mxu0 %v49
  %v78 = vpop.f32.mrf.mxu0
  %v79 = vadd.f32 %v31, %v78
  %80 = vmatmul.f32.gmra.mxu0 %v51
  %v81 = vpop.f32.mrf.mxu0
  %v82 = vadd.f32 %v36, %v81
  %83 = vmatmul.f32.gmra.mxu0 %v53
  %v84 = vpop.f32.mrf.mxu0
  %v85 = vadd.f32 %v41, %v84
  %86 = vmatmul.f32.gmra.mxu0 %v55
  %v87 = vpop.f32.mrf.mxu0
  %v88 = vadd.f32 %v46, %v87
  %89 = vdwg.mxu0
  %v90 = vtanh.pop %v79
  %v91 = vtanh.pop %v82
  %v92 = vtanh.pop %v85
  %v93 = vtanh.pop %v88
  %v94 = vld [vmem:[%s2] sm:$0xff]
  %v95 = vld [vmem:[%s2 + $0x8] sm:$0xff]
  %v96 = vld [vmem:[%s2 + $0x10] sm:$0xff]
  %v97 = vld [vmem:[%s2 + $0x18] sm:$0xff]
  %v98 = vtanh.pop %v94
  %v99 = vtanh.pop %v95
  %v100 = vtanh.pop %v96
  %v101 = vtanh.pop %v97
  %102 = vxpose.xlu0.b32.start [1/16] %v98, 128
  %103 = vxpose.xlu0.b32.cont [2/16] %v99, 128
  %104 = vxpose.xlu0.b32.cont [3/16] %v100, 128
  %105 = vxpose.xlu0.b32.cont [4/16] %v101, 128
  %106 = vxpose.xlu0.b32.cont [5/16] 0.0, 128
  %107 = vxpose.xlu0.b32.cont [6/16] 0.0, 128
  %108 = vxpose.xlu0.b32.cont [7/16] 0.0, 128
  %109 = vxpose.xlu0.b32.cont [8/16] 0.0, 128
  %110 = vxpose.xlu0.b32.cont [9/16] 0.0, 128
  %111 = vxpose.xlu0.b32.cont [10/16] 0.0, 128
  %112 = vxpose.xlu0.b32.cont [11/16] 0.0, 128
  %113 = vxpose.xlu0.b32.cont [12/16] 0.0, 128
  %114 = vxpose.xlu0.b32.cont [13/16] 0.0, 128
  %115 = vxpose.xlu0.b32.cont [14/16] 0.0, 128
  %116 = vxpose.xlu0.b32.cont [15/16] 0.0, 128
  %117 = vxpose.xlu0.b32.end [16/16] 0.0, 128
  %v118 = vpop.trf.xlu0
  %v119 = vpop.trf.xlu0
  %v120 = vpop.trf.xlu0
  %v121 = vpop.trf.xlu0
  %v122 = vpop.trf.xlu0
  %v123 = vpop.trf.xlu0
  %v124 = vpop.trf.xlu0
  %v125 = vpop.trf.xlu0
  %v126 = vpop.trf.xlu0
  %v127 = vpop.trf.xlu0
  %v128 = vpop.trf.xlu0
  %v129 = vpop.trf.xlu0
  %v130 = vpop.trf.xlu0
  %v131 = vpop.trf.xlu0
  %v132 = vpop.trf.xlu0
  %v133 = vpop.trf.xlu0
  %vm134 = vcmask 261120
  %v136 = vsel %vm134, %v118, 0
  %138 = vmatpush.msra.mxu0 0.0
  %139 = vmatpush.msra.mxu0 0.0
  %140 = vmatpush.msra.mxu0 0.0
  %141 = vmatpush.msra.mxu0 0.0
  %142 = vmatpush.msra.mxu0 0.0
  %143 = vmatpush.msra.mxu0 0.0
  %144 = vmatpush.msra.mxu0 0.0
  %145 = vmatpush.msra.mxu0 0.0
  %146 = vmatpush.msra.mxu0 0.0
  %147 = vmatpush.msra.mxu0 0.0
  %148 = vmatpush.msra.mxu0 0.0
  %149 = vmatpush.msra.mxu0 0.0
  %150 = vmatpush.msra.mxu0 %v93
  %151 = vmatpush.msra.mxu0 %v92
  %152 = vmatpush.msra.mxu0 %v91
  %153 = vmatpush.msra.mxu0 %v90
  %154 = vmatmul.f32.gmra.mxu0 %v136
  %v155 = vpop.f32.mrf.mxu0
  %v156 = vadd.f32 0.0, %v155
  %157 = vdwg.mxu0
  %vm158 = vcmask 523264
  %v159 = vsel %vm158, %v156, -inf
  %v160 = vrot.slane %v159, 4
  %v161 = vmax.f32 %v159, %v160
  %v162 = vrot.slane %v161, 2
  %v163 = vmax.f32 %v161, %v162
  %v164 = vrot.slane %v163, 1
  %v165 = vmax.f32 %v163, %v164
  %v166 = vsub.f32 %v156, %v165
  %v167 = vmul.f32 %v166, 1.442695
  %v168 = vpow.pop %v167
  %v169 = vsel %vm158, %v168, 0.0
  %v170 = vrot.slane %v169, 4
  %v171 = vadd.f32 %v169, %v170
  %v172 = vrot.slane %v171, 2
  %v173 = vadd.f32 %v171, %v172
  %v174 = vrot.slane %v173, 1
  %v175 = vadd.f32 %v173, %v174
  %v176 = vrcp.pop %v175
  %v177 = vmul.f32 %v175, %v176
  %v178 = vsub.f32 1.0, %v177
  %v179 = vmul.f32 %v176, %v178
  %v180 = vadd.f32 %v176, %v179
  %vm181 = vweird.f32 %v175
  %vm182 = vweird.f32 %v176
  %vm183 = vmor %vm181, %vm182
  %v184 = vsel %vm183, %v176, %v180
  %v185 = vand.u32 2147483647, %v175
  %vm186 = vcmp.eq.f32.partialorder %v185, 8.507059e+37
  %v187 = vand.u32 %v175, 2147483648
  %v188 = vor.u32 1.1754944e-38, %v187
  %v189 = vsel %vm186, %v188, %v184
  %v190 = vmul.f32 %v168, %v189
  %vm191 = vcmask 64512
  %v193 = vsel %vm191, %v98, 0
  %v196 = vsel %vm191, %v99, 0
  %v199 = vsel %vm191, %v100, 0
  %v202 = vsel %vm191, %v101, 0
  %204 = vmatpush.msra.mxu0 0.0
  %205 = vmatpush.msra.mxu0 0.0
  %206 = vmatpush.msra.mxu0 0.0
  %207 = vmatpush.msra.mxu0 0.0
  %208 = vmatpush.msra.mxu0 0.0
  %209 = vmatpush.msra.mxu0 0.0
  %210 = vmatpush.msra.mxu0 0.0
  %211 = vmatpush.msra.mxu0 0.0
  %212 = vmatpush.msra.mxu0 0.0
  %213 = vmatpush.msra.mxu0 0.0
  %214 = vmatpush.msra.mxu0 0.0
  %215 = vmatpush.msra.mxu0 0.0
  %216 = vmatpush.msra.mxu0 0.0
  %217 = vmatpush.msra.mxu0 0.0
  %218 = vmatpush.msra.mxu0 0.0
  %219 = vmatpush.msra.mxu0 %v190
  %220 = vmatmul.f32.gmra.mxu0 %v193
  %v221 = vpop.f32.mrf.mxu0
  %v222 = vadd.f32 0.0, %v221
  %223 = vmatmul.f32.gmra.mxu0 %v196
  %v224 = vpop.f32.mrf.mxu0
  %v225 = vadd.f32 0.0, %v224
  %226 = vmatmul.f32.gmra.mxu0 %v199
  %v227 = vpop.f32.mrf.mxu0
  %v228 = vadd.f32 0.0, %v227
  %229 = vmatmul.f32.gmra.mxu0 %v202
  %v230 = vpop.f32.mrf.mxu0
  %v231 = vadd.f32 0.0, %v230
  %232 = vdwg.mxu0
  %v234 = vsel %vm158, %v90, 0
  %v237 = vsel %vm158, %v91, 0
  %v240 = vsel %vm158, %v92, 0
  %v243 = vsel %vm158, %v93, 0
  %v246 = vsel %vm158, %v190, 0
  %248 = vmatpush.xpose.msra.mxu0 0.0
  %249 = vmatpush.xpose.msra.mxu0 0.0
  %250 = vmatpush.xpose.msra.mxu0 0.0
  %251 = vmatpush.xpose.msra.mxu0 0.0
  %252 = vmatpush.xpose.msra.mxu0 0.0
  %253 = vmatpush.xpose.msra.mxu0 0.0
  %254 = vmatpush.xpose.msra.mxu0 0.0
  %255 = vmatpush.xpose.msra.mxu0 0.0
  %256 = vmatpush.xpose.msra.mxu0 0.0
  %257 = vmatpush.xpose.msra.mxu0 0.0
  %258 = vmatpush.xpose.msra.mxu0 0.0
  %259 = vmatpush.xpose.msra.mxu0 0.0
  %260 = vmatpush.xpose.msra.mxu0 0.0
  %261 = vmatpush.xpose.msra.mxu0 0.0
  %262 = vmatpush.xpose.msra.mxu0 0.0
  %263 = vmatpush.xpose.msra.mxu0 %v246
  %264 = vmatmul.f32.gmra.mxu0 %v234
  %v265 = vpop.f32.mrf.mxu0
  %v266 = vadd.f32 0.0, %v265
  %267 = vmatmul.f32.gmra.mxu0 %v237
  %v268 = vpop.f32.mrf.mxu0
  %v269 = vadd.f32 0.0, %v268
  %270 = vmatmul.f32.gmra.mxu0 %v240
  %v271 = vpop.f32.mrf.mxu0
  %v272 = vadd.f32 0.0, %v271
  %273 = vmatmul.f32.gmra.mxu0 %v243
  %v274 = vpop.f32.mrf.mxu0
  %v275 = vadd.f32 0.0, %v274
  %276 = vdwg.mxu0
  %277 = vxpose.xlu0.b32.start [1/16] %v266, 128
  %278 = vxpose.xlu0.b32.cont [2/16] %v269, 128
  %279 = vxpose.xlu0.b32.cont [3/16] %v272, 128
  %280 = vxpose.xlu0.b32.cont [4/16] %v275, 128
  %281 = vxpose.xlu0.b32.cont [5/16] 0.0, 128
  %282 = vxpose.xlu0.b32.cont [6/16] 0.0, 128
  %283 = vxpose.xlu0.b32.cont [7/16] 0.0, 128
  %284 = vxpose.xlu0.b32.cont [8/16] 0.0, 128
  %285 = vxpose.xlu0.b32.cont [9/16] 0.0, 128
  %286 = vxpose.xlu0.b32.cont [10/16] 0.0, 128
  %287 = vxpose.xlu0.b32.cont [11/16] 0.0, 128
  %288 = vxpose.xlu0.b32.cont [12/16] 0.0, 128
  %289 = vxpose.xlu0.b32.cont [13/16] 0.0, 128
  %290 = vxpose.xlu0.b32.cont [14/16] 0.0, 128
  %291 = vxpose.xlu0.b32.cont [15/16] 0.0, 128
  %292 = vxpose.xlu0.b32.end [16/16] 0.0, 128
  %v293 = vpop.trf.xlu0
  %v294 = vpop.trf.xlu0
  %v295 = vpop.trf.xlu0
  %v296 = vpop.trf.xlu0
  %v297 = vpop.trf.xlu0
  %v298 = vpop.trf.xlu0
  %v299 = vpop.trf.xlu0
  %v300 = vpop.trf.xlu0
  %v301 = vpop.trf.xlu0
  %v302 = vpop.trf.xlu0
  %v303 = vpop.trf.xlu0
  %v304 = vpop.trf.xlu0
  %v305 = vpop.trf.xlu0
  %v306 = vpop.trf.xlu0
  %v307 = vpop.trf.xlu0
  %v308 = vpop.trf.xlu0
  %v310 = vsel %vm134, %v293, 0
  %312 = vmatpush.msra.mxu0 0.0
  %313 = vmatpush.msra.mxu0 0.0
  %314 = vmatpush.msra.mxu0 0.0
  %315 = vmatpush.msra.mxu0 0.0
  %316 = vmatpush.msra.mxu0 0.0
  %317 = vmatpush.msra.mxu0 0.0
  %318 = vmatpush.msra.mxu0 0.0
  %319 = vmatpush.msra.mxu0 0.0
  %320 = vmatpush.msra.mxu0 0.0
  %321 = vmatpush.msra.mxu0 0.0
  %322 = vmatpush.msra.mxu0 0.0
  %323 = vmatpush.msra.mxu0 0.0
  %324 = vmatpush.msra.mxu0 %v231
  %325 = vmatpush.msra.mxu0 %v228
  %326 = vmatpush.msra.mxu0 %v225
  %327 = vmatpush.msra.mxu0 %v222
  %328 = vmatmul.f32.gmra.mxu0 %v310
  %v329 = vpop.f32.mrf.mxu0
  %v330 = vadd.f32 0.0, %v329
  %331 = vdwg.mxu0
  %v332 = vsel %vm158, %v330, -inf
  %v333 = vrot.slane %v332, 4
  %v334 = vmax.f32 %v332, %v333
  %v335 = vrot.slane %v334, 2
  %v336 = vmax.f32 %v334, %v335
  %v337 = vrot.slane %v336, 1
  %v338 = vmax.f32 %v336, %v337
  %v339 = vsub.f32 %v330, %v338
  %v340 = vmul.f32 %v339, 1.442695
  %v341 = vpow.pop %v340
  %v342 = vsel %vm158, %v341, 0.0
  %v343 = vrot.slane %v342, 4
  %v344 = vadd.f32 %v342, %v343
  %v345 = vrot.slane %v344, 2
  %v346 = vadd.f32 %v344, %v345
  %v347 = vrot.slane %v346, 1
  %v348 = vadd.f32 %v346, %v347
  %v349 = vrcp.pop %v348
  %v350 = vmul.f32 %v348, %v349
  %v351 = vsub.f32 1.0, %v350
  %v352 = vmul.f32 %v349, %v351
  %v353 = vadd.f32 %v349, %v352
  %vm354 = vweird.f32 %v348
  %vm355 = vweird.f32 %v349
  %vm356 = vmor %vm354, %vm355
  %v357 = vsel %vm356, %v349, %v353
  %v358 = vand.u32 2147483647, %v348
  %vm359 = vcmp.eq.f32.partialorder %v358, 8.507059e+37
  %v360 = vand.u32 %v348, 2147483648
  %v361 = vor.u32 1.1754944e-38, %v360
  %v362 = vsel %vm359, %v361, %v357
  %v363 = vmul.f32 %v341, %v362
  %v365 = vsel %vm191, %v266, 0
  %v368 = vsel %vm191, %v269, 0
  %v371 = vsel %vm191, %v272, 0
  %v374 = vsel %vm191, %v275, 0
  %376 = vmatpush.msra.mxu0 0.0
  %377 = vmatpush.msra.mxu0 0.0
  %378 = vmatpush.msra.mxu0 0.0
  %379 = vmatpush.msra.mxu0 0.0
  %380 = vmatpush.msra.mxu0 0.0
  %381 = vmatpush.msra.mxu0 0.0
  %382 = vmatpush.msra.mxu0 0.0
  %383 = vmatpush.msra.mxu0 0.0
  %384 = vmatpush.msra.mxu0 0.0
  %385 = vmatpush.msra.mxu0 0.0
  %386 = vmatpush.msra.mxu0 0.0
  %387 = vmatpush.msra.mxu0 0.0
  %388 = vmatpush.msra.mxu0 0.0
  %389 = vmatpush.msra.mxu0 0.0
  %390 = vmatpush.msra.mxu0 0.0
  %391 = vmatpush.msra.mxu0 %v363
  %392 = vmatmul.f32.gmra.mxu0 %v365
  %v393 = vpop.f32.mrf.mxu0
  %v394 = vadd.f32 0.0, %v393
  %395 = vmatmul.f32.gmra.mxu0 %v368
  %v396 = vpop.f32.mrf.mxu0
  %v397 = vadd.f32 0.0, %v396
  %398 = vmatmul.f32.gmra.mxu0 %v371
  %v399 = vpop.f32.mrf.mxu0
  %v400 = vadd.f32 0.0, %v399
  %401 = vmatmul.f32.gmra.mxu0 %v374
  %v402 = vpop.f32.mrf.mxu0
  %v403 = vadd.f32 0.0, %v402
  %404 = vdwg.mxu0
  %v406 = vsel %vm158, %v222, 0
  %v409 = vsel %vm158, %v225, 0
  %v412 = vsel %vm158, %v228, 0
  %v415 = vsel %vm158, %v231, 0
  %v418 = vsel %vm158, %v363, 0
  %420 = vmatpush.xpose.msra.mxu0 0.0
  %421 = vmatpush.xpose.msra.mxu0 0.0
  %422 = vmatpush.xpose.msra.mxu0 0.0
  %423 = vmatpush.xpose.msra.mxu0 0.0
  %424 = vmatpush.xpose.msra.mxu0 0.0
  %425 = vmatpush.xpose.msra.mxu0 0.0
  %426 = vmatpush.xpose.msra.mxu0 0.0
  %427 = vmatpush.xpose.msra.mxu0 0.0
  %428 = vmatpush.xpose.msra.mxu0 0.0
  %429 = vmatpush.xpose.msra.mxu0 0.0
  %430 = vmatpush.xpose.msra.mxu0 0.0
  %431 = vmatpush.xpose.msra.mxu0 0.0
  %432 = vmatpush.xpose.msra.mxu0 0.0
  %433 = vmatpush.xpose.msra.mxu0 0.0
  %434 = vmatpush.xpose.msra.mxu0 0.0
  %435 = vmatpush.xpose.msra.mxu0 %v418
  %436 = vmatmul.f32.gmra.mxu0 %v406
  %v437 = vpop.f32.mrf.mxu0
  %v438 = vadd.f32 0.0, %v437
  %439 = vmatmul.f32.gmra.mxu0 %v409
  %v440 = vpop.f32.mrf.mxu0
  %v441 = vadd.f32 0.0, %v440
  %442 = vmatmul.f32.gmra.mxu0 %v412
  %v443 = vpop.f32.mrf.mxu0
  %v444 = vadd.f32 0.0, %v443
  %445 = vmatmul.f32.gmra.mxu0 %v415
  %v446 = vpop.f32.mrf.mxu0
  %v447 = vadd.f32 0.0, %v446
  %448 = vdwg.mxu0
  %449 = vxpose.xlu0.b32.start [1/16] %v438, 128
  %450 = vxpose.xlu0.b32.cont [2/16] %v441, 128
  %451 = vxpose.xlu0.b32.cont [3/16] %v444, 128
  %452 = vxpose.xlu0.b32.cont [4/16] %v447, 128
  %453 = vxpose.xlu0.b32.cont [5/16] 0.0, 128
  %454 = vxpose.xlu0.b32.cont [6/16] 0.0, 128
  %455 = vxpose.xlu0.b32.cont [7/16] 0.0, 128
  %456 = vxpose.xlu0.b32.cont [8/16] 0.0, 128
  %457 = vxpose.xlu0.b32.cont [9/16] 0.0, 128
  %458 = vxpose.xlu0.b32.cont [10/16] 0.0, 128
  %459 = vxpose.xlu0.b32.cont [11/16] 0.0, 128
  %460 = vxpose.xlu0.b32.cont [12/16] 0.0, 128
  %461 = vxpose.xlu0.b32.cont [13/16] 0.0, 128
  %462 = vxpose.xlu0.b32.cont [14/16] 0.0, 128
  %463 = vxpose.xlu0.b32.cont [15/16] 0.0, 128
  %464 = vxpose.xlu0.b32.end [16/16] 0.0, 128
  %v465 = vpop.trf.xlu0
  %v466 = vpop.trf.xlu0
  %v467 = vpop.trf.xlu0
  %v468 = vpop.trf.xlu0
  %v469 = vpop.trf.xlu0
  %v470 = vpop.trf.xlu0
  %v471 = vpop.trf.xlu0
  %v472 = vpop.trf.xlu0
  %v473 = vpop.trf.xlu0
  %v474 = vpop.trf.xlu0
  %v475 = vpop.trf.xlu0
  %v476 = vpop.trf.xlu0
  %v477 = vpop.trf.xlu0
  %v478 = vpop.trf.xlu0
  %v479 = vpop.trf.xlu0
  %v480 = vpop.trf.xlu0
  %v482 = vsel %vm134, %v465, 0
  %484 = vmatpush.msra.mxu0 0.0
  %485 = vmatpush.msra.mxu0 0.0
  %486 = vmatpush.msra.mxu0 0.0
  %487 = vmatpush.msra.mxu0 0.0
  %488 = vmatpush.msra.mxu0 0.0
  %489 = vmatpush.msra.mxu0 0.0
  %490 = vmatpush.msra.mxu0 0.0
  %491 = vmatpush.msra.mxu0 0.0
  %492 = vmatpush.msra.mxu0 0.0
  %493 = vmatpush.msra.mxu0 0.0
  %494 = vmatpush.msra.mxu0 0.0
  %495 = vmatpush.msra.mxu0 0.0
  %496 = vmatpush.msra.mxu0 %v403
  %497 = vmatpush.msra.mxu0 %v400
  %498 = vmatpush.msra.mxu0 %v397
  %499 = vmatpush.msra.mxu0 %v394
  %500 = vmatmul.f32.gmra.mxu0 %v482
  %v501 = vpop.f32.mrf.mxu0
  %v502 = vadd.f32 0.0, %v501
  %503 = vdwg.mxu0
  %v504 = vsel %vm158, %v502, -inf
  %v505 = vrot.slane %v504, 4
  %v506 = vmax.f32 %v504, %v505
  %v507 = vrot.slane %v506, 2
  %v508 = vmax.f32 %v506, %v507
  %v509 = vrot.slane %v508, 1
  %v510 = vmax.f32 %v508, %v509
  %v511 = vsub.f32 %v502, %v510
  %v512 = vmul.f32 %v511, 1.442695
  %v513 = vpow.pop %v512
  %v514 = vsel %vm158, %v513, 0.0
  %v515 = vrot.slane %v514, 4
  %v516 = vadd.f32 %v514, %v515
  %v517 = vrot.slane %v516, 2
  %v518 = vadd.f32 %v516, %v517
  %v519 = vrot.slane %v518, 1
  %v520 = vadd.f32 %v518, %v519
  %v521 = vrcp.pop %v520
  %v522 = vmul.f32 %v520, %v521
  %v523 = vsub.f32 1.0, %v522
  %v524 = vmul.f32 %v521, %v523
  %v525 = vadd.f32 %v521, %v524
  %vm526 = vweird.f32 %v520
  %vm527 = vweird.f32 %v521
  %vm528 = vmor %vm526, %vm527
  %v529 = vsel %vm528, %v521, %v525
  %v530 = vand.u32 2147483647, %v520
  %vm531 = vcmp.eq.f32.partialorder %v530, 8.507059e+37
  %v532 = vand.u32 %v520, 2147483648
  %v533 = vor.u32 1.1754944e-38, %v532
  %v534 = vsel %vm531, %v533, %v529
  %v535 = vmul.f32 %v513, %v534
  %v537 = vsel %vm191, %v438, 0
  %v540 = vsel %vm191, %v441, 0
  %v543 = vsel %vm191, %v444, 0
  %v546 = vsel %vm191, %v447, 0
  %548 = vmatpush.msra.mxu0 0.0
  %549 = vmatpush.msra.mxu0 0.0
  %550 = vmatpush.msra.mxu0 0.0
  %551 = vmatpush.msra.mxu0 0.0
  %552 = vmatpush.msra.mxu0 0.0
  %553 = vmatpush.msra.mxu0 0.0
  %554 = vmatpush.msra.mxu0 0.0
  %555 = vmatpush.msra.mxu0 0.0
  %556 = vmatpush.msra.mxu0 0.0
  %557 = vmatpush.msra.mxu0 0.0
  %558 = vmatpush.msra.mxu0 0.0
  %559 = vmatpush.msra.mxu0 0.0
  %560 = vmatpush.msra.mxu0 0.0
  %561 = vmatpush.msra.mxu0 0.0
  %562 = vmatpush.msra.mxu0 0.0
  %563 = vmatpush.msra.mxu0 %v535
  %564 = vmatmul.f32.gmra.mxu0 %v537
  %v565 = vpop.f32.mrf.mxu0
  %v566 = vadd.f32 0.0, %v565
  %567 = vmatmul.f32.gmra.mxu0 %v540
  %v568 = vpop.f32.mrf.mxu0
  %v569 = vadd.f32 0.0, %v568
  %570 = vmatmul.f32.gmra.mxu0 %v543
  %v571 = vpop.f32.mrf.mxu0
  %v572 = vadd.f32 0.0, %v571
  %573 = vmatmul.f32.gmra.mxu0 %v546
  %v574 = vpop.f32.mrf.mxu0
  %v575 = vadd.f32 0.0, %v574
  %576 = vdwg.mxu0
  %v578 = vsel %vm158, %v394, 0
  %v581 = vsel %vm158, %v397, 0
  %v584 = vsel %vm158, %v400, 0
  %v587 = vsel %vm158, %v403, 0
  %v590 = vsel %vm158, %v535, 0
  %592 = vmatpush.xpose.msra.mxu0 0.0
  %593 = vmatpush.xpose.msra.mxu0 0.0
  %594 = vmatpush.xpose.msra.mxu0 0.0
  %595 = vmatpush.xpose.msra.mxu0 0.0
  %596 = vmatpush.xpose.msra.mxu0 0.0
  %597 = vmatpush.xpose.msra.mxu0 0.0
  %598 = vmatpush.xpose.msra.mxu0 0.0
  %599 = vmatpush.xpose.msra.mxu0 0.0
  %600 = vmatpush.xpose.msra.mxu0 0.0
  %601 = vmatpush.xpose.msra.mxu0 0.0
  %602 = vmatpush.xpose.msra.mxu0 0.0
  %603 = vmatpush.xpose.msra.mxu0 0.0
  %604 = vmatpush.xpose.msra.mxu0 0.0
  %605 = vmatpush.xpose.msra.mxu0 0.0
  %606 = vmatpush.xpose.msra.mxu0 0.0
  %607 = vmatpush.xpose.msra.mxu0 %v590
  %608 = vmatmul.f32.gmra.mxu0 %v578
  %v609 = vpop.f32.mrf.mxu0
  %v610 = vadd.f32 0.0, %v609
  %611 = vmatmul.f32.gmra.mxu0 %v581
  %v612 = vpop.f32.mrf.mxu0
  %v613 = vadd.f32 0.0, %v612
  %614 = vmatmul.f32.gmra.mxu0 %v584
  %v615 = vpop.f32.mrf.mxu0
  %v616 = vadd.f32 0.0, %v615
  %617 = vmatmul.f32.gmra.mxu0 %v587
  %v618 = vpop.f32.mrf.mxu0
  %v619 = vadd.f32 0.0, %v618
  %620 = vdwg.mxu0
  %621 = vxpose.xlu0.b32.start [1/16] %v610, 128
  %622 = vxpose.xlu0.b32.cont [2/16] %v613, 128
  %623 = vxpose.xlu0.b32.cont [3/16] %v616, 128
  %624 = vxpose.xlu0.b32.cont [4/16] %v619, 128
  %625 = vxpose.xlu0.b32.cont [5/16] 0.0, 128
  %626 = vxpose.xlu0.b32.cont [6/16] 0.0, 128
  %627 = vxpose.xlu0.b32.cont [7/16] 0.0, 128
  %628 = vxpose.xlu0.b32.cont [8/16] 0.0, 128
  %629 = vxpose.xlu0.b32.cont [9/16] 0.0, 128
  %630 = vxpose.xlu0.b32.cont [10/16] 0.0, 128
  %631 = vxpose.xlu0.b32.cont [11/16] 0.0, 128
  %632 = vxpose.xlu0.b32.cont [12/16] 0.0, 128
  %633 = vxpose.xlu0.b32.cont [13/16] 0.0, 128
  %634 = vxpose.xlu0.b32.cont [14/16] 0.0, 128
  %635 = vxpose.xlu0.b32.cont [15/16] 0.0, 128
  %636 = vxpose.xlu0.b32.end [16/16] 0.0, 128
  %v637 = vpop.trf.xlu0
  %v638 = vpop.trf.xlu0
  %v639 = vpop.trf.xlu0
  %v640 = vpop.trf.xlu0
  %v641 = vpop.trf.xlu0
  %v642 = vpop.trf.xlu0
  %v643 = vpop.trf.xlu0
  %v644 = vpop.trf.xlu0
  %v645 = vpop.trf.xlu0
  %v646 = vpop.trf.xlu0
  %v647 = vpop.trf.xlu0
  %v648 = vpop.trf.xlu0
  %v649 = vpop.trf.xlu0
  %v650 = vpop.trf.xlu0
  %v651 = vpop.trf.xlu0
  %v652 = vpop.trf.xlu0
  %v654 = vsel %vm134, %v637, 0
  %656 = vmatpush.msra.mxu0 0.0
  %657 = vmatpush.msra.mxu0 0.0
  %658 = vmatpush.msra.mxu0 0.0
  %659 = vmatpush.msra.mxu0 0.0
  %660 = vmatpush.msra.mxu0 0.0
  %661 = vmatpush.msra.mxu0 0.0
  %662 = vmatpush.msra.mxu0 0.0
  %663 = vmatpush.msra.mxu0 0.0
  %664 = vmatpush.msra.mxu0 0.0
  %665 = vmatpush.msra.mxu0 0.0
  %666 = vmatpush.msra.mxu0 0.0
  %667 = vmatpush.msra.mxu0 0.0
  %668 = vmatpush.msra.mxu0 %v575
  %669 = vmatpush.msra.mxu0 %v572
  %670 = vmatpush.msra.mxu0 %v569
  %671 = vmatpush.msra.mxu0 %v566
  %672 = vmatmul.f32.gmra.mxu0 %v654
  %v673 = vpop.f32.mrf.mxu0
  %v674 = vadd.f32 0.0, %v673
  %675 = vdwg.mxu0
  %v676 = vsel %vm158, %v674, -inf
  %v677 = vrot.slane %v676, 4
  %v678 = vmax.f32 %v676, %v677
  %v679 = vrot.slane %v678, 2
  %v680 = vmax.f32 %v678, %v679
  %v681 = vrot.slane %v680, 1
  %v682 = vmax.f32 %v680, %v681
  %v683 = vsub.f32 %v674, %v682
  %v684 = vmul.f32 %v683, 1.442695
  %v685 = vpow.pop %v684
  %v686 = vsel %vm158, %v685, 0.0
  %v687 = vrot.slane %v686, 4
  %v688 = vadd.f32 %v686, %v687
  %v689 = vrot.slane %v688, 2
  %v690 = vadd.f32 %v688, %v689
  %v691 = vrot.slane %v690, 1
  %v692 = vadd.f32 %v690, %v691
  %v693 = vrcp.pop %v692
  %v694 = vmul.f32 %v692, %v693
  %v695 = vsub.f32 1.0, %v694
  %v696 = vmul.f32 %v693, %v695
  %v697 = vadd.f32 %v693, %v696
  %vm698 = vweird.f32 %v692
  %vm699 = vweird.f32 %v693
  %vm700 = vmor %vm698, %vm699
  %v701 = vsel %vm700, %v693, %v697
  %v702 = vand.u32 2147483647, %v692
  %vm703 = vcmp.eq.f32.partialorder %v702, 8.507059e+37
  %v704 = vand.u32 %v692, 2147483648
  %v705 = vor.u32 1.1754944e-38, %v704
  %v706 = vsel %vm703, %v705, %v701
  %v707 = vmul.f32 %v685, %v706
  %v709 = vsel %vm191, %v610, 0
  %v712 = vsel %vm191, %v613, 0
  %v715 = vsel %vm191, %v616, 0
  %v718 = vsel %vm191, %v619, 0
  %720 = vmatpush.msra.mxu0 0.0
  %721 = vmatpush.msra.mxu0 0.0
  %722 = vmatpush.msra.mxu0 0.0
  %723 = vmatpush.msra.mxu0 0.0
  %724 = vmatpush.msra.mxu0 0.0
  %725 = vmatpush.msra.mxu0 0.0
  %726 = vmatpush.msra.mxu0 0.0
  %727 = vmatpush.msra.mxu0 0.0
  %728 = vmatpush.msra.mxu0 0.0
  %729 = vmatpush.msra.mxu0 0.0
  %730 = vmatpush.msra.mxu0 0.0
  %731 = vmatpush.msra.mxu0 0.0
  %732 = vmatpush.msra.mxu0 0.0
  %733 = vmatpush.msra.mxu0 0.0
  %734 = vmatpush.msra.mxu0 0.0
  %735 = vmatpush.msra.mxu0 %v707
  %736 = vmatmul.f32.gmra.mxu0 %v709
  %v737 = vpop.f32.mrf.mxu0
  %v738 = vadd.f32 0.0, %v737
  %739 = vmatmul.f32.gmra.mxu0 %v712
  %v740 = vpop.f32.mrf.mxu0
  %v741 = vadd.f32 0.0, %v740
  %742 = vmatmul.f32.gmra.mxu0 %v715
  %v743 = vpop.f32.mrf.mxu0
  %v744 = vadd.f32 0.0, %v743
  %745 = vmatmul.f32.gmra.mxu0 %v718
  %v746 = vpop.f32.mrf.mxu0
  %v747 = vadd.f32 0.0, %v746
  %748 = vdwg.mxu0
  %v750 = vsel %vm158, %v707, 0
  %v753 = vsel %vm158, %v566, 0
  %v756 = vsel %vm158, %v569, 0
  %v759 = vsel %vm158, %v572, 0
  %v762 = vsel %vm158, %v575, 0
  %764 = vmatpush.xpose.msra.mxu0 0.0
  %765 = vmatpush.xpose.msra.mxu0 0.0
  %766 = vmatpush.xpose.msra.mxu0 0.0
  %767 = vmatpush.xpose.msra.mxu0 0.0
  %768 = vmatpush.xpose.msra.mxu0 0.0
  %769 = vmatpush.xpose.msra.mxu0 0.0
  %770 = vmatpush.xpose.msra.mxu0 0.0
  %771 = vmatpush.xpose.msra.mxu0 0.0
  %772 = vmatpush.xpose.msra.mxu0 0.0
  %773 = vmatpush.xpose.msra.mxu0 0.0
  %774 = vmatpush.xpose.msra.mxu0 0.0
  %775 = vmatpush.xpose.msra.mxu0 0.0
  %776 = vmatpush.xpose.msra.mxu0 %v762
  %777 = vmatpush.xpose.msra.mxu0 %v759
  %778 = vmatpush.xpose.msra.mxu0 %v756
  %779 = vmatpush.xpose.msra.mxu0 %v753
  %780 = vmatmul.f32.gmra.mxu0 %v750
  %v781 = vpop.f32.mrf.mxu0
  %v782 = vadd.f32 0.0, %v781
  %783 = vdwg.mxu0
  %785 = vset.pattern.permute.xlu0 32
  %786 = vperm.xlu0 %785, %v24
  %v787 = vpop.permute.xlu0 %786
  %v789 = vsel %vm134, %v24, 0
  %791 = vmatpush.msra.mxu0 0.0
  %792 = vmatpush.msra.mxu0 0.0
  %793 = vmatpush.msra.mxu0 0.0
  %794 = vmatpush.msra.mxu0 0.0
  %795 = vmatpush.msra.mxu0 0.0
  %796 = vmatpush.msra.mxu0 0.0
  %797 = vmatpush.msra.mxu0 0.0
  %798 = vmatpush.msra.mxu0 0.0
  %799 = vmatpush.msra.mxu0 0.0
  %800 = vmatpush.msra.mxu0 0.0
  %801 = vmatpush.msra.mxu0 0.0
  %802 = vmatpush.msra.mxu0 0.0
  %803 = vmatpush.msra.mxu0 %v747
  %804 = vmatpush.msra.mxu0 %v744
  %805 = vmatpush.msra.mxu0 %v741
  %806 = vmatpush.msra.mxu0 %v738
  %807 = vmatmul.f32.gmra.mxu0 %v789
  %v808 = vpop.f32.mrf.mxu0
  %v809 = vadd.f32 %v787, %v808
  %810 = vdwg.mxu0
  %v811 = vsel %vm134, %v782, 0.0
  %v812 = vrot.slane %v811, 4
  %v813 = vadd.f32 %v811, %v812
  %v814 = vrot.slane %v813, 2
  %v815 = vadd.f32 %v813, %v814
  %v816 = vrot.slane %v815, 1
  %v817 = vadd.f32 %v815, %v816
  %v818 = vrcp.pop 8.0
  %v819 = vmul.f32 8.0, %v818
  %v820 = vsub.f32 1.0, %v819
  %v821 = vmul.f32 %v818, %v820
  %v822 = vadd.f32 %v818, %v821
  %vm823 = vweird.f32 %v818
  %v824 = vsel %vm823, %v818, %v822
  %v825 = vmul.f32 %v817, %v824
  %v826 = vlaneseq
  %v827 = vand.u32 %v826, 127
  %v828 = vlaneseq
  %v829 = vshrl.u32 %v828, 7
  %vm830 = vcmp.eq.s32.totalorder %v827, 1
  %v831 = vsel %vm830, 1, 0
  %v832 = vcvt.s32.f32 %v831
  %vm833 = vcmask 130048
  %v835 = vsel %vm833, %v832, 0
  %837 = vmatpush.msra.mxu0 0.0
  %838 = vmatpush.msra.mxu0 0.0
  %839 = vmatpush.msra.mxu0 0.0
  %840 = vmatpush.msra.mxu0 0.0
  %841 = vmatpush.msra.mxu0 0.0
  %842 = vmatpush.msra.mxu0 0.0
  %843 = vmatpush.msra.mxu0 0.0
  %844 = vmatpush.msra.mxu0 0.0
  %845 = vmatpush.msra.mxu0 0.0
  %846 = vmatpush.msra.mxu0 0.0
  %847 = vmatpush.msra.mxu0 0.0
  %848 = vmatpush.msra.mxu0 0.0
  %849 = vmatpush.msra.mxu0 0.0
  %850 = vmatpush.msra.mxu0 0.0
  %851 = vmatpush.msra.mxu0 %v23
  %852 = vmatpush.msra.mxu0 %v22
  %853 = vmatmul.f32.gmra.mxu0 %v835
  %v854 = vpop.f32.mrf.mxu0
  %v855 = vadd.f32 0.0, %v854
  %856 = vdwg.mxu0
  %859 = vrot.lane.b32.xlu0 %v18, 64
  %v860 = vpop.permute.xlu0 %859
  %861 = vrot.lane.b32.xlu0 %v19, 64
  %v862 = vpop.permute.xlu0 %861
  %v866 = vsel %vm833, %v825, 0
  %868 = vmatpush.msra.mxu0 0.0
  %869 = vmatpush.msra.mxu0 0.0
  %870 = vmatpush.msra.mxu0 0.0
  %871 = vmatpush.msra.mxu0 0.0
  %872 = vmatpush.msra.mxu0 0.0
  %873 = vmatpush.msra.mxu0 0.0
  %874 = vmatpush.msra.mxu0 0.0
  %875 = vmatpush.msra.mxu0 0.0
  %876 = vmatpush.msra.mxu0 0.0
  %877 = vmatpush.msra.mxu0 0.0
  %878 = vmatpush.msra.mxu0 0.0
  %879 = vmatpush.msra.mxu0 0.0
  %880 = vmatpush.msra.mxu0 0.0
  %881 = vmatpush.msra.mxu0 0.0
  %882 = vmatpush.msra.mxu0 %v862
  %883 = vmatpush.msra.mxu0 %v860
  %884 = vmatmul.f32.gmra.mxu0 %v866
  %v885 = vpop.f32.mrf.mxu0
  %v886 = vadd.f32 0.0, %v885
  %887 = vdwg.mxu0
  %v889 = vsel %vm833, %v855, 0
  %891 = vmatpush.msra.mxu0 0.0
  %892 = vmatpush.msra.mxu0 0.0
  %893 = vmatpush.msra.mxu0 0.0
  %894 = vmatpush.msra.mxu0 0.0
  %895 = vmatpush.msra.mxu0 0.0
  %896 = vmatpush.msra.mxu0 0.0
  %897 = vmatpush.msra.mxu0 0.0
  %898 = vmatpush.msra.mxu0 0.0
  %899 = vmatpush.msra.mxu0 0.0
  %900 = vmatpush.msra.mxu0 0.0
  %901 = vmatpush.msra.mxu0 0.0
  %902 = vmatpush.msra.mxu0 0.0
  %903 = vmatpush.msra.mxu0 0.0
  %904 = vmatpush.msra.mxu0 0.0
  %905 = vmatpush.msra.mxu0 %v19
  %906 = vmatpush.msra.mxu0 %v18
  %907 = vmatmul.f32.gmra.mxu0 %v889
  %v908 = vpop.f32.mrf.mxu0
  %v909 = vadd.f32 %v886, %v908
  %910 = vdwg.mxu0
  %v911 = vadd.f32 %v909, %v25
  %v912 = vxor.u32 %v911, 2147483648
  %v913 = vmul.f32 %v912, 1.442695
  %v914 = vpow.pop %v913
  %v915 = vadd.f32 %v914, 1.0
  %v916 = vrcp.pop %v915
  %v917 = vmul.f32 %v915, %v916
  %v918 = vsub.f32 1.0, %v917
  %v919 = vmul.f32 %v916, %v918
  %v920 = vadd.f32 %v916, %v919
  %vm921 = vweird.f32 %v915
  %vm922 = vweird.f32 %v916
  %vm923 = vmor %vm921, %vm922
  %v924 = vsel %vm923, %v916, %v920
  %v925 = vand.u32 2147483647, %v915
  %vm926 = vcmp.eq.f32.partialorder %v925, 8.507059e+37
  %v927 = vand.u32 %v915, 2147483648
  %v928 = vor.u32 1.1754944e-38, %v927
  %v929 = vsel %vm926, %v928, %v924
  %v930 = vmul.f32 1.0, %v929
  %v931 = vtanh.pop %v911
  %932 = vrot.lane.b32.xlu0 %v825, 16
  %v933 = vpop.permute.xlu0 %932
  %v935 = vmul.f32 %v930, %v933
  %937 = vrot.lane.b32.xlu0 %v931, 96
  %v938 = vpop.permute.xlu0 %937
  %v940 = vmul.f32 %v930, %v938
  %942 = vrot.lane.b32.xlu0 %v940, 16
  %v943 = vpop.permute.xlu0 %942
  %v945 = vadd.f32 %v935, %v943
  %v946 = vtanh.pop %v945
  %948 = vrot.lane.b32.xlu0 %v946, 32
  %v949 = vpop.permute.xlu0 %948
  %v951 = vmul.f32 %v930, %v949
  %952 = vrot.lane.b32.xlu0 %v825, 112
  %v953 = vpop.permute.xlu0 %952
  %956 = vrot.lane.b32.xlu0 %v20, 64
  %v957 = vpop.permute.xlu0 %956
  %958 = vrot.lane.b32.xlu0 %v21, 64
  %v959 = vpop.permute.xlu0 %958
  %v962 = vsel %vm833, %v953, 0
  %964 = vmatpush.msra.mxu0 0.0
  %965 = vmatpush.msra.mxu0 0.0
  %966 = vmatpush.msra.mxu0 0.0
  %967 = vmatpush.msra.mxu0 0.0
  %968 = vmatpush.msra.mxu0 0.0
  %969 = vmatpush.msra.mxu0 0.0
  %970 = vmatpush.msra.mxu0 0.0
  %971 = vmatpush.msra.mxu0 0.0
  %972 = vmatpush.msra.mxu0 0.0
  %973 = vmatpush.msra.mxu0 0.0
  %974 = vmatpush.msra.mxu0 0.0
  %975 = vmatpush.msra.mxu0 0.0
  %976 = vmatpush.msra.mxu0 0.0
  %977 = vmatpush.msra.mxu0 0.0
  %978 = vmatpush.msra.mxu0 %v959
  %979 = vmatpush.msra.mxu0 %v957
  %980 = vmatmul.f32.gmra.mxu0 %v962
  %v981 = vpop.f32.mrf.mxu0
  %v982 = vadd.f32 0.0, %v981
  %983 = vdwg.mxu0
  %985 = vrot.lane.b32.xlu0 %v951, 80
  %v986 = vpop.permute.xlu0 %985
  %v987 = vsel %vm833, %v986, 0
  %989 = vmatpush.msra.mxu0 0.0
  %990 = vmatpush.msra.mxu0 0.0
  %991 = vmatpush.msra.mxu0 0.0
  %992 = vmatpush.msra.mxu0 0.0
  %993 = vmatpush.msra.mxu0 0.0
  %994 = vmatpush.msra.mxu0 0.0
  %995 = vmatpush.msra.mxu0 0.0
  %996 = vmatpush.msra.mxu0 0.0
  %997 = vmatpush.msra.mxu0 0.0
  %998 = vmatpush.msra.mxu0 0.0
  %999 = vmatpush.msra.mxu0 0.0
  %1000 = vmatpush.msra.mxu0 0.0
  %1001 = vmatpush.msra.mxu0 0.0
  %1002 = vmatpush.msra.mxu0 0.0
  %1003 = vmatpush.msra.mxu0 %v21
  %1004 = vmatpush.msra.mxu0 %v20
  %1005 = vmatmul.f32.gmra.mxu0 %v987
  %v1006 = vpop.f32.mrf.mxu0
  %v1007 = vadd.f32 %v982, %v1006
  %1008 = vdwg.mxu0
  %1010 = vrot.lane.b32.xlu0 %v25, 64
  %v1011 = vpop.permute.xlu0 %1010
  %v1013 = vadd.f32 %v1007, %v1011
  %v1014 = vxor.u32 %v1013, 2147483648
  %v1015 = vmul.f32 %v1014, 1.442695
  %v1016 = vpow.pop %v1015
  %v1017 = vadd.f32 %v1016, 1.0
  %v1018 = vrcp.pop %v1017
  %v1019 = vmul.f32 %v1017, %v1018
  %v1020 = vsub.f32 1.0, %v1019
  %v1021 = vmul.f32 %v1018, %v1020
  %v1022 = vadd.f32 %v1018, %v1021
  %vm1023 = vweird.f32 %v1017
  %vm1024 = vweird.f32 %v1018
  %vm1025 = vmor %vm1023, %vm1024
  %v1026 = vsel %vm1025, %v1018, %v1022
  %v1027 = vand.u32 2147483647, %v1017
  %vm1028 = vcmp.eq.f32.partialorder %v1027, 8.507059e+37
  %v1029 = vand.u32 %v1017, 2147483648
  %v1030 = vor.u32 1.1754944e-38, %v1029
  %v1031 = vsel %vm1028, %v1030, %v1026
  %v1032 = vmul.f32 1.0, %v1031
  %v1033 = vtanh.pop %v1013
  %v1034 = vmul.f32 %v1032, %v825
  %1036 = vrot.lane.b32.xlu0 %v1033, 96
  %v1037 = vpop.permute.xlu0 %1036
  %v1039 = vmul.f32 %v1032, %v1037
  %1041 = vrot.lane.b32.xlu0 %v1039, 16
  %v1042 = vpop.permute.xlu0 %1041
  %v1044 = vadd.f32 %v1034, %v1042
  %v1045 = vtanh.pop %v1044
  %1047 = vrot.lane.b32.xlu0 %v1045, 32
  %v1048 = vpop.permute.xlu0 %1047
  %v1050 = vmul.f32 %v1032, %v1048
  %1052 = vrot.lane.b32.xlu0 %v1050, 80
  %v1053 = vpop.permute.xlu0 %1052
  %1056 = vrot.lane.b32.xlu0 %v22, 112
  %v1057 = vpop.permute.xlu0 %1056
  %1058 = vrot.lane.b32.xlu0 %v23, 112
  %v1059 = vpop.permute.xlu0 %1058
  %v1062 = vsel %vm833, %v1053, 0
  %1064 = vmatpush.msra.mxu0 0.0
  %1065 = vmatpush.msra.mxu0 0.0
  %1066 = vmatpush.msra.mxu0 0.0
  %1067 = vmatpush.msra.mxu0 0.0
  %1068 = vmatpush.msra.mxu0 0.0
  %1069 = vmatpush.msra.mxu0 0.0
  %1070 = vmatpush.msra.mxu0 0.0
  %1071 = vmatpush.msra.mxu0 0.0
  %1072 = vmatpush.msra.mxu0 0.0
  %1073 = vmatpush.msra.mxu0 0.0
  %1074 = vmatpush.msra.mxu0 0.0
  %1075 = vmatpush.msra.mxu0 0.0
  %1076 = vmatpush.msra.mxu0 0.0
  %1077 = vmatpush.msra.mxu0 0.0
  %1078 = vmatpush.msra.mxu0 %v1059
  %1079 = vmatpush.msra.mxu0 %v1057
  %1080 = vmatmul.f32.gmra.mxu0 %v1062
  %v1081 = vpop.f32.mrf.mxu0
  %v1082 = vadd.f32 %v26, %v1081
  %1083 = vdwg.mxu0
  %vm1084 = vcmp.eq.s32.totalorder %v829, 0
  %v1085 = vperm.slane %v1082, 0
  %v1086 = vsel %vm1084, %v1085, 0.0
  %vm1087 = vcmask 122880
  %v1088 = vsel %vm1087, %v1082, -inf
  %1089 = vmax.xlane.f32.xlu0 %v1088
  %v1090 = vpop.xlane.xlu0 %1089
  %vm1091 = vcmp.ge.f32.partialorder %v1082, %v1090
  %v1092 = vsel %vm1091, %v827, 16
  %v1093 = vsel %vm1087, %v1092, 2147483647
  %v1094 = vand.u32 %v1093, 65535
  %v1095 = vshra.s32 %v1093, 16
  %v1096 = vcvt.s32.f32 %v1094
  %v1097 = vcvt.s32.f32 %v1095
  %1098 = vmin.xlane.f32.xlu0 %v1097
  %v1099 = vpop.xlane.xlu0 %1098
  %vm1100 = vcmp.eq.f32.partialorder %v1097, %v1099
  %v1101 = vsel %vm1100, %v1096, inf
  %1102 = vmin.xlane.f32.xlu0 %v1101
  %v1103 = vpop.xlane.xlu0 %1102
  %v1104 = vcvt.f32.s32 %v1103
  %v1105 = vcvt.f32.s32 %v1099
  %v1106 = vshll.u32 %v1105, 16
  %v1107 = vadd.s32 %v1106, %v1104
  %vm1108 = vcmp.ne.s32.totalorder %v1107, 2
  %v1109 = vsel %vm1108, 1, 0
  %v1110 = vcvt.s32.f32 %v1109
  %vm1111 = vcmp.eq.s32.totalorder %v827, %v1107
  %v1112 = vsel %vm1111, 1, 0
  %v1113 = vcvt.s32.f32 %v1112
  %v1115 = vsel %vm833, %v1113, 0
  %1117 = vmatpush.msra.mxu0 0.0
  %1118 = vmatpush.msra.mxu0 0.0
  %1119 = vmatpush.msra.mxu0 0.0
  %1120 = vmatpush.msra.mxu0 0.0
  %1121 = vmatpush.msra.mxu0 0.0
  %1122 = vmatpush.msra.mxu0 0.0
  %1123 = vmatpush.msra.mxu0 0.0
  %1124 = vmatpush.msra.mxu0 0.0
  %1125 = vmatpush.msra.mxu0 0.0
  %1126 = vmatpush.msra.mxu0 0.0
  %1127 = vmatpush.msra.mxu0 0.0
  %1128 = vmatpush.msra.mxu0 0.0
  %1129 = vmatpush.msra.mxu0 0.0
  %1130 = vmatpush.msra.mxu0 0.0
  %1131 = vmatpush.msra.mxu0 %v23
  %1132 = vmatpush.msra.mxu0 %v22
  %1133 = vmatmul.f32.gmra.mxu0 %v1115
  %v1134 = vpop.f32.mrf.mxu0
  %v1135 = vadd.f32 0.0, %v1134
  %1136 = vdwg.mxu0
  %1137 = vmatpush.msra.mxu0 0.0
  %1138 = vmatpush.msra.mxu0 0.0
  %1139 = vmatpush.msra.mxu0 0.0
  %1140 = vmatpush.msra.mxu0 0.0
  %1141 = vmatpush.msra.mxu0 0.0
  %1142 = vmatpush.msra.mxu0 0.0
  %1143 = vmatpush.msra.mxu0 0.0
  %1144 = vmatpush.msra.mxu0 0.0
  %1145 = vmatpush.msra.mxu0 0.0
  %1146 = vmatpush.msra.mxu0 0.0
  %1147 = vmatpush.msra.mxu0 0.0
  %1148 = vmatpush.msra.mxu0 0.0
  %1149 = vmatpush.msra.mxu0 0.0
  %1150 = vmatpush.msra.mxu0 0.0
  %1151 = vmatpush.msra.mxu0 %v862
  %1152 = vmatpush.msra.mxu0 %v860
  %1153 = vmatmul.f32.gmra.mxu0 %v987
  %v1154 = vpop.f32.mrf.mxu0
  %v1155 = vadd.f32 0.0, %v1154
  %1156 = vdwg.mxu0
  %v1158 = vsel %vm833, %v1135, 0
  %1160 = vmatpush.msra.mxu0 0.0
  %1161 = vmatpush.msra.mxu0 0.0
  %1162 = vmatpush.msra.mxu0 0.0
  %1163 = vmatpush.msra.mxu0 0.0
  %1164 = vmatpush.msra.mxu0 0.0
  %1165 = vmatpush.msra.mxu0 0.0
  %1166 = vmatpush.msra.mxu0 0.0
  %1167 = vmatpush.msra.mxu0 0.0
  %1168 = vmatpush.msra.mxu0 0.0
  %1169 = vmatpush.msra.mxu0 0.0
  %1170 = vmatpush.msra.mxu0 0.0
  %1171 = vmatpush.msra.mxu0 0.0
  %1172 = vmatpush.msra.mxu0 0.0
  %1173 = vmatpush.msra.mxu0 0.0
  %1174 = vmatpush.msra.mxu0 %v19
  %1175 = vmatpush.msra.mxu0 %v18
  %1176 = vmatmul.f32.gmra.mxu0 %v1158
  %v1177 = vpop.f32.mrf.mxu0
  %v1178 = vadd.f32 %v1155, %v1177
  %1179 = vdwg.mxu0
  %v1180 = vadd.f32 %v1178, %v25
  %v1181 = vxor.u32 %v1180, 2147483648
  %v1182 = vmul.f32 %v1181, 1.442695
  %v1183 = vpow.pop %v1182
  %v1184 = vadd.f32 %v1183, 1.0
  %v1185 = vrcp.pop %v1184
  %v1186 = vmul.f32 %v1184, %v1185
  %v1187 = vsub.f32 1.0, %v1186
  %v1188 = vmul.f32 %v1185, %v1187
  %v1189 = vadd.f32 %v1185, %v1188
  %vm1190 = vweird.f32 %v1184
  %vm1191 = vweird.f32 %v1185
  %vm1192 = vmor %vm1190, %vm1191
  %v1193 = vsel %vm1192, %v1185, %v1189
  %v1194 = vand.u32 2147483647, %v1184
  %vm1195 = vcmp.eq.f32.partialorder %v1194, 8.507059e+37
  %v1196 = vand.u32 %v1184, 2147483648
  %v1197 = vor.u32 1.1754944e-38, %v1196
  %v1198 = vsel %vm1195, %v1197, %v1193
  %v1199 = vmul.f32 1.0, %v1198
  %v1200 = vtanh.pop %v1180
  %v1201 = vmul.f32 %v1199, %v945
  %1203 = vrot.lane.b32.xlu0 %v1200, 96
  %v1204 = vpop.permute.xlu0 %1203
  %v1206 = vmul.f32 %v1199, %v1204
  %1208 = vrot.lane.b32.xlu0 %v1206, 16
  %v1209 = vpop.permute.xlu0 %1208
  %v1211 = vadd.f32 %v1201, %v1209
  %v1212 = vtanh.pop %v1211
  %1214 = vrot.lane.b32.xlu0 %v1212, 32
  %v1215 = vpop.permute.xlu0 %1214
  %v1217 = vmul.f32 %v1199, %v1215
  %1218 = vmatpush.msra.mxu0 0.0
  %1219 = vmatpush.msra.mxu0 0.0
  %1220 = vmatpush.msra.mxu0 0.0
  %1221 = vmatpush.msra.mxu0 0.0
  %1222 = vmatpush.msra.mxu0 0.0
  %1223 = vmatpush.msra.mxu0 0.0
  %1224 = vmatpush.msra.mxu0 0.0
  %1225 = vmatpush.msra.mxu0 0.0
  %1226 = vmatpush.msra.mxu0 0.0
  %1227 = vmatpush.msra.mxu0 0.0
  %1228 = vmatpush.msra.mxu0 0.0
  %1229 = vmatpush.msra.mxu0 0.0
  %1230 = vmatpush.msra.mxu0 0.0
  %1231 = vmatpush.msra.mxu0 0.0
  %1232 = vmatpush.msra.mxu0 %v959
  %1233 = vmatpush.msra.mxu0 %v957
  %1234 = vmatmul.f32.gmra.mxu0 %v1062
  %v1235 = vpop.f32.mrf.mxu0
  %v1236 = vadd.f32 0.0, %v1235
  %1237 = vdwg.mxu0
  %1239 = vrot.lane.b32.xlu0 %v1217, 80
  %v1240 = vpop.permute.xlu0 %1239
  %v1241 = vsel %vm833, %v1240, 0
  %1243 = vmatpush.msra.mxu0 0.0
  %1244 = vmatpush.msra.mxu0 0.0
  %1245 = vmatpush.msra.mxu0 0.0
  %1246 = vmatpush.msra.mxu0 0.0
  %1247 = vmatpush.msra.mxu0 0.0
  %1248 = vmatpush.msra.mxu0 0.0
  %1249 = vmatpush.msra.mxu0 0.0
  %1250 = vmatpush.msra.mxu0 0.0
  %1251 = vmatpush.msra.mxu0 0.0
  %1252 = vmatpush.msra.mxu0 0.0
  %1253 = vmatpush.msra.mxu0 0.0
  %1254 = vmatpush.msra.mxu0 0.0
  %1255 = vmatpush.msra.mxu0 0.0
  %1256 = vmatpush.msra.mxu0 0.0
  %1257 = vmatpush.msra.mxu0 %v21
  %1258 = vmatpush.msra.mxu0 %v20
  %1259 = vmatmul.f32.gmra.mxu0 %v1241
  %v1260 = vpop.f32.mrf.mxu0
  %v1261 = vadd.f32 %v1236, %v1260
  %1262 = vdwg.mxu0
  %v1263 = vadd.f32 %v1261, %v1011
  %v1264 = vxor.u32 %v1263, 2147483648
  %v1265 = vmul.f32 %v1264, 1.442695
  %v1266 = vpow.pop %v1265
  %v1267 = vadd.f32 %v1266, 1.0
  %v1268 = vrcp.pop %v1267
  %v1269 = vmul.f32 %v1267, %v1268
  %v1270 = vsub.f32 1.0, %v1269
  %v1271 = vmul.f32 %v1268, %v1270
  %v1272 = vadd.f32 %v1268, %v1271
  %vm1273 = vweird.f32 %v1267
  %vm1274 = vweird.f32 %v1268
  %vm1275 = vmor %vm1273, %vm1274
  %v1276 = vsel %vm1275, %v1268, %v1272
  %v1277 = vand.u32 2147483647, %v1267
  %vm1278 = vcmp.eq.f32.partialorder %v1277, 8.507059e+37
  %v1279 = vand.u32 %v1267, 2147483648
  %v1280 = vor.u32 1.1754944e-38, %v1279
  %v1281 = vsel %vm1278, %v1280, %v1276
  %v1282 = vmul.f32 1.0, %v1281
  %v1283 = vtanh.pop %v1263
  %v1284 = vmul.f32 %v1282, %v1044
  %1286 = vrot.lane.b32.xlu0 %v1283, 96
  %v1287 = vpop.permute.xlu0 %1286
  %v1289 = vmul.f32 %v1282, %v1287
  %1291 = vrot.lane.b32.xlu0 %v1289, 16
  %v1292 = vpop.permute.xlu0 %1291
  %v1294 = vadd.f32 %v1284, %v1292
  %v1295 = vtanh.pop %v1294
  %1297 = vrot.lane.b32.xlu0 %v1295, 32
  %v1298 = vpop.permute.xlu0 %1297
  %v1300 = vmul.f32 %v1282, %v1298
  %1302 = vrot.lane.b32.xlu0 %v1300, 80
  %v1303 = vpop.permute.xlu0 %1302
  %v1304 = vsel %vm833, %v1303, 0
  %1306 = vmatpush.msra.mxu0 0.0
  %1307 = vmatpush.msra.mxu0 0.0
  %1308 = vmatpush.msra.mxu0 0.0
  %1309 = vmatpush.msra.mxu0 0.0
  %1310 = vmatpush.msra.mxu0 0.0
  %1311 = vmatpush.msra.mxu0 0.0
  %1312 = vmatpush.msra.mxu0 0.0
  %1313 = vmatpush.msra.mxu0 0.0
  %1314 = vmatpush.msra.mxu0 0.0
  %1315 = vmatpush.msra.mxu0 0.0
  %1316 = vmatpush.msra.mxu0 0.0
  %1317 = vmatpush.msra.mxu0 0.0
  %1318 = vmatpush.msra.mxu0 0.0
  %1319 = vmatpush.msra.mxu0 0.0
  %1320 = vmatpush.msra.mxu0 %v1059
  %1321 = vmatpush.msra.mxu0 %v1057
  %1322 = vmatmul.f32.gmra.mxu0 %v1304
  %v1323 = vpop.f32.mrf.mxu0
  %v1324 = vadd.f32 %v26, %v1323
  %1325 = vdwg.mxu0
  %vm1326 = vcmp.eq.s32.totalorder %v829, 1
  %v1327 = vmul.f32 %v1324, %v1110
  %v1328 = vperm.slane %v1327, 0
  %v1329 = vsel %vm1326, %v1328, %v1086
  %v1330 = vsel %vm1087, %v1324, -inf
  %1331 = vmax.xlane.f32.xlu0 %v1330
  %v1332 = vpop.xlane.xlu0 %1331
  %vm1333 = vcmp.ge.f32.partialorder %v1324, %v1332
  %v1334 = vsel %vm1333, %v827, 16
  %v1335 = vsel %vm1087, %v1334, 2147483647
  %v1336 = vand.u32 %v1335, 65535
  %v1337 = vshra.s32 %v1335, 16
  %v1338 = vcvt.s32.f32 %v1336
  %v1339 = vcvt.s32.f32 %v1337
  %1340 = vmin.xlane.f32.xlu0 %v1339
  %v1341 = vpop.xlane.xlu0 %1340
  %vm1342 = vcmp.eq.f32.partialorder %v1339, %v1341
  %v1343 = vsel %vm1342, %v1338, inf
  %1344 = vmin.xlane.f32.xlu0 %v1343
  %v1345 = vpop.xlane.xlu0 %1344
  %v1346 = vcvt.f32.s32 %v1345
  %v1347 = vcvt.f32.s32 %v1341
  %v1348 = vshll.u32 %v1347, 16
  %v1349 = vadd.s32 %v1348, %v1346
  %vm1350 = vcmp.ne.s32.totalorder %v1349, 2
  %v1351 = vsel %vm1350, 1, 0
  %v1352 = vcvt.s32.f32 %v1351
  %v1353 = vmul.f32 %v1110, %v1352
  %vm1354 = vcmp.eq.s32.totalorder %v827, %v1349
  %v1355 = vsel %vm1354, 1, 0
  %v1356 = vcvt.s32.f32 %v1355
  %v1358 = vsel %vm833, %v1356, 0
  %1360 = vmatpush.msra.mxu0 0.0
  %1361 = vmatpush.msra.mxu0 0.0
  %1362 = vmatpush.msra.mxu0 0.0
  %1363 = vmatpush.msra.mxu0 0.0
  %1364 = vmatpush.msra.mxu0 0.0
  %1365 = vmatpush.msra.mxu0 0.0
  %1366 = vmatpush.msra.mxu0 0.0
  %1367 = vmatpush.msra.mxu0 0.0
  %1368 = vmatpush.msra.mxu0 0.0
  %1369 = vmatpush.msra.mxu0 0.0
  %1370 = vmatpush.msra.mxu0 0.0
  %1371 = vmatpush.msra.mxu0 0.0
  %1372 = vmatpush.msra.mxu0 0.0
  %1373 = vmatpush.msra.mxu0 0.0
  %1374 = vmatpush.msra.mxu0 %v23
  %1375 = vmatpush.msra.mxu0 %v22
  %1376 = vmatmul.f32.gmra.mxu0 %v1358
  %v1377 = vpop.f32.mrf.mxu0
  %v1378 = vadd.f32 0.0, %v1377
  %1379 = vdwg.mxu0
  %1380 = vmatpush.msra.mxu0 0.0
  %1381 = vmatpush.msra.mxu0 0.0
  %1382 = vmatpush.msra.mxu0 0.0
  %1383 = vmatpush.msra.mxu0 0.0
  %1384 = vmatpush.msra.mxu0 0.0
  %1385 = vmatpush.msra.mxu0 0.0
  %1386 = vmatpush.msra.mxu0 0.0
  %1387 = vmatpush.msra.mxu0 0.0
  %1388 = vmatpush.msra.mxu0 0.0
  %1389 = vmatpush.msra.mxu0 0.0
  %1390 = vmatpush.msra.mxu0 0.0
  %1391 = vmatpush.msra.mxu0 0.0
  %1392 = vmatpush.msra.mxu0 0.0
  %1393 = vmatpush.msra.mxu0 0.0
  %1394 = vmatpush.msra.mxu0 %v862
  %1395 = vmatpush.msra.mxu0 %v860
  %1396 = vmatmul.f32.gmra.mxu0 %v1241
  %v1397 = vpop.f32.mrf.mxu0
  %v1398 = vadd.f32 0.0, %v1397
  %1399 = vdwg.mxu0
  %v1401 = vsel %vm833, %v1378, 0
  %1403 = vmatpush.msra.mxu0 0.0
  %1404 = vmatpush.msra.mxu0 0.0
  %1405 = vmatpush.msra.mxu0 0.0
  %1406 = vmatpush.msra.mxu0 0.0
  %1407 = vmatpush.msra.mxu0 0.0
  %1408 = vmatpush.msra.mxu0 0.0
  %1409 = vmatpush.msra.mxu0 0.0
  %1410 = vmatpush.msra.mxu0 0.0
  %1411 = vmatpush.msra.mxu0 0.0
  %1412 = vmatpush.msra.mxu0 0.0
  %1413 = vmatpush.msra.mxu0 0.0
  %1414 = vmatpush.msra.mxu0 0.0
  %1415 = vmatpush.msra.mxu0 0.0
  %1416 = vmatpush.msra.mxu0 0.0
  %1417 = vmatpush.msra.mxu0 %v19
  %1418 = vmatpush.msra.mxu0 %v18
  %1419 = vmatmul.f32.gmra.mxu0 %v1401
  %v1420 = vpop.f32.mrf.mxu0
  %v1421 = vadd.f32 %v1398, %v1420
  %1422 = vdwg.mxu0
  %v1423 = vadd.f32 %v1421, %v25
  %v1424 = vxor.u32 %v1423, 2147483648
  %v1425 = vmul.f32 %v1424, 1.442695
  %v1426 = vpow.pop %v1425
  %v1427 = vadd.f32 %v1426, 1.0
  %v1428 = vrcp.pop %v1427
  %v1429 = vmul.f32 %v1427, %v1428
  %v1430 = vsub.f32 1.0, %v1429
  %v1431 = vmul.f32 %v1428, %v1430
  %v1432 = vadd.f32 %v1428, %v1431
  %vm1433 = vweird.f32 %v1427
  %vm1434 = vweird.f32 %v1428
  %vm1435 = vmor %vm1433, %vm1434
  %v1436 = vsel %vm1435, %v1428, %v1432
  %v1437 = vand.u32 2147483647, %v1427
  %vm1438 = vcmp.eq.f32.partialorder %v1437, 8.507059e+37
  %v1439 = vand.u32 %v1427, 2147483648
  %v1440 = vor.u32 1.1754944e-38, %v1439
  %v1441 = vsel %vm1438, %v1440, %v1436
  %v1442 = vmul.f32 1.0, %v1441
  %v1443 = vtanh.pop %v1423
  %v1444 = vmul.f32 %v1442, %v1211
  %1446 = vrot.lane.b32.xlu0 %v1443, 96
  %v1447 = vpop.permute.xlu0 %1446
  %v1449 = vmul.f32 %v1442, %v1447
  %1451 = vrot.lane.b32.xlu0 %v1449, 16
  %v1452 = vpop.permute.xlu0 %1451
  %v1454 = vadd.f32 %v1444, %v1452
  %v1455 = vtanh.pop %v1454
  %1457 = vrot.lane.b32.xlu0 %v1455, 32
  %v1458 = vpop.permute.xlu0 %1457
  %v1460 = vmul.f32 %v1442, %v1458
  %1461 = vmatpush.msra.mxu0 0.0
  %1462 = vmatpush.msra.mxu0 0.0
  %1463 = vmatpush.msra.mxu0 0.0
  %1464 = vmatpush.msra.mxu0 0.0
  %1465 = vmatpush.msra.mxu0 0.0
  %1466 = vmatpush.msra.mxu0 0.0
  %1467 = vmatpush.msra.mxu0 0.0
  %1468 = vmatpush.msra.mxu0 0.0
  %1469 = vmatpush.msra.mxu0 0.0
  %1470 = vmatpush.msra.mxu0 0.0
  %1471 = vmatpush.msra.mxu0 0.0
  %1472 = vmatpush.msra.mxu0 0.0
  %1473 = vmatpush.msra.mxu0 0.0
  %1474 = vmatpush.msra.mxu0 0.0
  %1475 = vmatpush.msra.mxu0 %v959
  %1476 = vmatpush.msra.mxu0 %v957
  %1477 = vmatmul.f32.gmra.mxu0 %v1304
  %v1478 = vpop.f32.mrf.mxu0
  %v1479 = vadd.f32 0.0, %v1478
  %1480 = vdwg.mxu0
  %1482 = vrot.lane.b32.xlu0 %v1460, 80
  %v1483 = vpop.permute.xlu0 %1482
  %v1484 = vsel %vm833, %v1483, 0
  %1486 = vmatpush.msra.mxu0 0.0
  %1487 = vmatpush.msra.mxu0 0.0
  %1488 = vmatpush.msra.mxu0 0.0
  %1489 = vmatpush.msra.mxu0 0.0
  %1490 = vmatpush.msra.mxu0 0.0
  %1491 = vmatpush.msra.mxu0 0.0
  %1492 = vmatpush.msra.mxu0 0.0
  %1493 = vmatpush.msra.mxu0 0.0
  %1494 = vmatpush.msra.mxu0 0.0
  %1495 = vmatpush.msra.mxu0 0.0
  %1496 = vmatpush.msra.mxu0 0.0
  %1497 = vmatpush.msra.mxu0 0.0
  %1498 = vmatpush.msra.mxu0 0.0
  %1499 = vmatpush.msra.mxu0 0.0
  %1500 = vmatpush.msra.mxu0 %v21
  %1501 = vmatpush.msra.mxu0 %v20
  %1502 = vmatmul.f32.gmra.mxu0 %v1484
  %v1503 = vpop.f32.mrf.mxu0
  %v1504 = vadd.f32 %v1479, %v1503
  %1505 = vdwg.mxu0
  %v1506 = vadd.f32 %v1504, %v1011
  %v1507 = vxor.u32 %v1506, 2147483648
  %v1508 = vmul.f32 %v1507, 1.442695
  %v1509 = vpow.pop %v1508
  %v1510 = vadd.f32 %v1509, 1.0
  %v1511 = vrcp.pop %v1510
  %v1512 = vmul.f32 %v1510, %v1511
  %v1513 = vsub.f32 1.0, %v1512
  %v1514 = vmul.f32 %v1511, %v1513
  %v1515 = vadd.f32 %v1511, %v1514
  %vm1516 = vweird.f32 %v1510
  %vm1517 = vweird.f32 %v1511
  %vm1518 = vmor %vm1516, %vm1517
  %v1519 = vsel %vm1518, %v1511, %v1515
  %v1520 = vand.u32 2147483647, %v1510
  %vm1521 = vcmp.eq.f32.partialorder %v1520, 8.507059e+37
  %v1522 = vand.u32 %v1510, 2147483648
  %v1523 = vor.u32 1.1754944e-38, %v1522
  %v1524 = vsel %vm1521, %v1523, %v1519
  %v1525 = vmul.f32 1.0, %v1524
  %v1526 = vtanh.pop %v1506
  %v1527 = vmul.f32 %v1525, %v1294
  %1529 = vrot.lane.b32.xlu0 %v1526, 96
  %v1530 = vpop.permute.xlu0 %1529
  %v1532 = vmul.f32 %v1525, %v1530
  %1534 = vrot.lane.b32.xlu0 %v1532, 16
  %v1535 = vpop.permute.xlu0 %1534
  %v1537 = vadd.f32 %v1527, %v1535
  %v1538 = vtanh.pop %v1537
  %1540 = vrot.lane.b32.xlu0 %v1538, 32
  %v1541 = vpop.permute.xlu0 %1540
  %v1543 = vmul.f32 %v1525, %v1541
  %1545 = vrot.lane.b32.xlu0 %v1543, 80
  %v1546 = vpop.permute.xlu0 %1545
  %v1547 = vsel %vm833, %v1546, 0
  %1549 = vmatpush.msra.mxu0 0.0
  %1550 = vmatpush.msra.mxu0 0.0
  %1551 = vmatpush.msra.mxu0 0.0
  %1552 = vmatpush.msra.mxu0 0.0
  %1553 = vmatpush.msra.mxu0 0.0
  %1554 = vmatpush.msra.mxu0 0.0
  %1555 = vmatpush.msra.mxu0 0.0
  %1556 = vmatpush.msra.mxu0 0.0
  %1557 = vmatpush.msra.mxu0 0.0
  %1558 = vmatpush.msra.mxu0 0.0
  %1559 = vmatpush.msra.mxu0 0.0
  %1560 = vmatpush.msra.mxu0 0.0
  %1561 = vmatpush.msra.mxu0 0.0
  %1562 = vmatpush.msra.mxu0 0.0
  %1563 = vmatpush.msra.mxu0 %v1059
  %1564 = vmatpush.msra.mxu0 %v1057
  %1565 = vmatmul.f32.gmra.mxu0 %v1547
  %v1566 = vpop.f32.mrf.mxu0
  %v1567 = vadd.f32 %v26, %v1566
  %1568 = vdwg.mxu0
  %vm1569 = vcmp.eq.s32.totalorder %v829, 2
  %v1570 = vmul.f32 %v1567, %v1353
  %v1571 = vperm.slane %v1570, 0
  %v1572 = vsel %vm1569, %v1571, %v1329
  %v1573 = vsel %vm1087, %v1567, -inf
  %1574 = vmax.xlane.f32.xlu0 %v1573
  %v1575 = vpop.xlane.xlu0 %1574
  %vm1576 = vcmp.ge.f32.partialorder %v1567, %v1575
  %v1577 = vsel %vm1576, %v827, 16
  %v1578 = vsel %vm1087, %v1577, 2147483647
  %v1579 = vand.u32 %v1578, 65535
  %v1580 = vshra.s32 %v1578, 16
  %v1581 = vcvt.s32.f32 %v1579
  %v1582 = vcvt.s32.f32 %v1580
  %1583 = vmin.xlane.f32.xlu0 %v1582
  %v1584 = vpop.xlane.xlu0 %1583
  %vm1585 = vcmp.eq.f32.partialorder %v1582, %v1584
  %v1586 = vsel %vm1585, %v1581, inf
  %1587 = vmin.xlane.f32.xlu0 %v1586
  %v1588 = vpop.xlane.xlu0 %1587
  %v1589 = vcvt.f32.s32 %v1588
  %v1590 = vcvt.f32.s32 %v1584
  %v1591 = vshll.u32 %v1590, 16
  %v1592 = vadd.s32 %v1591, %v1589
  %vm1593 = vcmp.ne.s32.totalorder %v1592, 2
  %v1594 = vsel %vm1593, 1, 0
  %v1595 = vcvt.s32.f32 %v1594
  %v1596 = vmul.f32 %v1353, %v1595
  %vm1597 = vcmp.eq.s32.totalorder %v827, %v1592
  %v1598 = vsel %vm1597, 1, 0
  %v1599 = vcvt.s32.f32 %v1598
  %v1601 = vsel %vm833, %v1599, 0
  %1603 = vmatpush.msra.mxu0 0.0
  %1604 = vmatpush.msra.mxu0 0.0
  %1605 = vmatpush.msra.mxu0 0.0
  %1606 = vmatpush.msra.mxu0 0.0
  %1607 = vmatpush.msra.mxu0 0.0
  %1608 = vmatpush.msra.mxu0 0.0
  %1609 = vmatpush.msra.mxu0 0.0
  %1610 = vmatpush.msra.mxu0 0.0
  %1611 = vmatpush.msra.mxu0 0.0
  %1612 = vmatpush.msra.mxu0 0.0
  %1613 = vmatpush.msra.mxu0 0.0
  %1614 = vmatpush.msra.mxu0 0.0
  %1615 = vmatpush.msra.mxu0 0.0
  %1616 = vmatpush.msra.mxu0 0.0
  %1617 = vmatpush.msra.mxu0 %v23
  %1618 = vmatpush.msra.mxu0 %v22
  %1619 = vmatmul.f32.gmra.mxu0 %v1601
  %v1620 = vpop.f32.mrf.mxu0
  %v1621 = vadd.f32 0.0, %v1620
  %1622 = vdwg.mxu0
  %1623 = vmatpush.msra.mxu0 0.0
  %1624 = vmatpush.msra.mxu0 0.0
  %1625 = vmatpush.msra.mxu0 0.0
  %1626 = vmatpush.msra.mxu0 0.0
  %1627 = vmatpush.msra.mxu0 0.0
  %1628 = vmatpush.msra.mxu0 0.0
  %1629 = vmatpush.msra.mxu0 0.0
  %1630 = vmatpush.msra.mxu0 0.0
  %1631 = vmatpush.msra.mxu0 0.0
  %1632 = vmatpush.msra.mxu0 0.0
  %1633 = vmatpush.msra.mxu0 0.0
  %1634 = vmatpush.msra.mxu0 0.0
  %1635 = vmatpush.msra.mxu0 0.0
  %1636 = vmatpush.msra.mxu0 0.0
  %1637 = vmatpush.msra.mxu0 %v862
  %1638 = vmatpush.msra.mxu0 %v860
  %1639 = vmatmul.f32.gmra.mxu0 %v1484
  %v1640 = vpop.f32.mrf.mxu0
  %v1641 = vadd.f32 0.0, %v1640
  %1642 = vdwg.mxu0
  %v1644 = vsel %vm833, %v1621, 0
  %1646 = vmatpush.msra.mxu0 0.0
  %1647 = vmatpush.msra.mxu0 0.0
  %1648 = vmatpush.msra.mxu0 0.0
  %1649 = vmatpush.msra.mxu0 0.0
  %1650 = vmatpush.msra.mxu0 0.0
  %1651 = vmatpush.msra.mxu0 0.0
  %1652 = vmatpush.msra.mxu0 0.0
  %1653 = vmatpush.msra.mxu0 0.0
  %1654 = vmatpush.msra.mxu0 0.0
  %1655 = vmatpush.msra.mxu0 0.0
  %1656 = vmatpush.msra.mxu0 0.0
  %1657 = vmatpush.msra.mxu0 0.0
  %1658 = vmatpush.msra.mxu0 0.0
  %1659 = vmatpush.msra.mxu0 0.0
  %1660 = vmatpush.msra.mxu0 %v19
  %1661 = vmatpush.msra.mxu0 %v18
  %1662 = vmatmul.f32.gmra.mxu0 %v1644
  %v1663 = vpop.f32.mrf.mxu0
  %v1664 = vadd.f32 %v1641, %v1663
  %1665 = vdwg.mxu0
  %v1666 = vadd.f32 %v1664, %v25
  %v1667 = vxor.u32 %v1666, 2147483648
  %v1668 = vmul.f32 %v1667, 1.442695
  %v1669 = vpow.pop %v1668
  %v1670 = vadd.f32 %v1669, 1.0
  %v1671 = vrcp.pop %v1670
  %v1672 = vmul.f32 %v1670, %v1671
  %v1673 = vsub.f32 1.0, %v1672
  %v1674 = vmul.f32 %v1671, %v1673
  %v1675 = vadd.f32 %v1671, %v1674
  %vm1676 = vweird.f32 %v1670
  %vm1677 = vweird.f32 %v1671
  %vm1678 = vmor %vm1676, %vm1677
  %v1679 = vsel %vm1678, %v1671, %v1675
  %v1680 = vand.u32 2147483647, %v1670
  %vm1681 = vcmp.eq.f32.partialorder %v1680, 8.507059e+37
  %v1682 = vand.u32 %v1670, 2147483648
  %v1683 = vor.u32 1.1754944e-38, %v1682
  %v1684 = vsel %vm1681, %v1683, %v1679
  %v1685 = vmul.f32 1.0, %v1684
  %v1686 = vtanh.pop %v1666
  %v1687 = vmul.f32 %v1685, %v1454
  %1689 = vrot.lane.b32.xlu0 %v1686, 96
  %v1690 = vpop.permute.xlu0 %1689
  %v1692 = vmul.f32 %v1685, %v1690
  %1694 = vrot.lane.b32.xlu0 %v1692, 16
  %v1695 = vpop.permute.xlu0 %1694
  %v1697 = vadd.f32 %v1687, %v1695
  %v1698 = vtanh.pop %v1697
  %1700 = vrot.lane.b32.xlu0 %v1698, 32
  %v1701 = vpop.permute.xlu0 %1700
  %v1703 = vmul.f32 %v1685, %v1701
  %1704 = vmatpush.msra.mxu0 0.0
  %1705 = vmatpush.msra.mxu0 0.0
  %1706 = vmatpush.msra.mxu0 0.0
  %1707 = vmatpush.msra.mxu0 0.0
  %1708 = vmatpush.msra.mxu0 0.0
  %1709 = vmatpush.msra.mxu0 0.0
  %1710 = vmatpush.msra.mxu0 0.0
  %1711 = vmatpush.msra.mxu0 0.0
  %1712 = vmatpush.msra.mxu0 0.0
  %1713 = vmatpush.msra.mxu0 0.0
  %1714 = vmatpush.msra.mxu0 0.0
  %1715 = vmatpush.msra.mxu0 0.0
  %1716 = vmatpush.msra.mxu0 0.0
  %1717 = vmatpush.msra.mxu0 0.0
  %1718 = vmatpush.msra.mxu0 %v959
  %1719 = vmatpush.msra.mxu0 %v957
  %1720 = vmatmul.f32.gmra.mxu0 %v1547
  %v1721 = vpop.f32.mrf.mxu0
  %v1722 = vadd.f32 0.0, %v1721
  %1723 = vdwg.mxu0
  %1725 = vrot.lane.b32.xlu0 %v1703, 80
  %v1726 = vpop.permute.xlu0 %1725
  %v1727 = vsel %vm833, %v1726, 0
  %1729 = vmatpush.msra.mxu0 0.0
  %1730 = vmatpush.msra.mxu0 0.0
  %1731 = vmatpush.msra.mxu0 0.0
  %1732 = vmatpush.msra.mxu0 0.0
  %1733 = vmatpush.msra.mxu0 0.0
  %1734 = vmatpush.msra.mxu0 0.0
  %1735 = vmatpush.msra.mxu0 0.0
  %1736 = vmatpush.msra.mxu0 0.0
  %1737 = vmatpush.msra.mxu0 0.0
  %1738 = vmatpush.msra.mxu0 0.0
  %1739 = vmatpush.msra.mxu0 0.0
  %1740 = vmatpush.msra.mxu0 0.0
  %1741 = vmatpush.msra.mxu0 0.0
  %1742 = vmatpush.msra.mxu0 0.0
  %1743 = vmatpush.msra.mxu0 %v21
  %1744 = vmatpush.msra.mxu0 %v20
  %1745 = vmatmul.f32.gmra.mxu0 %v1727
  %v1746 = vpop.f32.mrf.mxu0
  %v1747 = vadd.f32 %v1722, %v1746
  %1748 = vdwg.mxu0
  %v1749 = vadd.f32 %v1747, %v1011
  %v1750 = vxor.u32 %v1749, 2147483648
  %v1751 = vmul.f32 %v1750, 1.442695
  %v1752 = vpow.pop %v1751
  %v1753 = vadd.f32 %v1752, 1.0
  %v1754 = vrcp.pop %v1753
  %v1755 = vmul.f32 %v1753, %v1754
  %v1756 = vsub.f32 1.0, %v1755
  %v1757 = vmul.f32 %v1754, %v1756
  %v1758 = vadd.f32 %v1754, %v1757
  %vm1759 = vweird.f32 %v1753
  %vm1760 = vweird.f32 %v1754
  %vm1761 = vmor %vm1759, %vm1760
  %v1762 = vsel %vm1761, %v1754, %v1758
  %v1763 = vand.u32 2147483647, %v1753
  %vm1764 = vcmp.eq.f32.partialorder %v1763, 8.507059e+37
  %v1765 = vand.u32 %v1753, 2147483648
  %v1766 = vor.u32 1.1754944e-38, %v1765
  %v1767 = vsel %vm1764, %v1766, %v1762
  %v1768 = vmul.f32 1.0, %v1767
  %v1769 = vtanh.pop %v1749
  %v1770 = vmul.f32 %v1768, %v1537
  %1772 = vrot.lane.b32.xlu0 %v1769, 96
  %v1773 = vpop.permute.xlu0 %1772
  %v1775 = vmul.f32 %v1768, %v1773
  %1777 = vrot.lane.b32.xlu0 %v1775, 16
  %v1778 = vpop.permute.xlu0 %1777
  %v1780 = vadd.f32 %v1770, %v1778
  %v1781 = vtanh.pop %v1780
  %1783 = vrot.lane.b32.xlu0 %v1781, 32
  %v1784 = vpop.permute.xlu0 %1783
  %v1786 = vmul.f32 %v1768, %v1784
  %1788 = vrot.lane.b32.xlu0 %v1786, 80
  %v1789 = vpop.permute.xlu0 %1788
  %v1790 = vsel %vm833, %v1789, 0
  %1792 = vmatpush.msra.mxu0 0.0
  %1793 = vmatpush.msra.mxu0 0.0
  %1794 = vmatpush.msra.mxu0 0.0
  %1795 = vmatpush.msra.mxu0 0.0
  %1796 = vmatpush.msra.mxu0 0.0
  %1797 = vmatpush.msra.mxu0 0.0
  %1798 = vmatpush.msra.mxu0 0.0
  %1799 = vmatpush.msra.mxu0 0.0
  %1800 = vmatpush.msra.mxu0 0.0
  %1801 = vmatpush.msra.mxu0 0.0
  %1802 = vmatpush.msra.mxu0 0.0
  %1803 = vmatpush.msra.mxu0 0.0
  %1804 = vmatpush.msra.mxu0 0.0
  %1805 = vmatpush.msra.mxu0 0.0
  %1806 = vmatpush.msra.mxu0 %v1059
  %1807 = vmatpush.msra.mxu0 %v1057
  %1808 = vmatmul.f32.gmra.mxu0 %v1790
  %v1809 = vpop.f32.mrf.mxu0
  %v1810 = vadd.f32 %v26, %v1809
  %1811 = vdwg.mxu0
  %vm1812 = vcmp.eq.s32.totalorder %v829, 3
  %v1813 = vmul.f32 %v1810, %v1596
  %v1814 = vperm.slane %v1813, 0
  %v1815 = vsel %vm1812, %v1814, %v1572
  %v1816 = vsel %vm1087, %v1810, -inf
  %1817 = vmax.xlane.f32.xlu0 %v1816
  %v1818 = vpop.xlane.xlu0 %1817
  %vm1819 = vcmp.ge.f32.partialorder %v1810, %v1818
  %v1820 = vsel %vm1819, %v827, 16
  %v1821 = vsel %vm1087, %v1820, 2147483647
  %v1822 = vand.u32 %v1821, 65535
  %v1823 = vshra.s32 %v1821, 16
  %v1824 = vcvt.s32.f32 %v1822
  %v1825 = vcvt.s32.f32 %v1823
  %1826 = vmin.xlane.f32.xlu0 %v1825
  %v1827 = vpop.xlane.xlu0 %1826
  %vm1828 = vcmp.eq.f32.partialorder %v1825, %v1827
  %v1829 = vsel %vm1828, %v1824, inf
  %1830 = vmin.xlane.f32.xlu0 %v1829
  %v1831 = vpop.xlane.xlu0 %1830
  %v1832 = vcvt.f32.s32 %v1831
  %v1833 = vcvt.f32.s32 %v1827
  %v1834 = vshll.u32 %v1833, 16
  %v1835 = vadd.s32 %v1834, %v1832
  %vm1836 = vcmp.ne.s32.totalorder %v1835, 2
  %v1837 = vsel %vm1836, 1, 0
  %v1838 = vcvt.s32.f32 %v1837
  %v1839 = vmul.f32 %v1596, %v1838
  %vm1840 = vcmp.eq.s32.totalorder %v827, %v1835
  %v1841 = vsel %vm1840, 1, 0
  %v1842 = vcvt.s32.f32 %v1841
  %v1844 = vsel %vm833, %v1842, 0
  %1846 = vmatpush.msra.mxu0 0.0
  %1847 = vmatpush.msra.mxu0 0.0
  %1848 = vmatpush.msra.mxu0 0.0
  %1849 = vmatpush.msra.mxu0 0.0
  %1850 = vmatpush.msra.mxu0 0.0
  %1851 = vmatpush.msra.mxu0 0.0
  %1852 = vmatpush.msra.mxu0 0.0
  %1853 = vmatpush.msra.mxu0 0.0
  %1854 = vmatpush.msra.mxu0 0.0
  %1855 = vmatpush.msra.mxu0 0.0
  %1856 = vmatpush.msra.mxu0 0.0
  %1857 = vmatpush.msra.mxu0 0.0
  %1858 = vmatpush.msra.mxu0 0.0
  %1859 = vmatpush.msra.mxu0 0.0
  %1860 = vmatpush.msra.mxu0 %v23
  %1861 = vmatpush.msra.mxu0 %v22
  %1862 = vmatmul.f32.gmra.mxu0 %v1844
  %v1863 = vpop.f32.mrf.mxu0
  %v1864 = vadd.f32 0.0, %v1863
  %1865 = vdwg.mxu0
  %1866 = vmatpush.msra.mxu0 0.0
  %1867 = vmatpush.msra.mxu0 0.0
  %1868 = vmatpush.msra.mxu0 0.0
  %1869 = vmatpush.msra.mxu0 0.0
  %1870 = vmatpush.msra.mxu0 0.0
  %1871 = vmatpush.msra.mxu0 0.0
  %1872 = vmatpush.msra.mxu0 0.0
  %1873 = vmatpush.msra.mxu0 0.0
  %1874 = vmatpush.msra.mxu0 0.0
  %1875 = vmatpush.msra.mxu0 0.0
  %1876 = vmatpush.msra.mxu0 0.0
  %1877 = vmatpush.msra.mxu0 0.0
  %1878 = vmatpush.msra.mxu0 0.0
  %1879 = vmatpush.msra.mxu0 0.0
  %1880 = vmatpush.msra.mxu0 %v862
  %1881 = vmatpush.msra.mxu0 %v860
  %1882 = vmatmul.f32.gmra.mxu0 %v1727
  %v1883 = vpop.f32.mrf.mxu0
  %v1884 = vadd.f32 0.0, %v1883
  %1885 = vdwg.mxu0
  %v1887 = vsel %vm833, %v1864, 0
  %1889 = vmatpush.msra.mxu0 0.0
  %1890 = vmatpush.msra.mxu0 0.0
  %1891 = vmatpush.msra.mxu0 0.0
  %1892 = vmatpush.msra.mxu0 0.0
  %1893 = vmatpush.msra.mxu0 0.0
  %1894 = vmatpush.msra.mxu0 0.0
  %1895 = vmatpush.msra.mxu0 0.0
  %1896 = vmatpush.msra.mxu0 0.0
  %1897 = vmatpush.msra.mxu0 0.0
  %1898 = vmatpush.msra.mxu0 0.0
  %1899 = vmatpush.msra.mxu0 0.0
  %1900 = vmatpush.msra.mxu0 0.0
  %1901 = vmatpush.msra.mxu0 0.0
  %1902 = vmatpush.msra.mxu0 0.0
  %1903 = vmatpush.msra.mxu0 %v19
  %1904 = vmatpush.msra.mxu0 %v18
  %1905 = vmatmul.f32.gmra.mxu0 %v1887
  %v1906 = vpop.f32.mrf.mxu0
  %v1907 = vadd.f32 %v1884, %v1906
  %1908 = vdwg.mxu0
  %v1909 = vadd.f32 %v1907, %v25
  %v1910 = vxor.u32 %v1909, 2147483648
  %v1911 = vmul.f32 %v1910, 1.442695
  %v1912 = vpow.pop %v1911
  %v1913 = vadd.f32 %v1912, 1.0
  %v1914 = vrcp.pop %v1913
  %v1915 = vmul.f32 %v1913, %v1914
  %v1916 = vsub.f32 1.0, %v1915
  %v1917 = vmul.f32 %v1914, %v1916
  %v1918 = vadd.f32 %v1914, %v1917
  %vm1919 = vweird.f32 %v1913
  %vm1920 = vweird.f32 %v1914
  %vm1921 = vmor %vm1919, %vm1920
  %v1922 = vsel %vm1921, %v1914, %v1918
  %v1923 = vand.u32 2147483647, %v1913
  %vm1924 = vcmp.eq.f32.partialorder %v1923, 8.507059e+37
  %v1925 = vand.u32 %v1913, 2147483648
  %v1926 = vor.u32 1.1754944e-38, %v1925
  %v1927 = vsel %vm1924, %v1926, %v1922
  %v1928 = vmul.f32 1.0, %v1927
  %v1929 = vtanh.pop %v1909
  %v1930 = vmul.f32 %v1928, %v1697
  %1932 = vrot.lane.b32.xlu0 %v1929, 96
  %v1933 = vpop.permute.xlu0 %1932
  %v1935 = vmul.f32 %v1928, %v1933
  %1937 = vrot.lane.b32.xlu0 %v1935, 16
  %v1938 = vpop.permute.xlu0 %1937
  %v1940 = vadd.f32 %v1930, %v1938
  %v1941 = vtanh.pop %v1940
  %1943 = vrot.lane.b32.xlu0 %v1941, 32
  %v1944 = vpop.permute.xlu0 %1943
  %v1946 = vmul.f32 %v1928, %v1944
  %1947 = vmatpush.msra.mxu0 0.0
  %1948 = vmatpush.msra.mxu0 0.0
  %1949 = vmatpush.msra.mxu0 0.0
  %1950 = vmatpush.msra.mxu0 0.0
  %1951 = vmatpush.msra.mxu0 0.0
  %1952 = vmatpush.msra.mxu0 0.0
  %1953 = vmatpush.msra.mxu0 0.0
  %1954 = vmatpush.msra.mxu0 0.0
  %1955 = vmatpush.msra.mxu0 0.0
  %1956 = vmatpush.msra.mxu0 0.0
  %1957 = vmatpush.msra.mxu0 0.0
  %1958 = vmatpush.msra.mxu0 0.0
  %1959 = vmatpush.msra.mxu0 0.0
  %1960 = vmatpush.msra.mxu0 0.0
  %1961 = vmatpush.msra.mxu0 %v959
  %1962 = vmatpush.msra.mxu0 %v957
  %1963 = vmatmul.f32.gmra.mxu0 %v1790
  %v1964 = vpop.f32.mrf.mxu0
  %v1965 = vadd.f32 0.0, %v1964
  %1966 = vdwg.mxu0
  %1968 = vrot.lane.b32.xlu0 %v1946, 80
  %v1969 = vpop.permute.xlu0 %1968
  %v1970 = vsel %vm833, %v1969, 0
  %1972 = vmatpush.msra.mxu0 0.0
  %1973 = vmatpush.msra.mxu0 0.0
  %1974 = vmatpush.msra.mxu0 0.0
  %1975 = vmatpush.msra.mxu0 0.0
  %1976 = vmatpush.msra.mxu0 0.0
  %1977 = vmatpush.msra.mxu0 0.0
  %1978 = vmatpush.msra.mxu0 0.0
  %1979 = vmatpush.msra.mxu0 0.0
  %1980 = vmatpush.msra.mxu0 0.0
  %1981 = vmatpush.msra.mxu0 0.0
  %1982 = vmatpush.msra.mxu0 0.0
  %1983 = vmatpush.msra.mxu0 0.0
  %1984 = vmatpush.msra.mxu0 0.0
  %1985 = vmatpush.msra.mxu0 0.0
  %1986 = vmatpush.msra.mxu0 %v21
  %1987 = vmatpush.msra.mxu0 %v20
  %1988 = vmatmul.f32.gmra.mxu0 %v1970
  %v1989 = vpop.f32.mrf.mxu0
  %v1990 = vadd.f32 %v1965, %v1989
  %1991 = vdwg.mxu0
  %v1992 = vadd.f32 %v1990, %v1011
  %v1993 = vxor.u32 %v1992, 2147483648
  %v1994 = vmul.f32 %v1993, 1.442695
  %v1995 = vpow.pop %v1994
  %v1996 = vadd.f32 %v1995, 1.0
  %v1997 = vrcp.pop %v1996
  %v1998 = vmul.f32 %v1996, %v1997
  %v1999 = vsub.f32 1.0, %v1998
  %v2000 = vmul.f32 %v1997, %v1999
  %v2001 = vadd.f32 %v1997, %v2000
  %vm2002 = vweird.f32 %v1996
  %vm2003 = vweird.f32 %v1997
  %vm2004 = vmor %vm2002, %vm2003
  %v2005 = vsel %vm2004, %v1997, %v2001
  %v2006 = vand.u32 2147483647, %v1996
  %vm2007 = vcmp.eq.f32.partialorder %v2006, 8.507059e+37
  %v2008 = vand.u32 %v1996, 2147483648
  %v2009 = vor.u32 1.1754944e-38, %v2008
  %v2010 = vsel %vm2007, %v2009, %v2005
  %v2011 = vmul.f32 1.0, %v2010
  %v2012 = vtanh.pop %v1992
  %v2013 = vmul.f32 %v2011, %v1780
  %2015 = vrot.lane.b32.xlu0 %v2012, 96
  %v2016 = vpop.permute.xlu0 %2015
  %v2018 = vmul.f32 %v2011, %v2016
  %2020 = vrot.lane.b32.xlu0 %v2018, 16
  %v2021 = vpop.permute.xlu0 %2020
  %v2023 = vadd.f32 %v2013, %v2021
  %v2024 = vtanh.pop %v2023
  %2026 = vrot.lane.b32.xlu0 %v2024, 32
  %v2027 = vpop.permute.xlu0 %2026
  %v2029 = vmul.f32 %v2011, %v2027
  %2031 = vrot.lane.b32.xlu0 %v2029, 80
  %v2032 = vpop.permute.xlu0 %2031
  %v2033 = vsel %vm833, %v2032, 0
  %2035 = vmatpush.msra.mxu0 0.0
  %2036 = vmatpush.msra.mxu0 0.0
  %2037 = vmatpush.msra.mxu0 0.0
  %2038 = vmatpush.msra.mxu0 0.0
  %2039 = vmatpush.msra.mxu0 0.0
  %2040 = vmatpush.msra.mxu0 0.0
  %2041 = vmatpush.msra.mxu0 0.0
  %2042 = vmatpush.msra.mxu0 0.0
  %2043 = vmatpush.msra.mxu0 0.0
  %2044 = vmatpush.msra.mxu0 0.0
  %2045 = vmatpush.msra.mxu0 0.0
  %2046 = vmatpush.msra.mxu0 0.0
  %2047 = vmatpush.msra.mxu0 0.0
  %2048 = vmatpush.msra.mxu0 0.0
  %2049 = vmatpush.msra.mxu0 %v1059
  %2050 = vmatpush.msra.mxu0 %v1057
  %2051 = vmatmul.f32.gmra.mxu0 %v2033
  %v2052 = vpop.f32.mrf.mxu0
  %v2053 = vadd.f32 %v26, %v2052
  %2054 = vdwg.mxu0
  %vm2055 = vcmp.eq.s32.totalorder %v829, 4
  %v2056 = vmul.f32 %v2053, %v1839
  %v2057 = vperm.slane %v2056, 0
  %v2058 = vsel %vm2055, %v2057, %v1815
  %v2059 = vsel %vm1087, %v2053, -inf
  %2060 = vmax.xlane.f32.xlu0 %v2059
  %v2061 = vpop.xlane.xlu0 %2060
  %vm2062 = vcmp.ge.f32.partialorder %v2053, %v2061
  %v2063 = vsel %vm2062, %v827, 16
  %v2064 = vsel %vm1087, %v2063, 2147483647
  %v2065 = vand.u32 %v2064, 65535
  %v2066 = vshra.s32 %v2064, 16
  %v2067 = vcvt.s32.f32 %v2065
  %v2068 = vcvt.s32.f32 %v2066
  %2069 = vmin.xlane.f32.xlu0 %v2068
  %v2070 = vpop.xlane.xlu0 %2069
  %vm2071 = vcmp.eq.f32.partialorder %v2068, %v2070
  %v2072 = vsel %vm2071, %v2067, inf
  %2073 = vmin.xlane.f32.xlu0 %v2072
  %v2074 = vpop.xlane.xlu0 %2073
  %v2075 = vcvt.f32.s32 %v2074
  %v2076 = vcvt.f32.s32 %v2070
  %v2077 = vshll.u32 %v2076, 16
  %v2078 = vadd.s32 %v2077, %v2075
  %vm2079 = vcmp.ne.s32.totalorder %v2078, 2
  %v2080 = vsel %vm2079, 1, 0
  %v2081 = vcvt.s32.f32 %v2080
  %v2082 = vmul.f32 %v1839, %v2081
  %vm2083 = vcmp.eq.s32.totalorder %v827, %v2078
  %v2084 = vsel %vm2083, 1, 0
  %v2085 = vcvt.s32.f32 %v2084
  %v2087 = vsel %vm833, %v2085, 0
  %2089 = vmatpush.msra.mxu0 0.0
  %2090 = vmatpush.msra.mxu0 0.0
  %2091 = vmatpush.msra.mxu0 0.0
  %2092 = vmatpush.msra.mxu0 0.0
  %2093 = vmatpush.msra.mxu0 0.0
  %2094 = vmatpush.msra.mxu0 0.0
  %2095 = vmatpush.msra.mxu0 0.0
  %2096 = vmatpush.msra.mxu0 0.0
  %2097 = vmatpush.msra.mxu0 0.0
  %2098 = vmatpush.msra.mxu0 0.0
  %2099 = vmatpush.msra.mxu0 0.0
  %2100 = vmatpush.msra.mxu0 0.0
  %2101 = vmatpush.msra.mxu0 0.0
  %2102 = vmatpush.msra.mxu0 0.0
  %2103 = vmatpush.msra.mxu0 %v23
  %2104 = vmatpush.msra.mxu0 %v22
  %2105 = vmatmul.f32.gmra.mxu0 %v2087
  %v2106 = vpop.f32.mrf.mxu0
  %v2107 = vadd.f32 0.0, %v2106
  %2108 = vdwg.mxu0
  %2109 = vmatpush.msra.mxu0 0.0
  %2110 = vmatpush.msra.mxu0 0.0
  %2111 = vmatpush.msra.mxu0 0.0
  %2112 = vmatpush.msra.mxu0 0.0
  %2113 = vmatpush.msra.mxu0 0.0
  %2114 = vmatpush.msra.mxu0 0.0
  %2115 = vmatpush.msra.mxu0 0.0
  %2116 = vmatpush.msra.mxu0 0.0
  %2117 = vmatpush.msra.mxu0 0.0
  %2118 = vmatpush.msra.mxu0 0.0
  %2119 = vmatpush.msra.mxu0 0.0
  %2120 = vmatpush.msra.mxu0 0.0
  %2121 = vmatpush.msra.mxu0 0.0
  %2122 = vmatpush.msra.mxu0 0.0
  %2123 = vmatpush.msra.mxu0 %v862
  %2124 = vmatpush.msra.mxu0 %v860
  %2125 = vmatmul.f32.gmra.mxu0 %v1970
  %v2126 = vpop.f32.mrf.mxu0
  %v2127 = vadd.f32 0.0, %v2126
  %2128 = vdwg.mxu0
  %v2130 = vsel %vm833, %v2107, 0
  %2132 = vmatpush.msra.mxu0 0.0
  %2133 = vmatpush.msra.mxu0 0.0
  %2134 = vmatpush.msra.mxu0 0.0
  %2135 = vmatpush.msra.mxu0 0.0
  %2136 = vmatpush.msra.mxu0 0.0
  %2137 = vmatpush.msra.mxu0 0.0
  %2138 = vmatpush.msra.mxu0 0.0
  %2139 = vmatpush.msra.mxu0 0.0
  %2140 = vmatpush.msra.mxu0 0.0
  %2141 = vmatpush.msra.mxu0 0.0
  %2142 = vmatpush.msra.mxu0 0.0
  %2143 = vmatpush.msra.mxu0 0.0
  %2144 = vmatpush.msra.mxu0 0.0
  %2145 = vmatpush.msra.mxu0 0.0
  %2146 = vmatpush.msra.mxu0 %v19
  %2147 = vmatpush.msra.mxu0 %v18
  %2148 = vmatmul.f32.gmra.mxu0 %v2130
  %v2149 = vpop.f32.mrf.mxu0
  %v2150 = vadd.f32 %v2127, %v2149
  %2151 = vdwg.mxu0
  %v2152 = vadd.f32 %v2150, %v25
  %v2153 = vxor.u32 %v2152, 2147483648
  %v2154 = vmul.f32 %v2153, 1.442695
  %v2155 = vpow.pop %v2154
  %v2156 = vadd.f32 %v2155, 1.0
  %v2157 = vrcp.pop %v2156
  %v2158 = vmul.f32 %v2156, %v2157
  %v2159 = vsub.f32 1.0, %v2158
  %v2160 = vmul.f32 %v2157, %v2159
  %v2161 = vadd.f32 %v2157, %v2160
  %vm2162 = vweird.f32 %v2156
  %vm2163 = vweird.f32 %v2157
  %vm2164 = vmor %vm2162, %vm2163
  %v2165 = vsel %vm2164, %v2157, %v2161
  %v2166 = vand.u32 2147483647, %v2156
  %vm2167 = vcmp.eq.f32.partialorder %v2166, 8.507059e+37
  %v2168 = vand.u32 %v2156, 2147483648
  %v2169 = vor.u32 1.1754944e-38, %v2168
  %v2170 = vsel %vm2167, %v2169, %v2165
  %v2171 = vmul.f32 1.0, %v2170
  %v2172 = vtanh.pop %v2152
  %v2173 = vmul.f32 %v2171, %v1940
  %2175 = vrot.lane.b32.xlu0 %v2172, 96
  %v2176 = vpop.permute.xlu0 %2175
  %v2178 = vmul.f32 %v2171, %v2176
  %2180 = vrot.lane.b32.xlu0 %v2178, 16
  %v2181 = vpop.permute.xlu0 %2180
  %v2183 = vadd.f32 %v2173, %v2181
  %v2184 = vtanh.pop %v2183
  %2186 = vrot.lane.b32.xlu0 %v2184, 32
  %v2187 = vpop.permute.xlu0 %2186
  %v2189 = vmul.f32 %v2171, %v2187
  %2190 = vmatpush.msra.mxu0 0.0
  %2191 = vmatpush.msra.mxu0 0.0
  %2192 = vmatpush.msra.mxu0 0.0
  %2193 = vmatpush.msra.mxu0 0.0
  %2194 = vmatpush.msra.mxu0 0.0
  %2195 = vmatpush.msra.mxu0 0.0
  %2196 = vmatpush.msra.mxu0 0.0
  %2197 = vmatpush.msra.mxu0 0.0
  %2198 = vmatpush.msra.mxu0 0.0
  %2199 = vmatpush.msra.mxu0 0.0
  %2200 = vmatpush.msra.mxu0 0.0
  %2201 = vmatpush.msra.mxu0 0.0
  %2202 = vmatpush.msra.mxu0 0.0
  %2203 = vmatpush.msra.mxu0 0.0
  %2204 = vmatpush.msra.mxu0 %v959
  %2205 = vmatpush.msra.mxu0 %v957
  %2206 = vmatmul.f32.gmra.mxu0 %v2033
  %v2207 = vpop.f32.mrf.mxu0
  %v2208 = vadd.f32 0.0, %v2207
  %2209 = vdwg.mxu0
  %2211 = vrot.lane.b32.xlu0 %v2189, 80
  %v2212 = vpop.permute.xlu0 %2211
  %v2213 = vsel %vm833, %v2212, 0
  %2215 = vmatpush.msra.mxu0 0.0
  %2216 = vmatpush.msra.mxu0 0.0
  %2217 = vmatpush.msra.mxu0 0.0
  %2218 = vmatpush.msra.mxu0 0.0
  %2219 = vmatpush.msra.mxu0 0.0
  %2220 = vmatpush.msra.mxu0 0.0
  %2221 = vmatpush.msra.mxu0 0.0
  %2222 = vmatpush.msra.mxu0 0.0
  %2223 = vmatpush.msra.mxu0 0.0
  %2224 = vmatpush.msra.mxu0 0.0
  %2225 = vmatpush.msra.mxu0 0.0
  %2226 = vmatpush.msra.mxu0 0.0
  %2227 = vmatpush.msra.mxu0 0.0
  %2228 = vmatpush.msra.mxu0 0.0
  %2229 = vmatpush.msra.mxu0 %v21
  %2230 = vmatpush.msra.mxu0 %v20
  %2231 = vmatmul.f32.gmra.mxu0 %v2213
  %v2232 = vpop.f32.mrf.mxu0
  %v2233 = vadd.f32 %v2208, %v2232
  %2234 = vdwg.mxu0
  %v2235 = vadd.f32 %v2233, %v1011
  %v2236 = vxor.u32 %v2235, 2147483648
  %v2237 = vmul.f32 %v2236, 1.442695
  %v2238 = vpow.pop %v2237
  %v2239 = vadd.f32 %v2238, 1.0
  %v2240 = vrcp.pop %v2239
  %v2241 = vmul.f32 %v2239, %v2240
  %v2242 = vsub.f32 1.0, %v2241
  %v2243 = vmul.f32 %v2240, %v2242
  %v2244 = vadd.f32 %v2240, %v2243
  %vm2245 = vweird.f32 %v2239
  %vm2246 = vweird.f32 %v2240
  %vm2247 = vmor %vm2245, %vm2246
  %v2248 = vsel %vm2247, %v2240, %v2244
  %v2249 = vand.u32 2147483647, %v2239
  %vm2250 = vcmp.eq.f32.partialorder %v2249, 8.507059e+37
  %v2251 = vand.u32 %v2239, 2147483648
  %v2252 = vor.u32 1.1754944e-38, %v2251
  %v2253 = vsel %vm2250, %v2252, %v2248
  %v2254 = vmul.f32 1.0, %v2253
  %v2255 = vtanh.pop %v2235
  %v2256 = vmul.f32 %v2254, %v2023
  %2258 = vrot.lane.b32.xlu0 %v2255, 96
  %v2259 = vpop.permute.xlu0 %2258
  %v2261 = vmul.f32 %v2254, %v2259
  %2263 = vrot.lane.b32.xlu0 %v2261, 16
  %v2264 = vpop.permute.xlu0 %2263
  %v2266 = vadd.f32 %v2256, %v2264
  %v2267 = vtanh.pop %v2266
  %2269 = vrot.lane.b32.xlu0 %v2267, 32
  %v2270 = vpop.permute.xlu0 %2269
  %v2272 = vmul.f32 %v2254, %v2270
  %2274 = vrot.lane.b32.xlu0 %v2272, 80
  %v2275 = vpop.permute.xlu0 %2274
  %v2276 = vsel %vm833, %v2275, 0
  %2278 = vmatpush.msra.mxu0 0.0
  %2279 = vmatpush.msra.mxu0 0.0
  %2280 = vmatpush.msra.mxu0 0.0
  %2281 = vmatpush.msra.mxu0 0.0
  %2282 = vmatpush.msra.mxu0 0.0
  %2283 = vmatpush.msra.mxu0 0.0
  %2284 = vmatpush.msra.mxu0 0.0
  %2285 = vmatpush.msra.mxu0 0.0
  %2286 = vmatpush.msra.mxu0 0.0
  %2287 = vmatpush.msra.mxu0 0.0
  %2288 = vmatpush.msra.mxu0 0.0
  %2289 = vmatpush.msra.mxu0 0.0
  %2290 = vmatpush.msra.mxu0 0.0
  %2291 = vmatpush.msra.mxu0 0.0
  %2292 = vmatpush.msra.mxu0 %v1059
  %2293 = vmatpush.msra.mxu0 %v1057
  %2294 = vmatmul.f32.gmra.mxu0 %v2276
  %v2295 = vpop.f32.mrf.mxu0
  %v2296 = vadd.f32 %v26, %v2295
  %2297 = vdwg.mxu0
  %vm2298 = vcmp.eq.s32.totalorder %v829, 5
  %v2299 = vmul.f32 %v2296, %v2082
  %v2300 = vperm.slane %v2299, 0
  %v2301 = vsel %vm2298, %v2300, %v2058
  %v2302 = vsel %vm1087, %v2296, -inf
  %2303 = vmax.xlane.f32.xlu0 %v2302
  %v2304 = vpop.xlane.xlu0 %2303
  %vm2305 = vcmp.ge.f32.partialorder %v2296, %v2304
  %v2306 = vsel %vm2305, %v827, 16
  %v2307 = vsel %vm1087, %v2306, 2147483647
  %v2308 = vand.u32 %v2307, 65535
  %v2309 = vshra.s32 %v2307, 16
  %v2310 = vcvt.s32.f32 %v2308
  %v2311 = vcvt.s32.f32 %v2309
  %2312 = vmin.xlane.f32.xlu0 %v2311
  %v2313 = vpop.xlane.xlu0 %2312
  %vm2314 = vcmp.eq.f32.partialorder %v2311, %v2313
  %v2315 = vsel %vm2314, %v2310, inf
  %2316 = vmin.xlane.f32.xlu0 %v2315
  %v2317 = vpop.xlane.xlu0 %2316
  %v2318 = vcvt.f32.s32 %v2317
  %v2319 = vcvt.f32.s32 %v2313
  %v2320 = vshll.u32 %v2319, 16
  %v2321 = vadd.s32 %v2320, %v2318
  %vm2322 = vcmp.ne.s32.totalorder %v2321, 2
  %v2323 = vsel %vm2322, 1, 0
  %v2324 = vcvt.s32.f32 %v2323
  %v2325 = vmul.f32 %v2082, %v2324
  %vm2326 = vcmp.eq.s32.totalorder %v827, %v2321
  %v2327 = vsel %vm2326, 1, 0
  %v2328 = vcvt.s32.f32 %v2327
  %v2330 = vsel %vm833, %v2328, 0
  %2332 = vmatpush.msra.mxu0 0.0
  %2333 = vmatpush.msra.mxu0 0.0
  %2334 = vmatpush.msra.mxu0 0.0
  %2335 = vmatpush.msra.mxu0 0.0
  %2336 = vmatpush.msra.mxu0 0.0
  %2337 = vmatpush.msra.mxu0 0.0
  %2338 = vmatpush.msra.mxu0 0.0
  %2339 = vmatpush.msra.mxu0 0.0
  %2340 = vmatpush.msra.mxu0 0.0
  %2341 = vmatpush.msra.mxu0 0.0
  %2342 = vmatpush.msra.mxu0 0.0
  %2343 = vmatpush.msra.mxu0 0.0
  %2344 = vmatpush.msra.mxu0 0.0
  %2345 = vmatpush.msra.mxu0 0.0
  %2346 = vmatpush.msra.mxu0 %v23
  %2347 = vmatpush.msra.mxu0 %v22
  %2348 = vmatmul.f32.gmra.mxu0 %v2330
  %v2349 = vpop.f32.mrf.mxu0
  %v2350 = vadd.f32 0.0, %v2349
  %2351 = vdwg.mxu0
  %2352 = vmatpush.msra.mxu0 0.0
  %2353 = vmatpush.msra.mxu0 0.0
  %2354 = vmatpush.msra.mxu0 0.0
  %2355 = vmatpush.msra.mxu0 0.0
  %2356 = vmatpush.msra.mxu0 0.0
  %2357 = vmatpush.msra.mxu0 0.0
  %2358 = vmatpush.msra.mxu0 0.0
  %2359 = vmatpush.msra.mxu0 0.0
  %2360 = vmatpush.msra.mxu0 0.0
  %2361 = vmatpush.msra.mxu0 0.0
  %2362 = vmatpush.msra.mxu0 0.0
  %2363 = vmatpush.msra.mxu0 0.0
  %2364 = vmatpush.msra.mxu0 0.0
  %2365 = vmatpush.msra.mxu0 0.0
  %2366 = vmatpush.msra.mxu0 %v862
  %2367 = vmatpush.msra.mxu0 %v860
  %2368 = vmatmul.f32.gmra.mxu0 %v2213
  %v2369 = vpop.f32.mrf.mxu0
  %v2370 = vadd.f32 0.0, %v2369
  %2371 = vdwg.mxu0
  %v2373 = vsel %vm833, %v2350, 0
  %2375 = vmatpush.msra.mxu0 0.0
  %2376 = vmatpush.msra.mxu0 0.0
  %2377 = vmatpush.msra.mxu0 0.0
  %2378 = vmatpush.msra.mxu0 0.0
  %2379 = vmatpush.msra.mxu0 0.0
  %2380 = vmatpush.msra.mxu0 0.0
  %2381 = vmatpush.msra.mxu0 0.0
  %2382 = vmatpush.msra.mxu0 0.0
  %2383 = vmatpush.msra.mxu0 0.0
  %2384 = vmatpush.msra.mxu0 0.0
  %2385 = vmatpush.msra.mxu0 0.0
  %2386 = vmatpush.msra.mxu0 0.0
  %2387 = vmatpush.msra.mxu0 0.0
  %2388 = vmatpush.msra.mxu0 0.0
  %2389 = vmatpush.msra.mxu0 %v19
  %2390 = vmatpush.msra.mxu0 %v18
  %2391 = vmatmul.f32.gmra.mxu0 %v2373
  %v2392 = vpop.f32.mrf.mxu0
  %v2393 = vadd.f32 %v2370, %v2392
  %2394 = vdwg.mxu0
  %v2395 = vadd.f32 %v2393, %v25
  %v2396 = vxor.u32 %v2395, 2147483648
  %v2397 = vmul.f32 %v2396, 1.442695
  %v2398 = vpow.pop %v2397
  %v2399 = vadd.f32 %v2398, 1.0
  %v2400 = vrcp.pop %v2399
  %v2401 = vmul.f32 %v2399, %v2400
  %v2402 = vsub.f32 1.0, %v2401
  %v2403 = vmul.f32 %v2400, %v2402
  %v2404 = vadd.f32 %v2400, %v2403
  %vm2405 = vweird.f32 %v2399
  %vm2406 = vweird.f32 %v2400
  %vm2407 = vmor %vm2405, %vm2406
  %v2408 = vsel %vm2407, %v2400, %v2404
  %v2409 = vand.u32 2147483647, %v2399
  %vm2410 = vcmp.eq.f32.partialorder %v2409, 8.507059e+37
  %v2411 = vand.u32 %v2399, 2147483648
  %v2412 = vor.u32 1.1754944e-38, %v2411
  %v2413 = vsel %vm2410, %v2412, %v2408
  %v2414 = vmul.f32 1.0, %v2413
  %v2415 = vtanh.pop %v2395
  %v2416 = vmul.f32 %v2414, %v2183
  %2418 = vrot.lane.b32.xlu0 %v2415, 96
  %v2419 = vpop.permute.xlu0 %2418
  %v2421 = vmul.f32 %v2414, %v2419
  %2423 = vrot.lane.b32.xlu0 %v2421, 16
  %v2424 = vpop.permute.xlu0 %2423
  %v2426 = vadd.f32 %v2416, %v2424
  %v2427 = vtanh.pop %v2426
  %2429 = vrot.lane.b32.xlu0 %v2427, 32
  %v2430 = vpop.permute.xlu0 %2429
  %v2432 = vmul.f32 %v2414, %v2430
  %2433 = vmatpush.msra.mxu0 0.0
  %2434 = vmatpush.msra.mxu0 0.0
  %2435 = vmatpush.msra.mxu0 0.0
  %2436 = vmatpush.msra.mxu0 0.0
  %2437 = vmatpush.msra.mxu0 0.0
  %2438 = vmatpush.msra.mxu0 0.0
  %2439 = vmatpush.msra.mxu0 0.0
  %2440 = vmatpush.msra.mxu0 0.0
  %2441 = vmatpush.msra.mxu0 0.0
  %2442 = vmatpush.msra.mxu0 0.0
  %2443 = vmatpush.msra.mxu0 0.0
  %2444 = vmatpush.msra.mxu0 0.0
  %2445 = vmatpush.msra.mxu0 0.0
  %2446 = vmatpush.msra.mxu0 0.0
  %2447 = vmatpush.msra.mxu0 %v959
  %2448 = vmatpush.msra.mxu0 %v957
  %2449 = vmatmul.f32.gmra.mxu0 %v2276
  %v2450 = vpop.f32.mrf.mxu0
  %v2451 = vadd.f32 0.0, %v2450
  %2452 = vdwg.mxu0
  %2454 = vrot.lane.b32.xlu0 %v2432, 80
  %v2455 = vpop.permute.xlu0 %2454
  %v2456 = vsel %vm833, %v2455, 0
  %2458 = vmatpush.msra.mxu0 0.0
  %2459 = vmatpush.msra.mxu0 0.0
  %2460 = vmatpush.msra.mxu0 0.0
  %2461 = vmatpush.msra.mxu0 0.0
  %2462 = vmatpush.msra.mxu0 0.0
  %2463 = vmatpush.msra.mxu0 0.0
  %2464 = vmatpush.msra.mxu0 0.0
  %2465 = vmatpush.msra.mxu0 0.0
  %2466 = vmatpush.msra.mxu0 0.0
  %2467 = vmatpush.msra.mxu0 0.0
  %2468 = vmatpush.msra.mxu0 0.0
  %2469 = vmatpush.msra.mxu0 0.0
  %2470 = vmatpush.msra.mxu0 0.0
  %2471 = vmatpush.msra.mxu0 0.0
  %2472 = vmatpush.msra.mxu0 %v21
  %2473 = vmatpush.msra.mxu0 %v20
  %2474 = vmatmul.f32.gmra.mxu0 %v2456
  %v2475 = vpop.f32.mrf.mxu0
  %v2476 = vadd.f32 %v2451, %v2475
  %2477 = vdwg.mxu0
  %v2478 = vadd.f32 %v2476, %v1011
  %v2479 = vxor.u32 %v2478, 2147483648
  %v2480 = vmul.f32 %v2479, 1.442695
  %v2481 = vpow.pop %v2480
  %v2482 = vadd.f32 %v2481, 1.0
  %v2483 = vrcp.pop %v2482
  %v2484 = vmul.f32 %v2482, %v2483
  %v2485 = vsub.f32 1.0, %v2484
  %v2486 = vmul.f32 %v2483, %v2485
  %v2487 = vadd.f32 %v2483, %v2486
  %vm2488 = vweird.f32 %v2482
  %vm2489 = vweird.f32 %v2483
  %vm2490 = vmor %vm2488, %vm2489
  %v2491 = vsel %vm2490, %v2483, %v2487
  %v2492 = vand.u32 2147483647, %v2482
  %vm2493 = vcmp.eq.f32.partialorder %v2492, 8.507059e+37
  %v2494 = vand.u32 %v2482, 2147483648
  %v2495 = vor.u32 1.1754944e-38, %v2494
  %v2496 = vsel %vm2493, %v2495, %v2491
  %v2497 = vmul.f32 1.0, %v2496
  %v2498 = vtanh.pop %v2478
  %v2499 = vmul.f32 %v2497, %v2266
  %2501 = vrot.lane.b32.xlu0 %v2498, 96
  %v2502 = vpop.permute.xlu0 %2501
  %v2504 = vmul.f32 %v2497, %v2502
  %2506 = vrot.lane.b32.xlu0 %v2504, 16
  %v2507 = vpop.permute.xlu0 %2506
  %v2509 = vadd.f32 %v2499, %v2507
  %v2510 = vtanh.pop %v2509
  %2512 = vrot.lane.b32.xlu0 %v2510, 32
  %v2513 = vpop.permute.xlu0 %2512
  %v2515 = vmul.f32 %v2497, %v2513
  %2517 = vrot.lane.b32.xlu0 %v2515, 80
  %v2518 = vpop.permute.xlu0 %2517
  %v2519 = vsel %vm833, %v2518, 0
  %2521 = vmatpush.msra.mxu0 0.0
  %2522 = vmatpush.msra.mxu0 0.0
  %2523 = vmatpush.msra.mxu0 0.0
  %2524 = vmatpush.msra.mxu0 0.0
  %2525 = vmatpush.msra.mxu0 0.0
  %2526 = vmatpush.msra.mxu0 0.0
  %2527 = vmatpush.msra.mxu0 0.0
  %2528 = vmatpush.msra.mxu0 0.0
  %2529 = vmatpush.msra.mxu0 0.0
  %2530 = vmatpush.msra.mxu0 0.0
  %2531 = vmatpush.msra.mxu0 0.0
  %2532 = vmatpush.msra.mxu0 0.0
  %2533 = vmatpush.msra.mxu0 0.0
  %2534 = vmatpush.msra.mxu0 0.0
  %2535 = vmatpush.msra.mxu0 %v1059
  %2536 = vmatpush.msra.mxu0 %v1057
  %2537 = vmatmul.f32.gmra.mxu0 %v2519
  %v2538 = vpop.f32.mrf.mxu0
  %v2539 = vadd.f32 %v26, %v2538
  %2540 = vdwg.mxu0
  %vm2541 = vcmp.eq.s32.totalorder %v829, 6
  %v2542 = vmul.f32 %v2539, %v2325
  %v2543 = vperm.slane %v2542, 0
  %v2544 = vsel %vm2541, %v2543, %v2301
  %v2545 = vsel %vm1087, %v2539, -inf
  %2546 = vmax.xlane.f32.xlu0 %v2545
  %v2547 = vpop.xlane.xlu0 %2546
  %vm2548 = vcmp.ge.f32.partialorder %v2539, %v2547
  %v2549 = vsel %vm2548, %v827, 16
  %v2550 = vsel %vm1087, %v2549, 2147483647
  %v2551 = vand.u32 %v2550, 65535
  %v2552 = vshra.s32 %v2550, 16
  %v2553 = vcvt.s32.f32 %v2551
  %v2554 = vcvt.s32.f32 %v2552
  %2555 = vmin.xlane.f32.xlu0 %v2554
  %v2556 = vpop.xlane.xlu0 %2555
  %vm2557 = vcmp.eq.f32.partialorder %v2554, %v2556
  %v2558 = vsel %vm2557, %v2553, inf
  %2559 = vmin.xlane.f32.xlu0 %v2558
  %v2560 = vpop.xlane.xlu0 %2559
  %v2561 = vcvt.f32.s32 %v2560
  %v2562 = vcvt.f32.s32 %v2556
  %v2563 = vshll.u32 %v2562, 16
  %v2564 = vadd.s32 %v2563, %v2561
  %vm2565 = vcmp.ne.s32.totalorder %v2564, 2
  %v2566 = vsel %vm2565, 1, 0
  %v2567 = vcvt.s32.f32 %v2566
  %v2568 = vmul.f32 %v2325, %v2567
  %vm2569 = vcmp.eq.s32.totalorder %v827, %v2564
  %v2570 = vsel %vm2569, 1, 0
  %v2571 = vcvt.s32.f32 %v2570
  %v2573 = vsel %vm833, %v2571, 0
  %2575 = vmatpush.msra.mxu0 0.0
  %2576 = vmatpush.msra.mxu0 0.0
  %2577 = vmatpush.msra.mxu0 0.0
  %2578 = vmatpush.msra.mxu0 0.0
  %2579 = vmatpush.msra.mxu0 0.0
  %2580 = vmatpush.msra.mxu0 0.0
  %2581 = vmatpush.msra.mxu0 0.0
  %2582 = vmatpush.msra.mxu0 0.0
  %2583 = vmatpush.msra.mxu0 0.0
  %2584 = vmatpush.msra.mxu0 0.0
  %2585 = vmatpush.msra.mxu0 0.0
  %2586 = vmatpush.msra.mxu0 0.0
  %2587 = vmatpush.msra.mxu0 0.0
  %2588 = vmatpush.msra.mxu0 0.0
  %2589 = vmatpush.msra.mxu0 %v23
  %2590 = vmatpush.msra.mxu0 %v22
  %2591 = vmatmul.f32.gmra.mxu0 %v2573
  %v2592 = vpop.f32.mrf.mxu0
  %v2593 = vadd.f32 0.0, %v2592
  %2594 = vdwg.mxu0
  %2595 = vmatpush.msra.mxu0 0.0
  %2596 = vmatpush.msra.mxu0 0.0
  %2597 = vmatpush.msra.mxu0 0.0
  %2598 = vmatpush.msra.mxu0 0.0
  %2599 = vmatpush.msra.mxu0 0.0
  %2600 = vmatpush.msra.mxu0 0.0
  %2601 = vmatpush.msra.mxu0 0.0
  %2602 = vmatpush.msra.mxu0 0.0
  %2603 = vmatpush.msra.mxu0 0.0
  %2604 = vmatpush.msra.mxu0 0.0
  %2605 = vmatpush.msra.mxu0 0.0
  %2606 = vmatpush.msra.mxu0 0.0
  %2607 = vmatpush.msra.mxu0 0.0
  %2608 = vmatpush.msra.mxu0 0.0
  %2609 = vmatpush.msra.mxu0 %v862
  %2610 = vmatpush.msra.mxu0 %v860
  %2611 = vmatmul.f32.gmra.mxu0 %v2456
  %v2612 = vpop.f32.mrf.mxu0
  %v2613 = vadd.f32 0.0, %v2612
  %2614 = vdwg.mxu0
  %v2616 = vsel %vm833, %v2593, 0
  %2618 = vmatpush.msra.mxu0 0.0
  %2619 = vmatpush.msra.mxu0 0.0
  %2620 = vmatpush.msra.mxu0 0.0
  %2621 = vmatpush.msra.mxu0 0.0
  %2622 = vmatpush.msra.mxu0 0.0
  %2623 = vmatpush.msra.mxu0 0.0
  %2624 = vmatpush.msra.mxu0 0.0
  %2625 = vmatpush.msra.mxu0 0.0
  %2626 = vmatpush.msra.mxu0 0.0
  %2627 = vmatpush.msra.mxu0 0.0
  %2628 = vmatpush.msra.mxu0 0.0
  %2629 = vmatpush.msra.mxu0 0.0
  %2630 = vmatpush.msra.mxu0 0.0
  %2631 = vmatpush.msra.mxu0 0.0
  %2632 = vmatpush.msra.mxu0 %v19
  %2633 = vmatpush.msra.mxu0 %v18
  %2634 = vmatmul.f32.gmra.mxu0 %v2616
  %v2635 = vpop.f32.mrf.mxu0
  %v2636 = vadd.f32 %v2613, %v2635
  %2637 = vdwg.mxu0
  %v2638 = vadd.f32 %v2636, %v25
  %v2639 = vxor.u32 %v2638, 2147483648
  %v2640 = vmul.f32 %v2639, 1.442695
  %v2641 = vpow.pop %v2640
  %v2642 = vadd.f32 %v2641, 1.0
  %v2643 = vrcp.pop %v2642
  %v2644 = vmul.f32 %v2642, %v2643
  %v2645 = vsub.f32 1.0, %v2644
  %v2646 = vmul.f32 %v2643, %v2645
  %v2647 = vadd.f32 %v2643, %v2646
  %vm2648 = vweird.f32 %v2642
  %vm2649 = vweird.f32 %v2643
  %vm2650 = vmor %vm2648, %vm2649
  %v2651 = vsel %vm2650, %v2643, %v2647
  %v2652 = vand.u32 2147483647, %v2642
  %vm2653 = vcmp.eq.f32.partialorder %v2652, 8.507059e+37
  %v2654 = vand.u32 %v2642, 2147483648
  %v2655 = vor.u32 1.1754944e-38, %v2654
  %v2656 = vsel %vm2653, %v2655, %v2651
  %v2657 = vmul.f32 1.0, %v2656
  %v2658 = vtanh.pop %v2638
  %v2659 = vmul.f32 %v2657, %v2426
  %2661 = vrot.lane.b32.xlu0 %v2658, 96
  %v2662 = vpop.permute.xlu0 %2661
  %v2664 = vmul.f32 %v2657, %v2662
  %2666 = vrot.lane.b32.xlu0 %v2664, 16
  %v2667 = vpop.permute.xlu0 %2666
  %v2669 = vadd.f32 %v2659, %v2667
  %v2670 = vtanh.pop %v2669
  %2672 = vrot.lane.b32.xlu0 %v2670, 32
  %v2673 = vpop.permute.xlu0 %2672
  %v2675 = vmul.f32 %v2657, %v2673
  %2676 = vmatpush.msra.mxu0 0.0
  %2677 = vmatpush.msra.mxu0 0.0
  %2678 = vmatpush.msra.mxu0 0.0
  %2679 = vmatpush.msra.mxu0 0.0
  %2680 = vmatpush.msra.mxu0 0.0
  %2681 = vmatpush.msra.mxu0 0.0
  %2682 = vmatpush.msra.mxu0 0.0
  %2683 = vmatpush.msra.mxu0 0.0
  %2684 = vmatpush.msra.mxu0 0.0
  %2685 = vmatpush.msra.mxu0 0.0
  %2686 = vmatpush.msra.mxu0 0.0
  %2687 = vmatpush.msra.mxu0 0.0
  %2688 = vmatpush.msra.mxu0 0.0
  %2689 = vmatpush.msra.mxu0 0.0
  %2690 = vmatpush.msra.mxu0 %v959
  %2691 = vmatpush.msra.mxu0 %v957
  %2692 = vmatmul.f32.gmra.mxu0 %v2519
  %v2693 = vpop.f32.mrf.mxu0
  %v2694 = vadd.f32 0.0, %v2693
  %2695 = vdwg.mxu0
  %2697 = vrot.lane.b32.xlu0 %v2675, 80
  %v2698 = vpop.permute.xlu0 %2697
  %v2699 = vsel %vm833, %v2698, 0
  %2701 = vmatpush.msra.mxu0 0.0
  %2702 = vmatpush.msra.mxu0 0.0
  %2703 = vmatpush.msra.mxu0 0.0
  %2704 = vmatpush.msra.mxu0 0.0
  %2705 = vmatpush.msra.mxu0 0.0
  %2706 = vmatpush.msra.mxu0 0.0
  %2707 = vmatpush.msra.mxu0 0.0
  %2708 = vmatpush.msra.mxu0 0.0
  %2709 = vmatpush.msra.mxu0 0.0
  %2710 = vmatpush.msra.mxu0 0.0
  %2711 = vmatpush.msra.mxu0 0.0
  %2712 = vmatpush.msra.mxu0 0.0
  %2713 = vmatpush.msra.mxu0 0.0
  %2714 = vmatpush.msra.mxu0 0.0
  %2715 = vmatpush.msra.mxu0 %v21
  %2716 = vmatpush.msra.mxu0 %v20
  %2717 = vmatmul.f32.gmra.mxu0 %v2699
  %v2718 = vpop.f32.mrf.mxu0
  %v2719 = vadd.f32 %v2694, %v2718
  %2720 = vdwg.mxu0
  %v2721 = vadd.f32 %v2719, %v1011
  %v2722 = vxor.u32 %v2721, 2147483648
  %v2723 = vmul.f32 %v2722, 1.442695
  %v2724 = vpow.pop %v2723
  %v2725 = vadd.f32 %v2724, 1.0
  %v2726 = vrcp.pop %v2725
  %v2727 = vmul.f32 %v2725, %v2726
  %v2728 = vsub.f32 1.0, %v2727
  %v2729 = vmul.f32 %v2726, %v2728
  %v2730 = vadd.f32 %v2726, %v2729
  %vm2731 = vweird.f32 %v2725
  %vm2732 = vweird.f32 %v2726
  %vm2733 = vmor %vm2731, %vm2732
  %v2734 = vsel %vm2733, %v2726, %v2730
  %v2735 = vand.u32 2147483647, %v2725
  %vm2736 = vcmp.eq.f32.partialorder %v2735, 8.507059e+37
  %v2737 = vand.u32 %v2725, 2147483648
  %v2738 = vor.u32 1.1754944e-38, %v2737
  %v2739 = vsel %vm2736, %v2738, %v2734
  %v2740 = vmul.f32 1.0, %v2739
  %v2741 = vtanh.pop %v2721
  %v2742 = vmul.f32 %v2740, %v2509
  %2744 = vrot.lane.b32.xlu0 %v2741, 96
  %v2745 = vpop.permute.xlu0 %2744
  %v2747 = vmul.f32 %v2740, %v2745
  %2749 = vrot.lane.b32.xlu0 %v2747, 16
  %v2750 = vpop.permute.xlu0 %2749
  %v2752 = vadd.f32 %v2742, %v2750
  %v2753 = vtanh.pop %v2752
  %2755 = vrot.lane.b32.xlu0 %v2753, 32
  %v2756 = vpop.permute.xlu0 %2755
  %v2758 = vmul.f32 %v2740, %v2756
  %2760 = vrot.lane.b32.xlu0 %v2758, 80
  %v2761 = vpop.permute.xlu0 %2760
  %v2762 = vsel %vm833, %v2761, 0
  %2764 = vmatpush.msra.mxu0 0.0
  %2765 = vmatpush.msra.mxu0 0.0
  %2766 = vmatpush.msra.mxu0 0.0
  %2767 = vmatpush.msra.mxu0 0.0
  %2768 = vmatpush.msra.mxu0 0.0
  %2769 = vmatpush.msra.mxu0 0.0
  %2770 = vmatpush.msra.mxu0 0.0
  %2771 = vmatpush.msra.mxu0 0.0
  %2772 = vmatpush.msra.mxu0 0.0
  %2773 = vmatpush.msra.mxu0 0.0
  %2774 = vmatpush.msra.mxu0 0.0
  %2775 = vmatpush.msra.mxu0 0.0
  %2776 = vmatpush.msra.mxu0 0.0
  %2777 = vmatpush.msra.mxu0 0.0
  %2778 = vmatpush.msra.mxu0 %v1059
  %2779 = vmatpush.msra.mxu0 %v1057
  %2780 = vmatmul.f32.gmra.mxu0 %v2762
  %v2781 = vpop.f32.mrf.mxu0
  %v2782 = vadd.f32 %v26, %v2781
  %2783 = vdwg.mxu0
  %vm2784 = vcmp.eq.s32.totalorder %v829, 7
  %v2785 = vmul.f32 %v2782, %v2568
  %v2786 = vperm.slane %v2785, 0
  %v2787 = vsel %vm2784, %v2786, %v2544
  %2788 = vst [vmem:[%s3] sm:$0xff] 0.0
  %2789 = vst [vmem:[%s3 + $0x8] sm:$0xff] 0.0
  %2790 = vst.msk [vmem:[%s3] sm:$0xff] %vm158, %v707
  %2792 = vrot.lane.b32.xlu0 %v2787, 64
  %v2793 = vpop.permute.xlu0 %2792
  %vm2795 = vcmask 654848
  %2796 = vst.msk [vmem:[%s3] sm:$0xff] %vm2795, %v2793
  %vm2797 = vcmask 519168
  %2798 = vst.msk [vmem:[%s3 + $0x8] sm:$0xf] %vm2797, %v809
  // Predicated region
  $region14: #{atten_ground_forward.1} parent=0 // pred_check
    _
  $region15: #{atten_ground_forward.1} parent=0 // pred_check_branch
    %2800 = sbr.rel (0) target = $region17
  $region16: #{atten_ground_forward.1} parent=0 // pred_region
    _
  $region17: #{atten_ground_forward.1} parent=0 // pred_fallthru
    _
  // Predicated region
  $region18: #{atten_ground_forward.1} parent=0 // pred_check
    _
  $region19: #{atten_ground_forward.1} parent=0 // pred_check_branch
    %2802 = sbr.rel (0) target = $region21
  $region20: #{atten_ground_forward.1} parent=0 // pred_region
    _
  $region21: #{atten_ground_forward.1} parent=0 // pred_fallthru
    _

</llo_original>
